<compile_context>
chip_gen: v5e
topology: v5e:2x2
jax: 0.10.0
libtpu: 0.0.40
codegen_flags: <defaults>
</compile_context>

<pallas_src>
import jax
import jax.numpy as jnp
import numpy as np
from jax.experimental import pallas as pl
from jax.experimental.pallas import tpu as pltpu

K = 4            # TNetK k (input channel count and output transform size)
N_POINTS = 16    # Conv1d spatial length (number of points)
C1, C2, F1, F2 = 256, 1024, 512, 256
EPS = 1e-5       # BatchNorm eps
TB_TARGET = 128  # batch elements per grid step:
                 #   - fc1/fc2/final run with M=128 rows (full MXU M on v5e,
                 #     half on v6e/v7x) instead of M=16
                 #   - conv2 runs with M = TB*N = 2048 rows
                 #   - per-step VMEM stays well under the v7x 64 MiB/TC limit
                 #     because the conv2 slab is kept in bf16 after the dot.


# ---------------------------------------------------------------------------
# Pallas kernel: one grid step processes TB batch elements end-to-end.
# ---------------------------------------------------------------------------
def tnetk_kernel(x_ref, w1_ref, b1_ref, w2_ref, b2_ref,
                 w3_ref, b3_ref, w4_ref, b4_ref,
                 wt_ref, bt_ref, out_ref):
    tbn, k = x_ref.shape              # (TB*N, k), static
    tb, kk = out_ref.shape            # (TB, k*k), static
    n = tbn // tb                     # points per batch element

    # conv1 (1x1, k=4 contraction) + folded BN + ReLU, on the (otherwise idle)
    # MXU instead of unrolled VPU multiply-adds; h1 produced directly in bf16.
    x = x_ref[...].astype(jnp.bfloat16)                       # (TB*N, k)
    h1 = jnp.maximum(
        jnp.dot(x, w1_ref[...], preferred_element_type=jnp.float32)
        + b1_ref[...], 0.0).astype(jnp.bfloat16)              # (TB*N, C1)

    # conv2 (1x1) raw MXU matmul; cast to bf16 immediately so the big
    # (TB*N, C2) slab spills/loads at half the f32 traffic.
    s = jnp.dot(h1, w2_ref[...],
                preferred_element_type=jnp.float32).astype(jnp.bfloat16)

    # global max-pool over the N points of each batch element -> (TB, C2).
    # conv2 bias + ReLU are deferred past the pool:
    #   relu(max_n(s_n) + b) == max_n(relu(s_n + b))   (ReLU monotone, b const)
    # so the bias/ReLU elementwise pass runs on a tensor N=16x smaller.
    pooled = jnp.max(s.reshape(tb, n, s.shape[-1]), axis=1)   # (TB, C2) bf16
    p = jnp.maximum(pooled.astype(jnp.float32) + b2_ref[...], 0.0)

    # fc1 + folded bn1 + ReLU -> (TB, F1)
    f1 = jnp.maximum(
        jnp.dot(p.astype(jnp.bfloat16), w3_ref[...],
                preferred_element_type=jnp.float32) + b3_ref[...], 0.0)

    # fc2 + folded bn2 + ReLU -> (TB, F2)
    f2 = jnp.maximum(
        jnp.dot(f1.astype(jnp.bfloat16), w4_ref[...],
                preferred_element_type=jnp.float32) + b4_ref[...], 0.0)

    # final projection to k*k + bias -> (TB, k*k); bf16 operands, f32 acc.
    out_ref[...] = (jnp.dot(f2.astype(jnp.bfloat16), wt_ref[...],
                            preferred_element_type=jnp.float32)
                    + bt_ref[...])


def _choose_tb(B, tb_target=TB_TARGET):
    """Batch tile size: big enough to feed the MXU, but with >=2 grid steps
    when B allows it so the 'parallel' batch axis shards across both
    TensorCores on v7x."""
    tb = min(tb_target, B)
    if B >= 16 and -(-B // tb) < 2:
        half = -(-B // 2)
        tb = max(8, -(-half // 8) * 8)   # ceil(B/2), rounded up to mult. of 8
    return tb


def tnetk_forward(x_bnc, params, tb_target=TB_TARGET):
    """x_bnc: (B, N, k) float32. Returns (B, k, k) transform."""
    B, N, k = x_bnc.shape
    kk = k * k
    (w1, b1, w2, b2, w3, b3, w4, b4, wt, bt) = params

    # Batch tile: TB elements per grid step; pad B up to a multiple of TB.
    TB = _choose_tb(B, tb_target)
    Bp = -(-B // TB) * TB
    if Bp != B:
        x_bnc = jnp.pad(x_bnc, ((0, Bp - B), (0, 0), (0, 0)))
    x2d = x_bnc.reshape(Bp * N, k)          # lane/sublane-friendly 2-D slab

    def const_spec(a):
        # grid-invariant weights/biases: same block every step (stay resident)
        nd = a.ndim
        return pl.BlockSpec(a.shape, lambda b, _nd=nd: (0,) * _nd)

    flops = 2 * Bp * (N * k * w1.shape[1]
                      + N * w2.shape[0] * w2.shape[1]
                      + w3.shape[0] * w3.shape[1]
                      + w4.shape[0] * w4.shape[1]
                      + wt.shape[0] * wt.shape[1])
    bytes_accessed = int(x2d.size * x2d.dtype.itemsize
                         + sum(int(p.size) * p.dtype.itemsize for p in params)
                         + Bp * kk * 4)

    # VMEM budget sized from actual per-step need (double-buffered I/O +
    # resident weights + the big conv1/conv2 activation slabs), clamped so it
    # is always legal on v7x's 64 MiB/TC VMEM.
    param_bytes = sum(int(p.size) * p.dtype.itemsize for p in params)
    act_bytes = (TB * N * (C1 * (4 + 2) + C2 * (4 + 2))   # h1 f32+bf16, s f32+bf16
                 + TB * (C2 + F1 + F2) * 4 * 2)           # pooled / fc intermediates
    vmem_need = (2 * TB * N * k * 4 + 2 * TB * kk * 4
                 + 2 * param_bytes + act_bytes)
    vmem_limit = max(16 << 20, min(int(vmem_need * 1.5) + (4 << 20), 56 << 20))

    out = pl.pallas_call(
        tnetk_kernel,
        out_shape=jax.ShapeDtypeStruct((Bp, kk), jnp.float32),
        grid_spec=pltpu.PrefetchScalarGridSpec(
            num_scalar_prefetch=0,
            grid=(Bp // TB,),
            in_specs=[pl.BlockSpec((TB * N, k), lambda b: (b, 0))]
                     + [const_spec(p) for p in params],
            out_specs=pl.BlockSpec((TB, kk), lambda b: (b, 0)),
        ),
        compiler_params=pltpu.CompilerParams(
            # batch axis is fully independent -> shard across TCs on v7x
            dimension_semantics=("parallel",),
            vmem_limit_bytes=int(vmem_limit)),
        cost_estimate=pl.CostEstimate(flops=int(flops), transcendentals=0,
                                      bytes_accessed=bytes_accessed),
    )(x2d, w1, b1, w2, b2, w3, b3, w4, b4, wt, bt)
    return out[:B].reshape(B, k, k)


# ---------------------------------------------------------------------------
# Deterministic parameter construction (torch-shaped) and BN folding.
# ---------------------------------------------------------------------------
def make_raw_params():
    key = jax.random.PRNGKey(0)
    ks = jax.random.split(key, 20)

    def rnd(k_, shape, scale=0.1):
        return jax.random.normal(k_, shape, dtype=jnp.float32) * scale

    conv1_w = rnd(ks[0], (C1, K));   conv1_b = rnd(ks[1], (C1,))
    g1 = 1.0 + rnd(ks[2], (C1,), 0.05);  be1 = rnd(ks[3], (C1,), 0.05)
    conv2_w = rnd(ks[4], (C2, C1));  conv2_b = rnd(ks[5], (C2,))
    g2 = 1.0 + rnd(ks[6], (C2,), 0.05);  be2 = rnd(ks[7], (C2,), 0.05)
    fc1_w = rnd(ks[8], (F1, C2));    fc1_b = rnd(ks[9], (F1,))
    g3 = 1.0 + rnd(ks[10], (F1,), 0.05); be3 = rnd(ks[11], (F1,), 0.05)
    fc2_w = rnd(ks[12], (F2, F1));   fc2_b = rnd(ks[13], (F2,))
    g4 = 1.0 + rnd(ks[14], (F2,), 0.05); be4 = rnd(ks[15], (F2,), 0.05)
    # module init: weights = zeros(256, k*k), bias = zeros + eye(k).flatten().
    # use small random weights (deterministic) so the matmul path is exercised.
    wt = rnd(ks[16], (F2, K * K), 0.01)
    bt = jnp.eye(K, dtype=jnp.float32).flatten()
    return (conv1_w, conv1_b, g1, be1, conv2_w, conv2_b, g2, be2,
            fc1_w, fc1_b, g3, be3, fc2_w, fc2_b, g4, be4, wt, bt)


def fold_params(raw):
    (c1w, c1b, g1, be1, c2w, c2b, g2, be2,
     f1w, f1b, g3, be3, f2w, f2b, g4, be4, wt, bt) = raw

    def fold(w_oi, b_o, gamma, beta, w_dtype=jnp.bfloat16):
        # eval-mode BN with running_mean=0, running_var=1
        scale = gamma / jnp.sqrt(1.0 + EPS)
        w_eff = (w_oi * scale[:, None]).T.astype(w_dtype)   # (in, out) for x @ W
        b_eff = (b_o * scale + beta).reshape(1, -1)          # f32 bias/shift
        return w_eff, b_eff

    # all matmul weights bf16 (MXU path); biases stay f32.
    w1, b1 = fold(c1w, c1b, g1, be1)
    w2, b2 = fold(c2w, c2b, g2, be2)
    w3, b3 = fold(f1w, f1b, g3, be3)
    w4, b4 = fold(f2w, f2b, g4, be4)
    return (w1, b1, w2, b2, w3, b3, w4, b4,
            wt.astype(jnp.bfloat16), bt.reshape(1, -1))


# ---------------------------------------------------------------------------
# Pure-JAX reference, faithful to the torch ops in NCL layout (f32).
# ---------------------------------------------------------------------------
def torch_ref(x_bcn, raw):
    (c1w, c1b, g1, be1, c2w, c2b, g2, be2,
     f1w, f1b, g3, be3, f2w, f2b, g4, be4, wt, bt) = raw

    def bn(y, g, be):
        scale = g / jnp.sqrt(1.0 + EPS)
        if y.ndim == 3:
            return y * scale[None, :, None] + be[None, :, None]
        return y * scale[None, :] + be[None, :]

    h = jnp.einsum('oc,bcn->bon', c1w, x_bcn) + c1b[None, :, None]
    h = jax.nn.relu(bn(h, g1, be1))
    h = jnp.einsum('oc,bcn->bon', c2w, h) + c2b[None, :, None]
    h = jax.nn.relu(bn(h, g2, be2))
    h = jnp.max(h, axis=2)
    h = jax.nn.relu(bn(h @ f1w.T + f1b, g3, be3))
    h = jax.nn.relu(bn(h @ f2w.T + f2b, g4, be4))
    t = h @ wt + bt
    return t.reshape(x_bcn.shape[0], K, K)


if __name__ == "__main__":
    raw = make_raw_params()
    params = fold_params(raw)

    # Small test: B=2 (single grid step, TB == B)
    key = jax.random.PRNGKey(0)
    x_bcn = jax.random.normal(key, (2, K, N_POINTS), dtype=jnp.float32)  # torch NCL
    x_bnc = jnp.transpose(x_bcn, (0, 2, 1))            # kernel layout (B, N, k)
    out = jax.block_until_ready(tnetk_forward(x_bnc, params))
    ref = jax.block_until_ready(torch_ref(x_bcn, raw))
    # bf16 weights/activations on the MXU matmuls -> loosened tolerance.
    np.testing.assert_allclose(np.asarray(out), np.asarray(ref),
                               rtol=2e-2, atol=2e-2)
    assert out.shape == (2, K, K)

    # Larger test: exercises batch tiling (TB=128), padding and a >1-step grid.
    xb_bcn = jax.random.normal(jax.random.PRNGKey(1), (192, K, N_POINTS),
                               dtype=jnp.float32)
    xb_bnc = jnp.transpose(xb_bcn, (0, 2, 1))
    out_b = jax.block_until_ready(tnetk_forward(xb_bnc, params))
    ref_b = jax.block_until_ready(torch_ref(xb_bcn, raw))
    np.testing.assert_allclose(np.asarray(out_b), np.asarray(ref_b),
                               rtol=2e-2, atol=2e-2)
    assert out_b.shape == (192, K, K)

    print("KERNEL_OK")
</pallas_src>

<mosaic_0001>
module attributes {stable_mosaic.version = 11 : i64} {
  func.func @tnetk_kernel(%arg0: i32, %arg1: memref<32x4xf32, #tpu.memory_space<vmem>>, %arg2: memref<4x256xbf16, #tpu.memory_space<vmem>>, %arg3: memref<1x256xf32, #tpu.memory_space<vmem>>, %arg4: memref<256x1024xbf16, #tpu.memory_space<vmem>>, %arg5: memref<1x1024xf32, #tpu.memory_space<vmem>>, %arg6: memref<1024x512xbf16, #tpu.memory_space<vmem>>, %arg7: memref<1x512xf32, #tpu.memory_space<vmem>>, %arg8: memref<512x256xbf16, #tpu.memory_space<vmem>>, %arg9: memref<1x256xf32, #tpu.memory_space<vmem>>, %arg10: memref<256x16xbf16, #tpu.memory_space<vmem>>, %arg11: memref<1x16xf32, #tpu.memory_space<vmem>>, %arg12: memref<2x16xf32, #tpu.memory_space<vmem>>) attributes {dimension_semantics = [#tpu.dimension_semantics<parallel>], iteration_bounds = array<i64: 1>, scalar_prefetch = 0 : i64, scratch_operands = 0 : i64, tpu.core_type = #tpu.core_type<tc>, window_params = [{transform_indices = @transform_0, window_bounds = array<i64: 32, 4>}, {pipeline_mode = #tpu.pipeline_mode<synchronous>, transform_indices = @transform_1, window_bounds = array<i64: 4, 256>}, {pipeline_mode = #tpu.pipeline_mode<synchronous>, transform_indices = @transform_2, window_bounds = array<i64: 1, 256>}, {pipeline_mode = #tpu.pipeline_mode<synchronous>, transform_indices = @transform_3, window_bounds = array<i64: 256, 1024>}, {pipeline_mode = #tpu.pipeline_mode<synchronous>, transform_indices = @transform_4, window_bounds = array<i64: 1, 1024>}, {pipeline_mode = #tpu.pipeline_mode<synchronous>, transform_indices = @transform_5, window_bounds = array<i64: 1024, 512>}, {pipeline_mode = #tpu.pipeline_mode<synchronous>, transform_indices = @transform_6, window_bounds = array<i64: 1, 512>}, {pipeline_mode = #tpu.pipeline_mode<synchronous>, transform_indices = @transform_7, window_bounds = array<i64: 512, 256>}, {pipeline_mode = #tpu.pipeline_mode<synchronous>, transform_indices = @transform_8, window_bounds = array<i64: 1, 256>}, {pipeline_mode = #tpu.pipeline_mode<synchronous>, transform_indices = @transform_9, window_bounds = array<i64: 256, 16>}, {pipeline_mode = #tpu.pipeline_mode<synchronous>, transform_indices = @transform_10, window_bounds = array<i64: 1, 16>}, {transform_indices = @transform_11, window_bounds = array<i64: 2, 16>}]} {
    %c0 = arith.constant 0 : index
    %c0_0 = arith.constant 0 : index
    %0 = vector.load %arg1[%c0, %c0_0] : memref<32x4xf32, #tpu.memory_space<vmem>>, vector<32x4xf32>
    %1 = arith.truncf %0 : vector<32x4xf32> to vector<32x4xbf16>
    %c0_1 = arith.constant 0 : index
    %c0_2 = arith.constant 0 : index
    %2 = vector.load %arg2[%c0_1, %c0_2] : memref<4x256xbf16, #tpu.memory_space<vmem>>, vector<4x256xbf16>
    %cst = arith.constant dense<0.000000e+00> : vector<32x256xf32>
    %3 = tpu.matmul %1, %2, %cst {dimension_numbers = #tpu.dot_dimension_numbers<[1], [0], [0], [1], [0, 0, 1, 1], [], []>} : vector<32x4xbf16>, vector<4x256xbf16>, vector<32x256xf32> -> vector<32x256xf32>
    %c0_3 = arith.constant 0 : index
    %c0_4 = arith.constant 0 : index
    %4 = vector.load %arg3[%c0_3, %c0_4] : memref<1x256xf32, #tpu.memory_space<vmem>>, vector<1x256xf32>
    %5 = vector.broadcast %4 : vector<1x256xf32> to vector<32x256xf32>
    %6 = arith.addf %3, %5 : vector<32x256xf32>
    %cst_5 = arith.constant 0.000000e+00 : f32
    %7 = vector.broadcast %cst_5 : f32 to vector<32x256xf32>
    %8 = arith.maximumf %6, %7 : vector<32x256xf32>
    %9 = arith.truncf %8 : vector<32x256xf32> to vector<32x256xbf16>
    %c0_6 = arith.constant 0 : index
    %c0_7 = arith.constant 0 : index
    %10 = vector.load %arg4[%c0_6, %c0_7] : memref<256x1024xbf16, #tpu.memory_space<vmem>>, vector<256x1024xbf16>
    %cst_8 = arith.constant dense<0.000000e+00> : vector<32x1024xf32>
    %11 = tpu.matmul %9, %10, %cst_8 {dimension_numbers = #tpu.dot_dimension_numbers<[1], [0], [0], [1], [0, 0, 1, 1], [], []>} : vector<32x256xbf16>, vector<256x1024xbf16>, vector<32x1024xf32> -> vector<32x1024xf32>
    %12 = arith.truncf %11 : vector<32x1024xf32> to vector<32x1024xbf16>
    %13 = vector.shape_cast %12 : vector<32x1024xbf16> to vector<2x16x1024xbf16>
    %cst_9 = arith.constant dense<0xFF80> : vector<2x1024xbf16>
    %14 = vector.multi_reduction <maximumf>, %13, %cst_9 [1] : vector<2x16x1024xbf16> to vector<2x1024xbf16>
    %15 = arith.extf %14 : vector<2x1024xbf16> to vector<2x1024xf32>
    %c0_10 = arith.constant 0 : index
    %c0_11 = arith.constant 0 : index
    %16 = vector.load %arg5[%c0_10, %c0_11] : memref<1x1024xf32, #tpu.memory_space<vmem>>, vector<1x1024xf32>
    %17 = vector.broadcast %16 : vector<1x1024xf32> to vector<2x1024xf32>
    %18 = arith.addf %15, %17 : vector<2x1024xf32>
    %cst_12 = arith.constant 0.000000e+00 : f32
    %19 = vector.broadcast %cst_12 : f32 to vector<2x1024xf32>
    %20 = arith.maximumf %18, %19 : vector<2x1024xf32>
    %21 = arith.truncf %20 : vector<2x1024xf32> to vector<2x1024xbf16>
    %c0_13 = arith.constant 0 : index
    %c0_14 = arith.constant 0 : index
    %22 = vector.load %arg6[%c0_13, %c0_14] : memref<1024x512xbf16, #tpu.memory_space<vmem>>, vector<1024x512xbf16>
    %cst_15 = arith.constant dense<0.000000e+00> : vector<2x512xf32>
    %23 = tpu.matmul %21, %22, %cst_15 {dimension_numbers = #tpu.dot_dimension_numbers<[1], [0], [0], [1], [0, 0, 1, 1], [], []>} : vector<2x1024xbf16>, vector<1024x512xbf16>, vector<2x512xf32> -> vector<2x512xf32>
    %c0_16 = arith.constant 0 : index
    %c0_17 = arith.constant 0 : index
    %24 = vector.load %arg7[%c0_16, %c0_17] : memref<1x512xf32, #tpu.memory_space<vmem>>, vector<1x512xf32>
    %25 = vector.broadcast %24 : vector<1x512xf32> to vector<2x512xf32>
    %26 = arith.addf %23, %25 : vector<2x512xf32>
    %cst_18 = arith.constant 0.000000e+00 : f32
    %27 = vector.broadcast %cst_18 : f32 to vector<2x512xf32>
    %28 = arith.maximumf %26, %27 : vector<2x512xf32>
    %29 = arith.truncf %28 : vector<2x512xf32> to vector<2x512xbf16>
    %c0_19 = arith.constant 0 : index
    %c0_20 = arith.constant 0 : index
    %30 = vector.load %arg8[%c0_19, %c0_20] : memref<512x256xbf16, #tpu.memory_space<vmem>>, vector<512x256xbf16>
    %cst_21 = arith.constant dense<0.000000e+00> : vector<2x256xf32>
    %31 = tpu.matmul %29, %30, %cst_21 {dimension_numbers = #tpu.dot_dimension_numbers<[1], [0], [0], [1], [0, 0, 1, 1], [], []>} : vector<2x512xbf16>, vector<512x256xbf16>, vector<2x256xf32> -> vector<2x256xf32>
    %c0_22 = arith.constant 0 : index
    %c0_23 = arith.constant 0 : index
    %32 = vector.load %arg9[%c0_22, %c0_23] : memref<1x256xf32, #tpu.memory_space<vmem>>, vector<1x256xf32>
    %33 = vector.broadcast %32 : vector<1x256xf32> to vector<2x256xf32>
    %34 = arith.addf %31, %33 : vector<2x256xf32>
    %cst_24 = arith.constant 0.000000e+00 : f32
    %35 = vector.broadcast %cst_24 : f32 to vector<2x256xf32>
    %36 = arith.maximumf %34, %35 : vector<2x256xf32>
    %37 = arith.truncf %36 : vector<2x256xf32> to vector<2x256xbf16>
    %c0_25 = arith.constant 0 : index
    %c0_26 = arith.constant 0 : index
    %38 = vector.load %arg10[%c0_25, %c0_26] : memref<256x16xbf16, #tpu.memory_space<vmem>>, vector<256x16xbf16>
    %cst_27 = arith.constant dense<0.000000e+00> : vector<2x16xf32>
    %39 = tpu.matmul %37, %38, %cst_27 {dimension_numbers = #tpu.dot_dimension_numbers<[1], [0], [0], [1], [0, 0, 1, 1], [], []>} : vector<2x256xbf16>, vector<256x16xbf16>, vector<2x16xf32> -> vector<2x16xf32>
    %c0_28 = arith.constant 0 : index
    %c0_29 = arith.constant 0 : index
    %40 = vector.load %arg11[%c0_28, %c0_29] : memref<1x16xf32, #tpu.memory_space<vmem>>, vector<1x16xf32>
    %41 = vector.broadcast %40 : vector<1x16xf32> to vector<2x16xf32>
    %42 = arith.addf %39, %41 : vector<2x16xf32>
    %c0_30 = arith.constant 0 : index
    %c0_31 = arith.constant 0 : index
    %43 = vector.load %arg12[%c0_30, %c0_31] : memref<2x16xf32, #tpu.memory_space<vmem>>, vector<2x16xf32>
    tpu.vector_store %arg12[%c0_30, %c0_31], %42 {strides = array<i32>} : memref<2x16xf32, #tpu.memory_space<vmem>>, vector<2x16xf32>,
    return
  }
  func.func @transform_0(%arg0: i32) -> (i32, i32) {
    %c0_i32 = arith.constant 0 : i32
    %c0_i32_0 = arith.constant 0 : i32
    return %arg0, %c0_i32 : i32, i32
  }
  func.func @transform_1(%arg0: i32) -> (i32, i32) {
    %c0_i32 = arith.constant 0 : i32
    %c0_i32_0 = arith.constant 0 : i32
    %c0_i32_1 = arith.constant 0 : i32
    return %c0_i32, %c0_i32_0 : i32, i32
  }
  func.func @transform_2(%arg0: i32) -> (i32, i32) {
    %c0_i32 = arith.constant 0 : i32
    %c0_i32_0 = arith.constant 0 : i32
    %c0_i32_1 = arith.constant 0 : i32
    return %c0_i32, %c0_i32_0 : i32, i32
  }
  func.func @transform_3(%arg0: i32) -> (i32, i32) {
    %c0_i32 = arith.constant 0 : i32
    %c0_i32_0 = arith.constant 0 : i32
    %c0_i32_1 = arith.constant 0 : i32
    return %c0_i32, %c0_i32_0 : i32, i32
  }
  func.func @transform_4(%arg0: i32) -> (i32, i32) {
    %c0_i32 = arith.constant 0 : i32
    %c0_i32_0 = arith.constant 0 : i32
    %c0_i32_1 = arith.constant 0 : i32
    return %c0_i32, %c0_i32_0 : i32, i32
  }
  func.func @transform_5(%arg0: i32) -> (i32, i32) {
    %c0_i32 = arith.constant 0 : i32
    %c0_i32_0 = arith.constant 0 : i32
    %c0_i32_1 = arith.constant 0 : i32
    return %c0_i32, %c0_i32_0 : i32, i32
  }
  func.func @transform_6(%arg0: i32) -> (i32, i32) {
    %c0_i32 = arith.constant 0 : i32
    %c0_i32_0 = arith.constant 0 : i32
    %c0_i32_1 = arith.constant 0 : i32
    return %c0_i32, %c0_i32_0 : i32, i32
  }
  func.func @transform_7(%arg0: i32) -> (i32, i32) {
    %c0_i32 = arith.constant 0 : i32
    %c0_i32_0 = arith.constant 0 : i32
    %c0_i32_1 = arith.constant 0 : i32
    return %c0_i32, %c0_i32_0 : i32, i32
  }
  func.func @transform_8(%arg0: i32) -> (i32, i32) {
    %c0_i32 = arith.constant 0 : i32
    %c0_i32_0 = arith.constant 0 : i32
    %c0_i32_1 = arith.constant 0 : i32
    return %c0_i32, %c0_i32_0 : i32, i32
  }
  func.func @transform_9(%arg0: i32) -> (i32, i32) {
    %c0_i32 = arith.constant 0 : i32
    %c0_i32_0 = arith.constant 0 : i32
    %c0_i32_1 = arith.constant 0 : i32
    return %c0_i32, %c0_i32_0 : i32, i32
  }
  func.func @transform_10(%arg0: i32) -> (i32, i32) {
    %c0_i32 = arith.constant 0 : i32
    %c0_i32_0 = arith.constant 0 : i32
    %c0_i32_1 = arith.constant 0 : i32
    return %c0_i32, %c0_i32_0 : i32, i32
  }
  func.func @transform_11(%arg0: i32) -> (i32, i32) {
    %c0_i32 = arith.constant 0 : i32
    %c0_i32_0 = arith.constant 0 : i32
    return %arg0, %c0_i32 : i32, i32
  }
}

</mosaic_0001>

<llo_original>
// kernel: tpu_custom_call.1
$region0: #{tpu_custom_call.1}
  #allocation0 [shape = 'u32[]', space=smem, size = 0x4, offset = 0x4, fixed_abs, tag = 'smem constant byte address 0x4 - core index']
  #allocation1 [shape = 'u32[72,128]{1,0:T(1,128)}', space=vmem, size = 0x9000, scoped, tag = 'internal scratch']
  %s0 = inlined_call_operand.vmem [shape: f32[32,4], index: 0, kind: input, shape index: {}]
  %s1 = inlined_call_operand.vmem [shape: bf16[4,256], index: 1, kind: input, shape index: {}]
  %s2 = inlined_call_operand.vmem [shape: f32[1,256], index: 2, kind: input, shape index: {}]
  %s3 = inlined_call_operand.hbm [shape: bf16[256,1024], index: 3, kind: input, shape index: {}]
  %s4 = inlined_call_operand.vmem [shape: f32[1,1024], index: 4, kind: input, shape index: {}]
  %s5 = inlined_call_operand.hbm [shape: bf16[1024,512], index: 5, kind: input, shape index: {}]
  %s6 = inlined_call_operand.vmem [shape: f32[1,512], index: 6, kind: input, shape index: {}]
  %s7 = inlined_call_operand.hbm [shape: bf16[512,256], index: 7, kind: input, shape index: {}]
  %s8 = inlined_call_operand.vmem [shape: f32[1,256], index: 8, kind: input, shape index: {}]
  %s9 = inlined_call_operand.vmem [shape: bf16[256,16], index: 9, kind: input, shape index: {}]
  %s10 = inlined_call_operand.vmem [shape: f32[1,16], index: 10, kind: input, shape index: {}]
  %s11 = inlined_call_operand.hbm [shape: f32[2,16], index: 11, kind: output, shape index: {}]
  %s12 = sld [smem:[#allocation0]]
  $region66: #{tpu_custom_call.1} parent=0
    _
  %s14 = ssub.s32 1, %s12
  %s15 = scalar_select 0, %s14, %s12
  $region1: #{tpu_custom_call.1} parent=0
    #allocation2 [shape = 'u8[524288]{0}', space=vmem, size = 0x80000, scoped, tag = 'input window, operand 3, single buffered']
    #allocation3 [shape = 's32[1]{0}', space=sflag, size = 0x4, scoped, tag = 'scoped memory for tpu_custom_call.1']
    #allocation4 [shape = 's32[1]{0}', space=sflag, size = 0x4, scoped, tag = 'scoped memory for tpu_custom_call.1']
    #allocation5 [shape = 'u8[1048576]{0}', space=vmem, size = 0x100000, scoped, tag = 'input window, operand 5, single buffered']
    #allocation6 [shape = 's32[1]{0}', space=sflag, size = 0x4, scoped, tag = 'scoped memory for tpu_custom_call.1']
    #allocation7 [shape = 'u8[262144]{0}', space=vmem, size = 0x40000, scoped, tag = 'input window, operand 7, single buffered']
    #allocation8 [shape = 'u8[1024]{0}', space=vmem, size = 0x400, scoped, tag = 'output window, operand 0, single buffered']
    %16 = vsyncpa [#allocation3], 0
    %17 = vsyncpa [#allocation6], 0
    %18 = vsyncpa [#allocation4], 0
    // Predicated region
    $region2: #{tpu_custom_call.1} parent=1 // pred_check
      _
    $region3: #{tpu_custom_call.1} parent=1 // pred_check_branch
      %20 = sbr.rel (0) target = $region5
    $region4: #{tpu_custom_call.1} parent=1 // pred_region
      _
    $region5: #{tpu_custom_call.1} parent=1 // pred_fallthru
      _
    // Predicated region
    $region6: #{tpu_custom_call.1} parent=1 // pred_check
      _
    $region7: #{tpu_custom_call.1} parent=1 // pred_check_branch
      %22 = sbr.rel (0) target = $region9
    $region8: #{tpu_custom_call.1} parent=1 // pred_region
      _
    $region9: #{tpu_custom_call.1} parent=1 // pred_fallthru
      _
    // Predicated region
    $region10: #{tpu_custom_call.1} parent=1 // pred_check
      _
    $region11: #{tpu_custom_call.1} parent=1 // pred_check_branch
      %24 = sbr.rel (0) target = $region13
    $region12: #{tpu_custom_call.1} parent=1 // pred_region
      _
    $region13: #{tpu_custom_call.1} parent=1 // pred_fallthru
      _
    // Predicated region
    $region14: #{tpu_custom_call.1} parent=1 // pred_check
      _
    $region15: #{tpu_custom_call.1} parent=1 // pred_check_branch
      %26 = sbr.rel (0) target = $region17
    $region16: #{tpu_custom_call.1} parent=1 // pred_region
      %28 = vsyncadd [#allocation3], 0
      %s29 = sshll.u32 %s3, 4
      %s30 = int_to_ptr.hbm [resolvable:$true] %s29
      %s31 = sshll.u32 [#allocation2], 4
      %s32 = int_to_ptr.vmem [resolvable:$true] %s31
      %37 = dma.hbm_to_vmem [thread:$0]  %s30, 16384, %s32, [#allocation3], 512, 512, 32
    $region17: #{tpu_custom_call.1} parent=1 // pred_fallthru
      _
    // Predicated region
    $region18: #{tpu_custom_call.1} parent=1 // pred_check
      _
    $region19: #{tpu_custom_call.1} parent=1 // pred_check_branch
      %39 = sbr.rel (0) target = $region21
    $region20: #{tpu_custom_call.1} parent=1 // pred_region
      _
    $region21: #{tpu_custom_call.1} parent=1 // pred_fallthru
      _
    // Predicated region
    $region22: #{tpu_custom_call.1} parent=1 // pred_check
      _
    $region23: #{tpu_custom_call.1} parent=1 // pred_check_branch
      %41 = sbr.rel (0) target = $region25
    $region24: #{tpu_custom_call.1} parent=1 // pred_region
      %43 = vsyncadd [#allocation6], 0
      %s44 = sshll.u32 %s5, 4
      %s45 = int_to_ptr.hbm [resolvable:$true] %s44
      %s46 = sshll.u32 [#allocation5], 4
      %s47 = int_to_ptr.vmem [resolvable:$true] %s46
      %52 = dma.hbm_to_vmem [thread:$0]  %s45, 32768, %s47, [#allocation6], 256, 256, 16
    $region25: #{tpu_custom_call.1} parent=1 // pred_fallthru
      _
    // Predicated region
    $region26: #{tpu_custom_call.1} parent=1 // pred_check
      _
    $region27: #{tpu_custom_call.1} parent=1 // pred_check_branch
      %54 = sbr.rel (0) target = $region29
    $region28: #{tpu_custom_call.1} parent=1 // pred_region
      _
    $region29: #{tpu_custom_call.1} parent=1 // pred_fallthru
      _
    // Predicated region
    $region30: #{tpu_custom_call.1} parent=1 // pred_check
      _
    $region31: #{tpu_custom_call.1} parent=1 // pred_check_branch
      %56 = sbr.rel (0) target = $region33
    $region32: #{tpu_custom_call.1} parent=1 // pred_region
      %58 = vsyncadd [#allocation6], 0
      %s59 = sshll.u32 %s7, 4
      %s60 = int_to_ptr.hbm [resolvable:$true] %s59
      %s61 = sshll.u32 [#allocation7], 4
      %s62 = int_to_ptr.vmem [resolvable:$true] %s61
      %67 = dma.hbm_to_vmem [thread:$0]  %s60, 8192, %s62, [#allocation6], 128, 128, 8
    $region33: #{tpu_custom_call.1} parent=1 // pred_fallthru
      _
    // Predicated region
    $region34: #{tpu_custom_call.1} parent=1 // pred_check
      _
    $region35: #{tpu_custom_call.1} parent=1 // pred_check_branch
      %69 = sbr.rel (0) target = $region37
    $region36: #{tpu_custom_call.1} parent=1 // pred_region
      _
    $region37: #{tpu_custom_call.1} parent=1 // pred_fallthru
      _
    // Predicated region
    $region38: #{tpu_custom_call.1} parent=1 // pred_check
      _
    $region39: #{tpu_custom_call.1} parent=1 // pred_check_branch
      %71 = sbr.rel (0) target = $region41
    $region40: #{tpu_custom_call.1} parent=1 // pred_region
      _
    $region41: #{tpu_custom_call.1} parent=1 // pred_fallthru
      _
    // Predicated region
    $region42: #{tpu_custom_call.1} parent=1 // pred_check
      _
    $region43: #{tpu_custom_call.1} parent=1 // pred_check_branch
      %73 = sbr.rel (0) target = $region45
    $region44: #{tpu_custom_call.1} parent=1 // pred_region
      _
    $region45: #{tpu_custom_call.1} parent=1 // pred_fallthru
      _
    // Predicated region
    $region46: #{tpu_custom_call.1} parent=1 // pred_check
      _
    $region47: #{tpu_custom_call.1} parent=1 // pred_check_branch
      %75 = sbr.rel (0) target = $region49
    $region48: #{tpu_custom_call.1} parent=1 // pred_region
      %77 = dma.done [#allocation3], 16384
    $region49: #{tpu_custom_call.1} parent=1 // pred_fallthru
      _
    // Predicated region
    $region50: #{tpu_custom_call.1} parent=1 // pred_check
      _
    $region51: #{tpu_custom_call.1} parent=1 // pred_check_branch
      %79 = sbr.rel (0) target = $region53
    $region52: #{tpu_custom_call.1} parent=1 // pred_region
      %81 = dma.done [#allocation6], 32768
    $region53: #{tpu_custom_call.1} parent=1 // pred_fallthru
      _
    // Predicated region
    $region54: #{tpu_custom_call.1} parent=1 // pred_check
      _
    $region55: #{tpu_custom_call.1} parent=1 // pred_check_branch
      %83 = sbr.rel (0) target = $region57
    $region56: #{tpu_custom_call.1} parent=1 // pred_region
      %85 = dma.done [#allocation6], 8192
    $region57: #{tpu_custom_call.1} parent=1 // pred_fallthru
      _
    %v87 = vld [vmem:[%s0] sm:$0xff]
    %v88 = vld [vmem:[%s0 + $0x8] sm:$0xff]
    %v89 = vld [vmem:[%s0 + $0x10] sm:$0xff]
    %v90 = vld [vmem:[%s0 + $0x18] sm:$0xff]
    %v91 = vpack.c.bf16 %v88, %v87
    %v92 = vpack.c.bf16 %v90, %v89
    %v93 = vld [vmem:[%s1] sm:$0xf]
    %v94 = vld [vmem:[%s2] sm:$0x3]
    %v96 = vperm.slane %v94, 0
    %v97 = vperm.slane %v94, 1
    %101 = vst [vmem:[#allocation1] ss:$4 sm:$0xff] %v93
    %v102 = vld.sshfl [vmem:[#allocation1] sm:$0xff pattern:$0x73625140]
    %v103 = vld.sshfl [vmem:[#allocation1 + $0x8] sm:$0xff pattern:$0x73625140]
    %vm104 = vcmask 31744
    %v106 = vsel %vm104, %v91, 0
    %v109 = vsel %vm104, %v92, 0
    %vm111 = vcmask 1041408
    %v112 = vsel %vm111, %v102, 0
    %v114 = vsel %vm111, %v103, 0
    %116 = vmatpush.bf16.msra.mxu0 0
    %117 = vmatpush.bf16.msra.mxu0 0
    %118 = vmatpush.bf16.msra.mxu0 0
    %119 = vmatpush.bf16.msra.mxu0 0
    %120 = vmatpush.bf16.msra.mxu0 0
    %121 = vmatpush.bf16.msra.mxu0 0
    %122 = vmatpush.bf16.msra.mxu0 0
    %123 = vmatpush.bf16.msra.mxu0 %v112
    %124 = vmatmul.bf16.gmra.mxu0 %v106
    %v125 = vpop.f32.mrf.mxu0
    %v126 = vadd.f32 %v96, %v125
    %v127 = vpop.f32.mrf.mxu0
    %v128 = vadd.f32 %v96, %v127
    %129 = vmatmul.bf16.gmra.mxu0 %v109
    %v130 = vpop.f32.mrf.mxu0
    %v131 = vadd.f32 %v96, %v130
    %v132 = vpop.f32.mrf.mxu0
    %v133 = vadd.f32 %v96, %v132
    %134 = vdwg.mxu0
    %135 = vmatpush.bf16.msra.mxu0 0
    %136 = vmatpush.bf16.msra.mxu0 0
    %137 = vmatpush.bf16.msra.mxu0 0
    %138 = vmatpush.bf16.msra.mxu0 0
    %139 = vmatpush.bf16.msra.mxu0 0
    %140 = vmatpush.bf16.msra.mxu0 0
    %141 = vmatpush.bf16.msra.mxu0 0
    %142 = vmatpush.bf16.msra.mxu0 %v114
    %143 = vmatmul.bf16.gmra.mxu0 %v106
    %v144 = vpop.f32.mrf.mxu0
    %v145 = vadd.f32 %v97, %v144
    %v146 = vpop.f32.mrf.mxu0
    %v147 = vadd.f32 %v97, %v146
    %148 = vmatmul.bf16.gmra.mxu0 %v109
    %v149 = vpop.f32.mrf.mxu0
    %v150 = vadd.f32 %v97, %v149
    %v151 = vpop.f32.mrf.mxu0
    %v152 = vadd.f32 %v97, %v151
    %153 = vdwg.mxu0
    %v154 = vmax.f32 %v126, 0.0
    %v155 = vmax.f32 %v145, 0.0
    %v156 = vmax.f32 %v128, 0.0
    %v157 = vmax.f32 %v147, 0.0
    %v158 = vmax.f32 %v131, 0.0
    %v159 = vmax.f32 %v150, 0.0
    %v160 = vmax.f32 %v133, 0.0
    %v161 = vmax.f32 %v152, 0.0
    %v162 = vpack.c.bf16 %v156, %v154
    %v163 = vpack.c.bf16 %v157, %v155
    %v164 = vpack.c.bf16 %v160, %v158
    %v165 = vpack.c.bf16 %v161, %v159
    %v166 = vld [vmem:[#allocation2] sm:$0xff]
    %v167 = vld [vmem:[#allocation2 + $0x8] sm:$0xff]
    %v168 = vld [vmem:[#allocation2 + $0x10] sm:$0xff]
    %v169 = vld [vmem:[#allocation2 + $0x18] sm:$0xff]
    %v170 = vld [vmem:[#allocation2 + $0x20] sm:$0xff]
    %v171 = vld [vmem:[#allocation2 + $0x28] sm:$0xff]
    %v172 = vld [vmem:[#allocation2 + $0x30] sm:$0xff]
    %v173 = vld [vmem:[#allocation2 + $0x38] sm:$0xff]
    %v174 = vld [vmem:[#allocation2 + $0x40] sm:$0xff]
    %v175 = vld [vmem:[#allocation2 + $0x48] sm:$0xff]
    %v176 = vld [vmem:[#allocation2 + $0x50] sm:$0xff]
    %v177 = vld [vmem:[#allocation2 + $0x58] sm:$0xff]
    %v178 = vld [vmem:[#allocation2 + $0x60] sm:$0xff]
    %v179 = vld [vmem:[#allocation2 + $0x68] sm:$0xff]
    %v180 = vld [vmem:[#allocation2 + $0x70] sm:$0xff]
    %v181 = vld [vmem:[#allocation2 + $0x78] sm:$0xff]
    %v182 = vld [vmem:[#allocation2 + $0x80] sm:$0xff]
    %v183 = vld [vmem:[#allocation2 + $0x88] sm:$0xff]
    %v184 = vld [vmem:[#allocation2 + $0x90] sm:$0xff]
    %v185 = vld [vmem:[#allocation2 + $0x98] sm:$0xff]
    %v186 = vld [vmem:[#allocation2 + $0xa0] sm:$0xff]
    %v187 = vld [vmem:[#allocation2 + $0xa8] sm:$0xff]
    %v188 = vld [vmem:[#allocation2 + $0xb0] sm:$0xff]
    %v189 = vld [vmem:[#allocation2 + $0xb8] sm:$0xff]
    %v190 = vld [vmem:[#allocation2 + $0xc0] sm:$0xff]
    %v191 = vld [vmem:[#allocation2 + $0xc8] sm:$0xff]
    %v192 = vld [vmem:[#allocation2 + $0xd0] sm:$0xff]
    %v193 = vld [vmem:[#allocation2 + $0xd8] sm:$0xff]
    %v194 = vld [vmem:[#allocation2 + $0xe0] sm:$0xff]
    %v195 = vld [vmem:[#allocation2 + $0xe8] sm:$0xff]
    %v196 = vld [vmem:[#allocation2 + $0xf0] sm:$0xff]
    %v197 = vld [vmem:[#allocation2 + $0xf8] sm:$0xff]
    %v198 = vld [vmem:[#allocation2 + $0x100] sm:$0xff]
    %v199 = vld [vmem:[#allocation2 + $0x108] sm:$0xff]
    %v200 = vld [vmem:[#allocation2 + $0x110] sm:$0xff]
    %v201 = vld [vmem:[#allocation2 + $0x118] sm:$0xff]
    %v202 = vld [vmem:[#allocation2 + $0x120] sm:$0xff]
    %v203 = vld [vmem:[#allocation2 + $0x128] sm:$0xff]
    %v204 = vld [vmem:[#allocation2 + $0x130] sm:$0xff]
    %v205 = vld [vmem:[#allocation2 + $0x138] sm:$0xff]
    %v206 = vld [vmem:[#allocation2 + $0x140] sm:$0xff]
    %v207 = vld [vmem:[#allocation2 + $0x148] sm:$0xff]
    %v208 = vld [vmem:[#allocation2 + $0x150] sm:$0xff]
    %v209 = vld [vmem:[#allocation2 + $0x158] sm:$0xff]
    %v210 = vld [vmem:[#allocation2 + $0x160] sm:$0xff]
    %v211 = vld [vmem:[#allocation2 + $0x168] sm:$0xff]
    %v212 = vld [vmem:[#allocation2 + $0x170] sm:$0xff]
    %v213 = vld [vmem:[#allocation2 + $0x178] sm:$0xff]
    %v214 = vld [vmem:[#allocation2 + $0x180] sm:$0xff]
    %v215 = vld [vmem:[#allocation2 + $0x188] sm:$0xff]
    %v216 = vld [vmem:[#allocation2 + $0x190] sm:$0xff]
    %v217 = vld [vmem:[#allocation2 + $0x198] sm:$0xff]
    %v218 = vld [vmem:[#allocation2 + $0x1a0] sm:$0xff]
    %v219 = vld [vmem:[#allocation2 + $0x1a8] sm:$0xff]
    %v220 = vld [vmem:[#allocation2 + $0x1b0] sm:$0xff]
    %v221 = vld [vmem:[#allocation2 + $0x1b8] sm:$0xff]
    %v222 = vld [vmem:[#allocation2 + $0x1c0] sm:$0xff]
    %v223 = vld [vmem:[#allocation2 + $0x1c8] sm:$0xff]
    %v224 = vld [vmem:[#allocation2 + $0x1d0] sm:$0xff]
    %v225 = vld [vmem:[#allocation2 + $0x1d8] sm:$0xff]
    %v226 = vld [vmem:[#allocation2 + $0x1e0] sm:$0xff]
    %v227 = vld [vmem:[#allocation2 + $0x1e8] sm:$0xff]
    %v228 = vld [vmem:[#allocation2 + $0x1f0] sm:$0xff]
    %v229 = vld [vmem:[#allocation2 + $0x1f8] sm:$0xff]
    %v230 = vld [vmem:[#allocation2 + $0x200] sm:$0xff]
    %v231 = vld [vmem:[#allocation2 + $0x208] sm:$0xff]
    %v232 = vld [vmem:[#allocation2 + $0x210] sm:$0xff]
    %v233 = vld [vmem:[#allocation2 + $0x218] sm:$0xff]
    %v234 = vld [vmem:[#allocation2 + $0x220] sm:$0xff]
    %v235 = vld [vmem:[#allocation2 + $0x228] sm:$0xff]
    %v236 = vld [vmem:[#allocation2 + $0x230] sm:$0xff]
    %v237 = vld [vmem:[#allocation2 + $0x238] sm:$0xff]
    %v238 = vld [vmem:[#allocation2 + $0x240] sm:$0xff]
    %v239 = vld [vmem:[#allocation2 + $0x248] sm:$0xff]
    %v240 = vld [vmem:[#allocation2 + $0x250] sm:$0xff]
    %v241 = vld [vmem:[#allocation2 + $0x258] sm:$0xff]
    %v242 = vld [vmem:[#allocation2 + $0x260] sm:$0xff]
    %v243 = vld [vmem:[#allocation2 + $0x268] sm:$0xff]
    %v244 = vld [vmem:[#allocation2 + $0x270] sm:$0xff]
    %v245 = vld [vmem:[#allocation2 + $0x278] sm:$0xff]
    %v246 = vld [vmem:[#allocation2 + $0x280] sm:$0xff]
    %v247 = vld [vmem:[#allocation2 + $0x288] sm:$0xff]
    %v248 = vld [vmem:[#allocation2 + $0x290] sm:$0xff]
    %v249 = vld [vmem:[#allocation2 + $0x298] sm:$0xff]
    %v250 = vld [vmem:[#allocation2 + $0x2a0] sm:$0xff]
    %v251 = vld [vmem:[#allocation2 + $0x2a8] sm:$0xff]
    %v252 = vld [vmem:[#allocation2 + $0x2b0] sm:$0xff]
    %v253 = vld [vmem:[#allocation2 + $0x2b8] sm:$0xff]
    %v254 = vld [vmem:[#allocation2 + $0x2c0] sm:$0xff]
    %v255 = vld [vmem:[#allocation2 + $0x2c8] sm:$0xff]
    %v256 = vld [vmem:[#allocation2 + $0x2d0] sm:$0xff]
    %v257 = vld [vmem:[#allocation2 + $0x2d8] sm:$0xff]
    %v258 = vld [vmem:[#allocation2 + $0x2e0] sm:$0xff]
    %v259 = vld [vmem:[#allocation2 + $0x2e8] sm:$0xff]
    %v260 = vld [vmem:[#allocation2 + $0x2f0] sm:$0xff]
    %v261 = vld [vmem:[#allocation2 + $0x2f8] sm:$0xff]
    %v262 = vld [vmem:[#allocation2 + $0x300] sm:$0xff]
    %v263 = vld [vmem:[#allocation2 + $0x308] sm:$0xff]
    %v264 = vld [vmem:[#allocation2 + $0x310] sm:$0xff]
    %v265 = vld [vmem:[#allocation2 + $0x318] sm:$0xff]
    %v266 = vld [vmem:[#allocation2 + $0x320] sm:$0xff]
    %v267 = vld [vmem:[#allocation2 + $0x328] sm:$0xff]
    %v268 = vld [vmem:[#allocation2 + $0x330] sm:$0xff]
    %v269 = vld [vmem:[#allocation2 + $0x338] sm:$0xff]
    %v270 = vld [vmem:[#allocation2 + $0x340] sm:$0xff]
    %v271 = vld [vmem:[#allocation2 + $0x348] sm:$0xff]
    %v272 = vld [vmem:[#allocation2 + $0x350] sm:$0xff]
    %v273 = vld [vmem:[#allocation2 + $0x358] sm:$0xff]
    %v274 = vld [vmem:[#allocation2 + $0x360] sm:$0xff]
    %v275 = vld [vmem:[#allocation2 + $0x368] sm:$0xff]
    %v276 = vld [vmem:[#allocation2 + $0x370] sm:$0xff]
    %v277 = vld [vmem:[#allocation2 + $0x378] sm:$0xff]
    %v278 = vld [vmem:[#allocation2 + $0x380] sm:$0xff]
    %v279 = vld [vmem:[#allocation2 + $0x388] sm:$0xff]
    %v280 = vld [vmem:[#allocation2 + $0x390] sm:$0xff]
    %v281 = vld [vmem:[#allocation2 + $0x398] sm:$0xff]
    %v282 = vld [vmem:[#allocation2 + $0x3a0] sm:$0xff]
    %v283 = vld [vmem:[#allocation2 + $0x3a8] sm:$0xff]
    %v284 = vld [vmem:[#allocation2 + $0x3b0] sm:$0xff]
    %v285 = vld [vmem:[#allocation2 + $0x3b8] sm:$0xff]
    %v286 = vld [vmem:[#allocation2 + $0x3c0] sm:$0xff]
    %v287 = vld [vmem:[#allocation2 + $0x3c8] sm:$0xff]
    %v288 = vld [vmem:[#allocation2 + $0x3d0] sm:$0xff]
    %v289 = vld [vmem:[#allocation2 + $0x3d8] sm:$0xff]
    %v290 = vld [vmem:[#allocation2 + $0x3e0] sm:$0xff]
    %v291 = vld [vmem:[#allocation2 + $0x3e8] sm:$0xff]
    %v292 = vld [vmem:[#allocation2 + $0x3f0] sm:$0xff]
    %v293 = vld [vmem:[#allocation2 + $0x3f8] sm:$0xff]
    %v422 = vunpack.c.l.b16 %v166
    %v423 = vunpack.c.h.b16 %v166
    %v424 = vunpack.c.l.b16 %v167
    %v425 = vunpack.c.h.b16 %v167
    %v426 = vunpack.c.l.b16 %v168
    %v427 = vunpack.c.h.b16 %v168
    %v428 = vunpack.c.l.b16 %v169
    %v429 = vunpack.c.h.b16 %v169
    %v430 = vunpack.c.l.b16 %v170
    %v431 = vunpack.c.h.b16 %v170
    %v432 = vunpack.c.l.b16 %v171
    %v433 = vunpack.c.h.b16 %v171
    %v434 = vunpack.c.l.b16 %v172
    %v435 = vunpack.c.h.b16 %v172
    %v436 = vunpack.c.l.b16 %v173
    %v437 = vunpack.c.h.b16 %v173
    %v438 = vunpack.c.l.b16 %v174
    %v439 = vunpack.c.h.b16 %v174
    %v440 = vunpack.c.l.b16 %v175
    %v441 = vunpack.c.h.b16 %v175
    %v442 = vunpack.c.l.b16 %v176
    %v443 = vunpack.c.h.b16 %v176
    %v444 = vunpack.c.l.b16 %v177
    %v445 = vunpack.c.h.b16 %v177
    %v446 = vunpack.c.l.b16 %v178
    %v447 = vunpack.c.h.b16 %v178
    %v448 = vunpack.c.l.b16 %v179
    %v449 = vunpack.c.h.b16 %v179
    %v450 = vunpack.c.l.b16 %v180
    %v451 = vunpack.c.h.b16 %v180
    %v452 = vunpack.c.l.b16 %v181
    %v453 = vunpack.c.h.b16 %v181
    %v454 = vunpack.c.l.b16 %v182
    %v455 = vunpack.c.h.b16 %v182
    %v456 = vunpack.c.l.b16 %v183
    %v457 = vunpack.c.h.b16 %v183
    %v458 = vunpack.c.l.b16 %v184
    %v459 = vunpack.c.h.b16 %v184
    %v460 = vunpack.c.l.b16 %v185
    %v461 = vunpack.c.h.b16 %v185
    %v462 = vunpack.c.l.b16 %v186
    %v463 = vunpack.c.h.b16 %v186
    %v464 = vunpack.c.l.b16 %v187
    %v465 = vunpack.c.h.b16 %v187
    %v466 = vunpack.c.l.b16 %v188
    %v467 = vunpack.c.h.b16 %v188
    %v468 = vunpack.c.l.b16 %v189
    %v469 = vunpack.c.h.b16 %v189
    %v470 = vunpack.c.l.b16 %v190
    %v471 = vunpack.c.h.b16 %v190
    %v472 = vunpack.c.l.b16 %v191
    %v473 = vunpack.c.h.b16 %v191
    %v474 = vunpack.c.l.b16 %v192
    %v475 = vunpack.c.h.b16 %v192
    %v476 = vunpack.c.l.b16 %v193
    %v477 = vunpack.c.h.b16 %v193
    %v478 = vunpack.c.l.b16 %v194
    %v479 = vunpack.c.h.b16 %v194
    %v480 = vunpack.c.l.b16 %v195
    %v481 = vunpack.c.h.b16 %v195
    %v482 = vunpack.c.l.b16 %v196
    %v483 = vunpack.c.h.b16 %v196
    %v484 = vunpack.c.l.b16 %v197
    %v485 = vunpack.c.h.b16 %v197
    %v486 = vunpack.c.l.b16 %v198
    %v487 = vunpack.c.h.b16 %v198
    %v488 = vunpack.c.l.b16 %v199
    %v489 = vunpack.c.h.b16 %v199
    %v490 = vunpack.c.l.b16 %v200
    %v491 = vunpack.c.h.b16 %v200
    %v492 = vunpack.c.l.b16 %v201
    %v493 = vunpack.c.h.b16 %v201
    %v494 = vunpack.c.l.b16 %v202
    %v495 = vunpack.c.h.b16 %v202
    %v496 = vunpack.c.l.b16 %v203
    %v497 = vunpack.c.h.b16 %v203
    %v498 = vunpack.c.l.b16 %v204
    %v499 = vunpack.c.h.b16 %v204
    %v500 = vunpack.c.l.b16 %v205
    %v501 = vunpack.c.h.b16 %v205
    %v502 = vunpack.c.l.b16 %v206
    %v503 = vunpack.c.h.b16 %v206
    %v504 = vunpack.c.l.b16 %v207
    %v505 = vunpack.c.h.b16 %v207
    %v506 = vunpack.c.l.b16 %v208
    %v507 = vunpack.c.h.b16 %v208
    %v508 = vunpack.c.l.b16 %v209
    %v509 = vunpack.c.h.b16 %v209
    %v510 = vunpack.c.l.b16 %v210
    %v511 = vunpack.c.h.b16 %v210
    %v512 = vunpack.c.l.b16 %v211
    %v513 = vunpack.c.h.b16 %v211
    %v514 = vunpack.c.l.b16 %v212
    %v515 = vunpack.c.h.b16 %v212
    %v516 = vunpack.c.l.b16 %v213
    %v517 = vunpack.c.h.b16 %v213
    %v518 = vunpack.c.l.b16 %v214
    %v519 = vunpack.c.h.b16 %v214
    %v520 = vunpack.c.l.b16 %v215
    %v521 = vunpack.c.h.b16 %v215
    %v522 = vunpack.c.l.b16 %v216
    %v523 = vunpack.c.h.b16 %v216
    %v524 = vunpack.c.l.b16 %v217
    %v525 = vunpack.c.h.b16 %v217
    %v526 = vunpack.c.l.b16 %v218
    %v527 = vunpack.c.h.b16 %v218
    %v528 = vunpack.c.l.b16 %v219
    %v529 = vunpack.c.h.b16 %v219
    %v530 = vunpack.c.l.b16 %v220
    %v531 = vunpack.c.h.b16 %v220
    %v532 = vunpack.c.l.b16 %v221
    %v533 = vunpack.c.h.b16 %v221
    %v534 = vunpack.c.l.b16 %v222
    %v535 = vunpack.c.h.b16 %v222
    %v536 = vunpack.c.l.b16 %v223
    %v537 = vunpack.c.h.b16 %v223
    %v538 = vunpack.c.l.b16 %v224
    %v539 = vunpack.c.h.b16 %v224
    %v540 = vunpack.c.l.b16 %v225
    %v541 = vunpack.c.h.b16 %v225
    %v542 = vunpack.c.l.b16 %v226
    %v543 = vunpack.c.h.b16 %v226
    %v544 = vunpack.c.l.b16 %v227
    %v545 = vunpack.c.h.b16 %v227
    %v546 = vunpack.c.l.b16 %v228
    %v547 = vunpack.c.h.b16 %v228
    %v548 = vunpack.c.l.b16 %v229
    %v549 = vunpack.c.h.b16 %v229
    %v550 = vunpack.c.l.b16 %v230
    %v551 = vunpack.c.h.b16 %v230
    %v552 = vunpack.c.l.b16 %v231
    %v553 = vunpack.c.h.b16 %v231
    %v554 = vunpack.c.l.b16 %v232
    %v555 = vunpack.c.h.b16 %v232
    %v556 = vunpack.c.l.b16 %v233
    %v557 = vunpack.c.h.b16 %v233
    %v558 = vunpack.c.l.b16 %v234
    %v559 = vunpack.c.h.b16 %v234
    %v560 = vunpack.c.l.b16 %v235
    %v561 = vunpack.c.h.b16 %v235
    %v562 = vunpack.c.l.b16 %v236
    %v563 = vunpack.c.h.b16 %v236
    %v564 = vunpack.c.l.b16 %v237
    %v565 = vunpack.c.h.b16 %v237
    %v566 = vunpack.c.l.b16 %v238
    %v567 = vunpack.c.h.b16 %v238
    %v568 = vunpack.c.l.b16 %v239
    %v569 = vunpack.c.h.b16 %v239
    %v570 = vunpack.c.l.b16 %v240
    %v571 = vunpack.c.h.b16 %v240
    %v572 = vunpack.c.l.b16 %v241
    %v573 = vunpack.c.h.b16 %v241
    %v574 = vunpack.c.l.b16 %v242
    %v575 = vunpack.c.h.b16 %v242
    %v576 = vunpack.c.l.b16 %v243
    %v577 = vunpack.c.h.b16 %v243
    %v578 = vunpack.c.l.b16 %v244
    %v579 = vunpack.c.h.b16 %v244
    %v580 = vunpack.c.l.b16 %v245
    %v581 = vunpack.c.h.b16 %v245
    %v582 = vunpack.c.l.b16 %v246
    %v583 = vunpack.c.h.b16 %v246
    %v584 = vunpack.c.l.b16 %v247
    %v585 = vunpack.c.h.b16 %v247
    %v586 = vunpack.c.l.b16 %v248
    %v587 = vunpack.c.h.b16 %v248
    %v588 = vunpack.c.l.b16 %v249
    %v589 = vunpack.c.h.b16 %v249
    %v590 = vunpack.c.l.b16 %v250
    %v591 = vunpack.c.h.b16 %v250
    %v592 = vunpack.c.l.b16 %v251
    %v593 = vunpack.c.h.b16 %v251
    %v594 = vunpack.c.l.b16 %v252
    %v595 = vunpack.c.h.b16 %v252
    %v596 = vunpack.c.l.b16 %v253
    %v597 = vunpack.c.h.b16 %v253
    %v598 = vunpack.c.l.b16 %v254
    %v599 = vunpack.c.h.b16 %v254
    %v600 = vunpack.c.l.b16 %v255
    %v601 = vunpack.c.h.b16 %v255
    %v602 = vunpack.c.l.b16 %v256
    %v603 = vunpack.c.h.b16 %v256
    %v604 = vunpack.c.l.b16 %v257
    %v605 = vunpack.c.h.b16 %v257
    %v606 = vunpack.c.l.b16 %v258
    %v607 = vunpack.c.h.b16 %v258
    %v608 = vunpack.c.l.b16 %v259
    %v609 = vunpack.c.h.b16 %v259
    %v610 = vunpack.c.l.b16 %v260
    %v611 = vunpack.c.h.b16 %v260
    %v612 = vunpack.c.l.b16 %v261
    %v613 = vunpack.c.h.b16 %v261
    %v614 = vunpack.c.l.b16 %v262
    %v615 = vunpack.c.h.b16 %v262
    %v616 = vunpack.c.l.b16 %v263
    %v617 = vunpack.c.h.b16 %v263
    %v618 = vunpack.c.l.b16 %v264
    %v619 = vunpack.c.h.b16 %v264
    %v620 = vunpack.c.l.b16 %v265
    %v621 = vunpack.c.h.b16 %v265
    %v622 = vunpack.c.l.b16 %v266
    %v623 = vunpack.c.h.b16 %v266
    %v624 = vunpack.c.l.b16 %v267
    %v625 = vunpack.c.h.b16 %v267
    %v626 = vunpack.c.l.b16 %v268
    %v627 = vunpack.c.h.b16 %v268
    %v628 = vunpack.c.l.b16 %v269
    %v629 = vunpack.c.h.b16 %v269
    %v630 = vunpack.c.l.b16 %v270
    %v631 = vunpack.c.h.b16 %v270
    %v632 = vunpack.c.l.b16 %v271
    %v633 = vunpack.c.h.b16 %v271
    %v634 = vunpack.c.l.b16 %v272
    %v635 = vunpack.c.h.b16 %v272
    %v636 = vunpack.c.l.b16 %v273
    %v637 = vunpack.c.h.b16 %v273
    %v638 = vunpack.c.l.b16 %v274
    %v639 = vunpack.c.h.b16 %v274
    %v640 = vunpack.c.l.b16 %v275
    %v641 = vunpack.c.h.b16 %v275
    %v642 = vunpack.c.l.b16 %v276
    %v643 = vunpack.c.h.b16 %v276
    %v644 = vunpack.c.l.b16 %v277
    %v645 = vunpack.c.h.b16 %v277
    %v646 = vunpack.c.l.b16 %v278
    %v647 = vunpack.c.h.b16 %v278
    %v648 = vunpack.c.l.b16 %v279
    %v649 = vunpack.c.h.b16 %v279
    %v650 = vunpack.c.l.b16 %v280
    %v651 = vunpack.c.h.b16 %v280
    %v652 = vunpack.c.l.b16 %v281
    %v653 = vunpack.c.h.b16 %v281
    %v654 = vunpack.c.l.b16 %v282
    %v655 = vunpack.c.h.b16 %v282
    %v656 = vunpack.c.l.b16 %v283
    %v657 = vunpack.c.h.b16 %v283
    %v658 = vunpack.c.l.b16 %v284
    %v659 = vunpack.c.h.b16 %v284
    %v660 = vunpack.c.l.b16 %v285
    %v661 = vunpack.c.h.b16 %v285
    %v662 = vunpack.c.l.b16 %v286
    %v663 = vunpack.c.h.b16 %v286
    %v664 = vunpack.c.l.b16 %v287
    %v665 = vunpack.c.h.b16 %v287
    %v666 = vunpack.c.l.b16 %v288
    %v667 = vunpack.c.h.b16 %v288
    %v668 = vunpack.c.l.b16 %v289
    %v669 = vunpack.c.h.b16 %v289
    %v670 = vunpack.c.l.b16 %v290
    %v671 = vunpack.c.h.b16 %v290
    %v672 = vunpack.c.l.b16 %v291
    %v673 = vunpack.c.h.b16 %v291
    %v674 = vunpack.c.l.b16 %v292
    %v675 = vunpack.c.h.b16 %v292
    %v676 = vunpack.c.l.b16 %v293
    %v677 = vunpack.c.h.b16 %v293
    %v678 = vpack.c.b16 %v430, %v422
    %v679 = vpack.c.b16 %v431, %v423
    %v680 = vpack.c.b16 %v432, %v424
    %v681 = vpack.c.b16 %v433, %v425
    %v682 = vpack.c.b16 %v434, %v426
    %v683 = vpack.c.b16 %v435, %v427
    %v684 = vpack.c.b16 %v436, %v428
    %v685 = vpack.c.b16 %v437, %v429
    %v686 = vpack.c.b16 %v446, %v438
    %v687 = vpack.c.b16 %v447, %v439
    %v688 = vpack.c.b16 %v448, %v440
    %v689 = vpack.c.b16 %v449, %v441
    %v690 = vpack.c.b16 %v450, %v442
    %v691 = vpack.c.b16 %v451, %v443
    %v692 = vpack.c.b16 %v452, %v444
    %v693 = vpack.c.b16 %v453, %v445
    %v694 = vpack.c.b16 %v462, %v454
    %v695 = vpack.c.b16 %v463, %v455
    %v696 = vpack.c.b16 %v464, %v456
    %v697 = vpack.c.b16 %v465, %v457
    %v698 = vpack.c.b16 %v466, %v458
    %v699 = vpack.c.b16 %v467, %v459
    %v700 = vpack.c.b16 %v468, %v460
    %v701 = vpack.c.b16 %v469, %v461
    %v702 = vpack.c.b16 %v478, %v470
    %v703 = vpack.c.b16 %v479, %v471
    %v704 = vpack.c.b16 %v480, %v472
    %v705 = vpack.c.b16 %v481, %v473
    %v706 = vpack.c.b16 %v482, %v474
    %v707 = vpack.c.b16 %v483, %v475
    %v708 = vpack.c.b16 %v484, %v476
    %v709 = vpack.c.b16 %v485, %v477
    %v710 = vpack.c.b16 %v494, %v486
    %v711 = vpack.c.b16 %v495, %v487
    %v712 = vpack.c.b16 %v496, %v488
    %v713 = vpack.c.b16 %v497, %v489
    %v714 = vpack.c.b16 %v498, %v490
    %v715 = vpack.c.b16 %v499, %v491
    %v716 = vpack.c.b16 %v500, %v492
    %v717 = vpack.c.b16 %v501, %v493
    %v718 = vpack.c.b16 %v510, %v502
    %v719 = vpack.c.b16 %v511, %v503
    %v720 = vpack.c.b16 %v512, %v504
    %v721 = vpack.c.b16 %v513, %v505
    %v722 = vpack.c.b16 %v514, %v506
    %v723 = vpack.c.b16 %v515, %v507
    %v724 = vpack.c.b16 %v516, %v508
    %v725 = vpack.c.b16 %v517, %v509
    %v726 = vpack.c.b16 %v526, %v518
    %v727 = vpack.c.b16 %v527, %v519
    %v728 = vpack.c.b16 %v528, %v520
    %v729 = vpack.c.b16 %v529, %v521
    %v730 = vpack.c.b16 %v530, %v522
    %v731 = vpack.c.b16 %v531, %v523
    %v732 = vpack.c.b16 %v532, %v524
    %v733 = vpack.c.b16 %v533, %v525
    %v734 = vpack.c.b16 %v542, %v534
    %v735 = vpack.c.b16 %v543, %v535
    %v736 = vpack.c.b16 %v544, %v536
    %v737 = vpack.c.b16 %v545, %v537
    %v738 = vpack.c.b16 %v546, %v538
    %v739 = vpack.c.b16 %v547, %v539
    %v740 = vpack.c.b16 %v548, %v540
    %v741 = vpack.c.b16 %v549, %v541
    %v742 = vpack.c.b16 %v558, %v550
    %v743 = vpack.c.b16 %v559, %v551
    %v744 = vpack.c.b16 %v560, %v552
    %v745 = vpack.c.b16 %v561, %v553
    %v746 = vpack.c.b16 %v562, %v554
    %v747 = vpack.c.b16 %v563, %v555
    %v748 = vpack.c.b16 %v564, %v556
    %v749 = vpack.c.b16 %v565, %v557
    %v750 = vpack.c.b16 %v574, %v566
    %v751 = vpack.c.b16 %v575, %v567
    %v752 = vpack.c.b16 %v576, %v568
    %v753 = vpack.c.b16 %v577, %v569
    %v754 = vpack.c.b16 %v578, %v570
    %v755 = vpack.c.b16 %v579, %v571
    %v756 = vpack.c.b16 %v580, %v572
    %v757 = vpack.c.b16 %v581, %v573
    %v758 = vpack.c.b16 %v590, %v582
    %v759 = vpack.c.b16 %v591, %v583
    %v760 = vpack.c.b16 %v592, %v584
    %v761 = vpack.c.b16 %v593, %v585
    %v762 = vpack.c.b16 %v594, %v586
    %v763 = vpack.c.b16 %v595, %v587
    %v764 = vpack.c.b16 %v596, %v588
    %v765 = vpack.c.b16 %v597, %v589
    %v766 = vpack.c.b16 %v606, %v598
    %v767 = vpack.c.b16 %v607, %v599
    %v768 = vpack.c.b16 %v608, %v600
    %v769 = vpack.c.b16 %v609, %v601
    %v770 = vpack.c.b16 %v610, %v602
    %v771 = vpack.c.b16 %v611, %v603
    %v772 = vpack.c.b16 %v612, %v604
    %v773 = vpack.c.b16 %v613, %v605
    %v774 = vpack.c.b16 %v622, %v614
    %v775 = vpack.c.b16 %v623, %v615
    %v776 = vpack.c.b16 %v624, %v616
    %v777 = vpack.c.b16 %v625, %v617
    %v778 = vpack.c.b16 %v626, %v618
    %v779 = vpack.c.b16 %v627, %v619
    %v780 = vpack.c.b16 %v628, %v620
    %v781 = vpack.c.b16 %v629, %v621
    %v782 = vpack.c.b16 %v638, %v630
    %v783 = vpack.c.b16 %v639, %v631
    %v784 = vpack.c.b16 %v640, %v632
    %v785 = vpack.c.b16 %v641, %v633
    %v786 = vpack.c.b16 %v642, %v634
    %v787 = vpack.c.b16 %v643, %v635
    %v788 = vpack.c.b16 %v644, %v636
    %v789 = vpack.c.b16 %v645, %v637
    %v790 = vpack.c.b16 %v654, %v646
    %v791 = vpack.c.b16 %v655, %v647
    %v792 = vpack.c.b16 %v656, %v648
    %v793 = vpack.c.b16 %v657, %v649
    %v794 = vpack.c.b16 %v658, %v650
    %v795 = vpack.c.b16 %v659, %v651
    %v796 = vpack.c.b16 %v660, %v652
    %v797 = vpack.c.b16 %v661, %v653
    %v798 = vpack.c.b16 %v670, %v662
    %v799 = vpack.c.b16 %v671, %v663
    %v800 = vpack.c.b16 %v672, %v664
    %v801 = vpack.c.b16 %v673, %v665
    %v802 = vpack.c.b16 %v674, %v666
    %v803 = vpack.c.b16 %v675, %v667
    %v804 = vpack.c.b16 %v676, %v668
    %v805 = vpack.c.b16 %v677, %v669
    %934 = vmatpush.bf16.msra.mxu0 %v734
    %935 = vmatpush.bf16.msra.mxu0 %v726
    %936 = vmatpush.bf16.msra.mxu0 %v718
    %937 = vmatpush.bf16.msra.mxu0 %v710
    %938 = vmatpush.bf16.msra.mxu0 %v702
    %939 = vmatpush.bf16.msra.mxu0 %v694
    %940 = vmatpush.bf16.msra.mxu0 %v686
    %941 = vmatpush.bf16.msra.mxu0 %v678
    %942 = vmatmul.bf16.gmra.mxu0 %v162
    %v943 = vpop.f32.mrf.mxu0
    %v944 = vadd.f32 0.0, %v943
    %v945 = vpop.f32.mrf.mxu0
    %v946 = vadd.f32 0.0, %v945
    %947 = vmatmul.bf16.gmra.mxu0 %v164
    %v948 = vpop.f32.mrf.mxu0
    %v949 = vadd.f32 0.0, %v948
    %v950 = vpop.f32.mrf.mxu0
    %v951 = vadd.f32 0.0, %v950
    %952 = vdwg.mxu0
    %953 = vmatpush.bf16.msra.mxu0 %v798
    %954 = vmatpush.bf16.msra.mxu0 %v790
    %955 = vmatpush.bf16.msra.mxu0 %v782
    %956 = vmatpush.bf16.msra.mxu0 %v774
    %957 = vmatpush.bf16.msra.mxu0 %v766
    %958 = vmatpush.bf16.msra.mxu0 %v758
    %959 = vmatpush.bf16.msra.mxu0 %v750
    %960 = vmatpush.bf16.msra.mxu0 %v742
    %961 = vmatmul.bf16.gmra.mxu0 %v163
    %v962 = vpop.f32.mrf.mxu0
    %v963 = vadd.f32 %v944, %v962
    %v964 = vpop.f32.mrf.mxu0
    %v965 = vadd.f32 %v946, %v964
    %966 = vmatmul.bf16.gmra.mxu0 %v165
    %v967 = vpop.f32.mrf.mxu0
    %v968 = vadd.f32 %v949, %v967
    %v969 = vpop.f32.mrf.mxu0
    %v970 = vadd.f32 %v951, %v969
    %971 = vdwg.mxu0
    %972 = vmatpush.bf16.msra.mxu0 %v735
    %973 = vmatpush.bf16.msra.mxu0 %v727
    %974 = vmatpush.bf16.msra.mxu0 %v719
    %975 = vmatpush.bf16.msra.mxu0 %v711
    %976 = vmatpush.bf16.msra.mxu0 %v703
    %977 = vmatpush.bf16.msra.mxu0 %v695
    %978 = vmatpush.bf16.msra.mxu0 %v687
    %979 = vmatpush.bf16.msra.mxu0 %v679
    %980 = vmatmul.bf16.gmra.mxu0 %v162
    %v981 = vpop.f32.mrf.mxu0
    %v982 = vadd.f32 0.0, %v981
    %v983 = vpop.f32.mrf.mxu0
    %v984 = vadd.f32 0.0, %v983
    %985 = vmatmul.bf16.gmra.mxu0 %v164
    %v986 = vpop.f32.mrf.mxu0
    %v987 = vadd.f32 0.0, %v986
    %v988 = vpop.f32.mrf.mxu0
    %v989 = vadd.f32 0.0, %v988
    %990 = vdwg.mxu0
    %991 = vmatpush.bf16.msra.mxu0 %v799
    %992 = vmatpush.bf16.msra.mxu0 %v791
    %993 = vmatpush.bf16.msra.mxu0 %v783
    %994 = vmatpush.bf16.msra.mxu0 %v775
    %995 = vmatpush.bf16.msra.mxu0 %v767
    %996 = vmatpush.bf16.msra.mxu0 %v759
    %997 = vmatpush.bf16.msra.mxu0 %v751
    %998 = vmatpush.bf16.msra.mxu0 %v743
    %999 = vmatmul.bf16.gmra.mxu0 %v163
    %v1000 = vpop.f32.mrf.mxu0
    %v1001 = vadd.f32 %v982, %v1000
    %v1002 = vpop.f32.mrf.mxu0
    %v1003 = vadd.f32 %v984, %v1002
    %1004 = vmatmul.bf16.gmra.mxu0 %v165
    %v1005 = vpop.f32.mrf.mxu0
    %v1006 = vadd.f32 %v987, %v1005
    %v1007 = vpop.f32.mrf.mxu0
    %v1008 = vadd.f32 %v989, %v1007
    %1009 = vdwg.mxu0
    %1010 = vmatpush.bf16.msra.mxu0 %v736
    %1011 = vmatpush.bf16.msra.mxu0 %v728
    %1012 = vmatpush.bf16.msra.mxu0 %v720
    %1013 = vmatpush.bf16.msra.mxu0 %v712
    %1014 = vmatpush.bf16.msra.mxu0 %v704
    %1015 = vmatpush.bf16.msra.mxu0 %v696
    %1016 = vmatpush.bf16.msra.mxu0 %v688
    %1017 = vmatpush.bf16.msra.mxu0 %v680
    %1018 = vmatmul.bf16.gmra.mxu0 %v162
    %v1019 = vpop.f32.mrf.mxu0
    %v1020 = vadd.f32 0.0, %v1019
    %v1021 = vpop.f32.mrf.mxu0
    %v1022 = vadd.f32 0.0, %v1021
    %1023 = vmatmul.bf16.gmra.mxu0 %v164
    %v1024 = vpop.f32.mrf.mxu0
    %v1025 = vadd.f32 0.0, %v1024
    %v1026 = vpop.f32.mrf.mxu0
    %v1027 = vadd.f32 0.0, %v1026
    %1028 = vdwg.mxu0
    %1029 = vmatpush.bf16.msra.mxu0 %v800
    %1030 = vmatpush.bf16.msra.mxu0 %v792
    %1031 = vmatpush.bf16.msra.mxu0 %v784
    %1032 = vmatpush.bf16.msra.mxu0 %v776
    %1033 = vmatpush.bf16.msra.mxu0 %v768
    %1034 = vmatpush.bf16.msra.mxu0 %v760
    %1035 = vmatpush.bf16.msra.mxu0 %v752
    %1036 = vmatpush.bf16.msra.mxu0 %v744
    %1037 = vmatmul.bf16.gmra.mxu0 %v163
    %v1038 = vpop.f32.mrf.mxu0
    %v1039 = vadd.f32 %v1020, %v1038
    %v1040 = vpop.f32.mrf.mxu0
    %v1041 = vadd.f32 %v1022, %v1040
    %1042 = vmatmul.bf16.gmra.mxu0 %v165
    %v1043 = vpop.f32.mrf.mxu0
    %v1044 = vadd.f32 %v1025, %v1043
    %v1045 = vpop.f32.mrf.mxu0
    %v1046 = vadd.f32 %v1027, %v1045
    %1047 = vdwg.mxu0
    %1048 = vmatpush.bf16.msra.mxu0 %v737
    %1049 = vmatpush.bf16.msra.mxu0 %v729
    %1050 = vmatpush.bf16.msra.mxu0 %v721
    %1051 = vmatpush.bf16.msra.mxu0 %v713
    %1052 = vmatpush.bf16.msra.mxu0 %v705
    %1053 = vmatpush.bf16.msra.mxu0 %v697
    %1054 = vmatpush.bf16.msra.mxu0 %v689
    %1055 = vmatpush.bf16.msra.mxu0 %v681
    %1056 = vmatmul.bf16.gmra.mxu0 %v162
    %v1057 = vpop.f32.mrf.mxu0
    %v1058 = vadd.f32 0.0, %v1057
    %v1059 = vpop.f32.mrf.mxu0
    %v1060 = vadd.f32 0.0, %v1059
    %1061 = vmatmul.bf16.gmra.mxu0 %v164
    %v1062 = vpop.f32.mrf.mxu0
    %v1063 = vadd.f32 0.0, %v1062
    %v1064 = vpop.f32.mrf.mxu0
    %v1065 = vadd.f32 0.0, %v1064
    %1066 = vdwg.mxu0
    %1067 = vmatpush.bf16.msra.mxu0 %v801
    %1068 = vmatpush.bf16.msra.mxu0 %v793
    %1069 = vmatpush.bf16.msra.mxu0 %v785
    %1070 = vmatpush.bf16.msra.mxu0 %v777
    %1071 = vmatpush.bf16.msra.mxu0 %v769
    %1072 = vmatpush.bf16.msra.mxu0 %v761
    %1073 = vmatpush.bf16.msra.mxu0 %v753
    %1074 = vmatpush.bf16.msra.mxu0 %v745
    %1075 = vmatmul.bf16.gmra.mxu0 %v163
    %v1076 = vpop.f32.mrf.mxu0
    %v1077 = vadd.f32 %v1058, %v1076
    %v1078 = vpop.f32.mrf.mxu0
    %v1079 = vadd.f32 %v1060, %v1078
    %1080 = vmatmul.bf16.gmra.mxu0 %v165
    %v1081 = vpop.f32.mrf.mxu0
    %v1082 = vadd.f32 %v1063, %v1081
    %v1083 = vpop.f32.mrf.mxu0
    %v1084 = vadd.f32 %v1065, %v1083
    %1085 = vdwg.mxu0
    %1086 = vmatpush.bf16.msra.mxu0 %v738
    %1087 = vmatpush.bf16.msra.mxu0 %v730
    %1088 = vmatpush.bf16.msra.mxu0 %v722
    %1089 = vmatpush.bf16.msra.mxu0 %v714
    %1090 = vmatpush.bf16.msra.mxu0 %v706
    %1091 = vmatpush.bf16.msra.mxu0 %v698
    %1092 = vmatpush.bf16.msra.mxu0 %v690
    %1093 = vmatpush.bf16.msra.mxu0 %v682
    %1094 = vmatmul.bf16.gmra.mxu0 %v162
    %v1095 = vpop.f32.mrf.mxu0
    %v1096 = vadd.f32 0.0, %v1095
    %v1097 = vpop.f32.mrf.mxu0
    %v1098 = vadd.f32 0.0, %v1097
    %1099 = vmatmul.bf16.gmra.mxu0 %v164
    %v1100 = vpop.f32.mrf.mxu0
    %v1101 = vadd.f32 0.0, %v1100
    %v1102 = vpop.f32.mrf.mxu0
    %v1103 = vadd.f32 0.0, %v1102
    %1104 = vdwg.mxu0
    %1105 = vmatpush.bf16.msra.mxu0 %v802
    %1106 = vmatpush.bf16.msra.mxu0 %v794
    %1107 = vmatpush.bf16.msra.mxu0 %v786
    %1108 = vmatpush.bf16.msra.mxu0 %v778
    %1109 = vmatpush.bf16.msra.mxu0 %v770
    %1110 = vmatpush.bf16.msra.mxu0 %v762
    %1111 = vmatpush.bf16.msra.mxu0 %v754
    %1112 = vmatpush.bf16.msra.mxu0 %v746
    %1113 = vmatmul.bf16.gmra.mxu0 %v163
    %v1114 = vpop.f32.mrf.mxu0
    %v1115 = vadd.f32 %v1096, %v1114
    %v1116 = vpop.f32.mrf.mxu0
    %v1117 = vadd.f32 %v1098, %v1116
    %1118 = vmatmul.bf16.gmra.mxu0 %v165
    %v1119 = vpop.f32.mrf.mxu0
    %v1120 = vadd.f32 %v1101, %v1119
    %v1121 = vpop.f32.mrf.mxu0
    %v1122 = vadd.f32 %v1103, %v1121
    %1123 = vdwg.mxu0
    %1124 = vmatpush.bf16.msra.mxu0 %v739
    %1125 = vmatpush.bf16.msra.mxu0 %v731
    %1126 = vmatpush.bf16.msra.mxu0 %v723
    %1127 = vmatpush.bf16.msra.mxu0 %v715
    %1128 = vmatpush.bf16.msra.mxu0 %v707
    %1129 = vmatpush.bf16.msra.mxu0 %v699
    %1130 = vmatpush.bf16.msra.mxu0 %v691
    %1131 = vmatpush.bf16.msra.mxu0 %v683
    %1132 = vmatmul.bf16.gmra.mxu0 %v162
    %v1133 = vpop.f32.mrf.mxu0
    %v1134 = vadd.f32 0.0, %v1133
    %v1135 = vpop.f32.mrf.mxu0
    %v1136 = vadd.f32 0.0, %v1135
    %1137 = vmatmul.bf16.gmra.mxu0 %v164
    %v1138 = vpop.f32.mrf.mxu0
    %v1139 = vadd.f32 0.0, %v1138
    %v1140 = vpop.f32.mrf.mxu0
    %v1141 = vadd.f32 0.0, %v1140
    %1142 = vdwg.mxu0
    %1143 = vmatpush.bf16.msra.mxu0 %v803
    %1144 = vmatpush.bf16.msra.mxu0 %v795
    %1145 = vmatpush.bf16.msra.mxu0 %v787
    %1146 = vmatpush.bf16.msra.mxu0 %v779
    %1147 = vmatpush.bf16.msra.mxu0 %v771
    %1148 = vmatpush.bf16.msra.mxu0 %v763
    %1149 = vmatpush.bf16.msra.mxu0 %v755
    %1150 = vmatpush.bf16.msra.mxu0 %v747
    %1151 = vmatmul.bf16.gmra.mxu0 %v163
    %v1152 = vpop.f32.mrf.mxu0
    %v1153 = vadd.f32 %v1134, %v1152
    %v1154 = vpop.f32.mrf.mxu0
    %v1155 = vadd.f32 %v1136, %v1154
    %1156 = vmatmul.bf16.gmra.mxu0 %v165
    %v1157 = vpop.f32.mrf.mxu0
    %v1158 = vadd.f32 %v1139, %v1157
    %v1159 = vpop.f32.mrf.mxu0
    %v1160 = vadd.f32 %v1141, %v1159
    %1161 = vdwg.mxu0
    %1162 = vmatpush.bf16.msra.mxu0 %v740
    %1163 = vmatpush.bf16.msra.mxu0 %v732
    %1164 = vmatpush.bf16.msra.mxu0 %v724
    %1165 = vmatpush.bf16.msra.mxu0 %v716
    %1166 = vmatpush.bf16.msra.mxu0 %v708
    %1167 = vmatpush.bf16.msra.mxu0 %v700
    %1168 = vmatpush.bf16.msra.mxu0 %v692
    %1169 = vmatpush.bf16.msra.mxu0 %v684
    %1170 = vmatmul.bf16.gmra.mxu0 %v162
    %v1171 = vpop.f32.mrf.mxu0
    %v1172 = vadd.f32 0.0, %v1171
    %v1173 = vpop.f32.mrf.mxu0
    %v1174 = vadd.f32 0.0, %v1173
    %1175 = vmatmul.bf16.gmra.mxu0 %v164
    %v1176 = vpop.f32.mrf.mxu0
    %v1177 = vadd.f32 0.0, %v1176
    %v1178 = vpop.f32.mrf.mxu0
    %v1179 = vadd.f32 0.0, %v1178
    %1180 = vdwg.mxu0
    %1181 = vmatpush.bf16.msra.mxu0 %v804
    %1182 = vmatpush.bf16.msra.mxu0 %v796
    %1183 = vmatpush.bf16.msra.mxu0 %v788
    %1184 = vmatpush.bf16.msra.mxu0 %v780
    %1185 = vmatpush.bf16.msra.mxu0 %v772
    %1186 = vmatpush.bf16.msra.mxu0 %v764
    %1187 = vmatpush.bf16.msra.mxu0 %v756
    %1188 = vmatpush.bf16.msra.mxu0 %v748
    %1189 = vmatmul.bf16.gmra.mxu0 %v163
    %v1190 = vpop.f32.mrf.mxu0
    %v1191 = vadd.f32 %v1172, %v1190
    %v1192 = vpop.f32.mrf.mxu0
    %v1193 = vadd.f32 %v1174, %v1192
    %1194 = vmatmul.bf16.gmra.mxu0 %v165
    %v1195 = vpop.f32.mrf.mxu0
    %v1196 = vadd.f32 %v1177, %v1195
    %v1197 = vpop.f32.mrf.mxu0
    %v1198 = vadd.f32 %v1179, %v1197
    %1199 = vdwg.mxu0
    %1200 = vmatpush.bf16.msra.mxu0 %v741
    %1201 = vmatpush.bf16.msra.mxu0 %v733
    %1202 = vmatpush.bf16.msra.mxu0 %v725
    %1203 = vmatpush.bf16.msra.mxu0 %v717
    %1204 = vmatpush.bf16.msra.mxu0 %v709
    %1205 = vmatpush.bf16.msra.mxu0 %v701
    %1206 = vmatpush.bf16.msra.mxu0 %v693
    %1207 = vmatpush.bf16.msra.mxu0 %v685
    %1208 = vmatmul.bf16.gmra.mxu0 %v162
    %v1209 = vpop.f32.mrf.mxu0
    %v1210 = vadd.f32 0.0, %v1209
    %v1211 = vpop.f32.mrf.mxu0
    %v1212 = vadd.f32 0.0, %v1211
    %1213 = vmatmul.bf16.gmra.mxu0 %v164
    %v1214 = vpop.f32.mrf.mxu0
    %v1215 = vadd.f32 0.0, %v1214
    %v1216 = vpop.f32.mrf.mxu0
    %v1217 = vadd.f32 0.0, %v1216
    %1218 = vdwg.mxu0
    %1219 = vmatpush.bf16.msra.mxu0 %v805
    %1220 = vmatpush.bf16.msra.mxu0 %v797
    %1221 = vmatpush.bf16.msra.mxu0 %v789
    %1222 = vmatpush.bf16.msra.mxu0 %v781
    %1223 = vmatpush.bf16.msra.mxu0 %v773
    %1224 = vmatpush.bf16.msra.mxu0 %v765
    %1225 = vmatpush.bf16.msra.mxu0 %v757
    %1226 = vmatpush.bf16.msra.mxu0 %v749
    %1227 = vmatmul.bf16.gmra.mxu0 %v163
    %v1228 = vpop.f32.mrf.mxu0
    %v1229 = vadd.f32 %v1210, %v1228
    %v1230 = vpop.f32.mrf.mxu0
    %v1231 = vadd.f32 %v1212, %v1230
    %1232 = vmatmul.bf16.gmra.mxu0 %v165
    %v1233 = vpop.f32.mrf.mxu0
    %v1234 = vadd.f32 %v1215, %v1233
    %v1235 = vpop.f32.mrf.mxu0
    %v1236 = vadd.f32 %v1217, %v1235
    %1237 = vdwg.mxu0
    %v1238 = vpack.c.bf16 %v1001, %v963
    %v1239 = vpack.c.bf16 %v1077, %v1039
    %v1240 = vpack.c.bf16 %v1153, %v1115
    %v1241 = vpack.c.bf16 %v1229, %v1191
    %v1242 = vpack.c.bf16 %v1003, %v965
    %v1243 = vpack.c.bf16 %v1079, %v1041
    %v1244 = vpack.c.bf16 %v1155, %v1117
    %v1245 = vpack.c.bf16 %v1231, %v1193
    %v1246 = vpack.c.bf16 %v1006, %v968
    %v1247 = vpack.c.bf16 %v1082, %v1044
    %v1248 = vpack.c.bf16 %v1158, %v1120
    %v1249 = vpack.c.bf16 %v1234, %v1196
    %v1250 = vpack.c.bf16 %v1008, %v970
    %v1251 = vpack.c.bf16 %v1084, %v1046
    %v1252 = vpack.c.bf16 %v1160, %v1122
    %v1253 = vpack.c.bf16 %v1236, %v1198
    %v1254 = vunpack.c.l.bf16 %v1238
    %v1255 = vunpack.c.h.bf16 %v1238
    %v1256 = vunpack.c.l.bf16 %v1239
    %v1257 = vunpack.c.h.bf16 %v1239
    %v1258 = vunpack.c.l.bf16 %v1240
    %v1259 = vunpack.c.h.bf16 %v1240
    %v1260 = vunpack.c.l.bf16 %v1241
    %v1261 = vunpack.c.h.bf16 %v1241
    %v1262 = vunpack.c.l.bf16 %v1242
    %v1263 = vunpack.c.h.bf16 %v1242
    %v1264 = vunpack.c.l.bf16 %v1243
    %v1265 = vunpack.c.h.bf16 %v1243
    %v1266 = vunpack.c.l.bf16 %v1244
    %v1267 = vunpack.c.h.bf16 %v1244
    %v1268 = vunpack.c.l.bf16 %v1245
    %v1269 = vunpack.c.h.bf16 %v1245
    %v1270 = vunpack.c.l.bf16 %v1246
    %v1271 = vunpack.c.h.bf16 %v1246
    %v1272 = vunpack.c.l.bf16 %v1247
    %v1273 = vunpack.c.h.bf16 %v1247
    %v1274 = vunpack.c.l.bf16 %v1248
    %v1275 = vunpack.c.h.bf16 %v1248
    %v1276 = vunpack.c.l.bf16 %v1249
    %v1277 = vunpack.c.h.bf16 %v1249
    %v1278 = vunpack.c.l.bf16 %v1250
    %v1279 = vunpack.c.h.bf16 %v1250
    %v1280 = vunpack.c.l.bf16 %v1251
    %v1281 = vunpack.c.h.bf16 %v1251
    %v1282 = vunpack.c.l.bf16 %v1252
    %v1283 = vunpack.c.h.bf16 %v1252
    %v1284 = vunpack.c.l.bf16 %v1253
    %v1285 = vunpack.c.h.bf16 %v1253
    %v1286 = vmax.f32 %v1254, %v1262
    %v1287 = vrot.slane %v1286, 4
    %v1288 = vmax.f32 %v1286, %v1287
    %v1289 = vrot.slane %v1288, 2
    %v1290 = vmax.f32 %v1288, %v1289
    %v1291 = vrot.slane %v1290, 1
    %v1292 = vmax.f32 %v1290, %v1291
    %v1293 = vmax.f32 %v1255, %v1263
    %v1294 = vrot.slane %v1293, 4
    %v1295 = vmax.f32 %v1293, %v1294
    %v1296 = vrot.slane %v1295, 2
    %v1297 = vmax.f32 %v1295, %v1296
    %v1298 = vrot.slane %v1297, 1
    %v1299 = vmax.f32 %v1297, %v1298
    %v1300 = vmax.f32 %v1256, %v1264
    %v1301 = vrot.slane %v1300, 4
    %v1302 = vmax.f32 %v1300, %v1301
    %v1303 = vrot.slane %v1302, 2
    %v1304 = vmax.f32 %v1302, %v1303
    %v1305 = vrot.slane %v1304, 1
    %v1306 = vmax.f32 %v1304, %v1305
    %v1307 = vmax.f32 %v1257, %v1265
    %v1308 = vrot.slane %v1307, 4
    %v1309 = vmax.f32 %v1307, %v1308
    %v1310 = vrot.slane %v1309, 2
    %v1311 = vmax.f32 %v1309, %v1310
    %v1312 = vrot.slane %v1311, 1
    %v1313 = vmax.f32 %v1311, %v1312
    %v1314 = vmax.f32 %v1258, %v1266
    %v1315 = vrot.slane %v1314, 4
    %v1316 = vmax.f32 %v1314, %v1315
    %v1317 = vrot.slane %v1316, 2
    %v1318 = vmax.f32 %v1316, %v1317
    %v1319 = vrot.slane %v1318, 1
    %v1320 = vmax.f32 %v1318, %v1319
    %v1321 = vmax.f32 %v1259, %v1267
    %v1322 = vrot.slane %v1321, 4
    %v1323 = vmax.f32 %v1321, %v1322
    %v1324 = vrot.slane %v1323, 2
    %v1325 = vmax.f32 %v1323, %v1324
    %v1326 = vrot.slane %v1325, 1
    %v1327 = vmax.f32 %v1325, %v1326
    %v1328 = vmax.f32 %v1260, %v1268
    %v1329 = vrot.slane %v1328, 4
    %v1330 = vmax.f32 %v1328, %v1329
    %v1331 = vrot.slane %v1330, 2
    %v1332 = vmax.f32 %v1330, %v1331
    %v1333 = vrot.slane %v1332, 1
    %v1334 = vmax.f32 %v1332, %v1333
    %v1335 = vmax.f32 %v1261, %v1269
    %v1336 = vrot.slane %v1335, 4
    %v1337 = vmax.f32 %v1335, %v1336
    %v1338 = vrot.slane %v1337, 2
    %v1339 = vmax.f32 %v1337, %v1338
    %v1340 = vrot.slane %v1339, 1
    %v1341 = vmax.f32 %v1339, %v1340
    %v1342 = vmax.f32 %v1270, %v1278
    %v1343 = vrot.slane %v1342, 4
    %v1344 = vmax.f32 %v1342, %v1343
    %v1345 = vrot.slane %v1344, 2
    %v1346 = vmax.f32 %v1344, %v1345
    %v1347 = vrot.slane %v1346, 1
    %v1348 = vmax.f32 %v1346, %v1347
    %v1349 = vmax.f32 %v1271, %v1279
    %v1350 = vrot.slane %v1349, 4
    %v1351 = vmax.f32 %v1349, %v1350
    %v1352 = vrot.slane %v1351, 2
    %v1353 = vmax.f32 %v1351, %v1352
    %v1354 = vrot.slane %v1353, 1
    %v1355 = vmax.f32 %v1353, %v1354
    %v1356 = vmax.f32 %v1272, %v1280
    %v1357 = vrot.slane %v1356, 4
    %v1358 = vmax.f32 %v1356, %v1357
    %v1359 = vrot.slane %v1358, 2
    %v1360 = vmax.f32 %v1358, %v1359
    %v1361 = vrot.slane %v1360, 1
    %v1362 = vmax.f32 %v1360, %v1361
    %v1363 = vmax.f32 %v1273, %v1281
    %v1364 = vrot.slane %v1363, 4
    %v1365 = vmax.f32 %v1363, %v1364
    %v1366 = vrot.slane %v1365, 2
    %v1367 = vmax.f32 %v1365, %v1366
    %v1368 = vrot.slane %v1367, 1
    %v1369 = vmax.f32 %v1367, %v1368
    %v1370 = vmax.f32 %v1274, %v1282
    %v1371 = vrot.slane %v1370, 4
    %v1372 = vmax.f32 %v1370, %v1371
    %v1373 = vrot.slane %v1372, 2
    %v1374 = vmax.f32 %v1372, %v1373
    %v1375 = vrot.slane %v1374, 1
    %v1376 = vmax.f32 %v1374, %v1375
    %v1377 = vmax.f32 %v1275, %v1283
    %v1378 = vrot.slane %v1377, 4
    %v1379 = vmax.f32 %v1377, %v1378
    %v1380 = vrot.slane %v1379, 2
    %v1381 = vmax.f32 %v1379, %v1380
    %v1382 = vrot.slane %v1381, 1
    %v1383 = vmax.f32 %v1381, %v1382
    %v1384 = vmax.f32 %v1276, %v1284
    %v1385 = vrot.slane %v1384, 4
    %v1386 = vmax.f32 %v1384, %v1385
    %v1387 = vrot.slane %v1386, 2
    %v1388 = vmax.f32 %v1386, %v1387
    %v1389 = vrot.slane %v1388, 1
    %v1390 = vmax.f32 %v1388, %v1389
    %v1391 = vmax.f32 %v1277, %v1285
    %v1392 = vrot.slane %v1391, 4
    %v1393 = vmax.f32 %v1391, %v1392
    %v1394 = vrot.slane %v1393, 2
    %v1395 = vmax.f32 %v1393, %v1394
    %v1396 = vrot.slane %v1395, 1
    %v1397 = vmax.f32 %v1395, %v1396
    %v1398 = vpack.c.bf16 %v1299, %v1292
    %v1399 = vpack.c.bf16 %v1313, %v1306
    %v1400 = vpack.c.bf16 %v1327, %v1320
    %v1401 = vpack.c.bf16 %v1341, %v1334
    %v1402 = vpack.c.bf16 %v1355, %v1348
    %v1403 = vpack.c.bf16 %v1369, %v1362
    %v1404 = vpack.c.bf16 %v1383, %v1376
    %v1405 = vpack.c.bf16 %v1397, %v1390
    %v1406 = vunpack.c.l.bf16 %v1398
    %v1407 = vunpack.c.h.bf16 %v1398
    %v1408 = vunpack.c.l.bf16 %v1399
    %v1409 = vunpack.c.h.bf16 %v1399
    %v1410 = vunpack.c.l.bf16 %v1400
    %v1411 = vunpack.c.h.bf16 %v1400
    %v1412 = vunpack.c.l.bf16 %v1401
    %v1413 = vunpack.c.h.bf16 %v1401
    %v1414 = vunpack.c.l.bf16 %v1402
    %v1415 = vunpack.c.h.bf16 %v1402
    %v1416 = vunpack.c.l.bf16 %v1403
    %v1417 = vunpack.c.h.bf16 %v1403
    %v1418 = vunpack.c.l.bf16 %v1404
    %v1419 = vunpack.c.h.bf16 %v1404
    %v1420 = vunpack.c.l.bf16 %v1405
    %v1421 = vunpack.c.h.bf16 %v1405
    %v1422 = vld [vmem:[%s4] sm:$0xff]
    %v1424 = vperm.slane %v1422, 0
    %v1425 = vperm.slane %v1422, 1
    %v1426 = vperm.slane %v1422, 2
    %v1427 = vperm.slane %v1422, 3
    %v1428 = vperm.slane %v1422, 4
    %v1429 = vperm.slane %v1422, 5
    %v1430 = vperm.slane %v1422, 6
    %v1431 = vperm.slane %v1422, 7
    %v1440 = vadd.f32 %v1406, %v1424
    %v1441 = vadd.f32 %v1407, %v1425
    %v1442 = vadd.f32 %v1408, %v1426
    %v1443 = vadd.f32 %v1409, %v1427
    %v1444 = vadd.f32 %v1410, %v1428
    %v1445 = vadd.f32 %v1411, %v1429
    %v1446 = vadd.f32 %v1412, %v1430
    %v1447 = vadd.f32 %v1413, %v1431
    %v1448 = vadd.f32 %v1414, %v1424
    %v1449 = vadd.f32 %v1415, %v1425
    %v1450 = vadd.f32 %v1416, %v1426
    %v1451 = vadd.f32 %v1417, %v1427
    %v1452 = vadd.f32 %v1418, %v1428
    %v1453 = vadd.f32 %v1419, %v1429
    %v1454 = vadd.f32 %v1420, %v1430
    %v1455 = vadd.f32 %v1421, %v1431
    %v1456 = vmax.f32 %v1440, 0.0
    %v1457 = vmax.f32 %v1441, 0.0
    %v1458 = vmax.f32 %v1442, 0.0
    %v1459 = vmax.f32 %v1443, 0.0
    %v1460 = vmax.f32 %v1444, 0.0
    %v1461 = vmax.f32 %v1445, 0.0
    %v1462 = vmax.f32 %v1446, 0.0
    %v1463 = vmax.f32 %v1447, 0.0
    %v1464 = vmax.f32 %v1448, 0.0
    %v1465 = vmax.f32 %v1449, 0.0
    %v1466 = vmax.f32 %v1450, 0.0
    %v1467 = vmax.f32 %v1451, 0.0
    %v1468 = vmax.f32 %v1452, 0.0
    %v1469 = vmax.f32 %v1453, 0.0
    %v1470 = vmax.f32 %v1454, 0.0
    %v1471 = vmax.f32 %v1455, 0.0
    %v1472 = vpack.c.bf16 %v1456, %v1456
    %v1473 = vpack.c.bf16 %v1457, %v1457
    %v1474 = vpack.c.bf16 %v1458, %v1458
    %v1475 = vpack.c.bf16 %v1459, %v1459
    %v1476 = vpack.c.bf16 %v1460, %v1460
    %v1477 = vpack.c.bf16 %v1461, %v1461
    %v1478 = vpack.c.bf16 %v1462, %v1462
    %v1479 = vpack.c.bf16 %v1463, %v1463
    %v1480 = vpack.c.bf16 %v1464, %v1464
    %v1481 = vpack.c.bf16 %v1465, %v1465
    %v1482 = vpack.c.bf16 %v1466, %v1466
    %v1483 = vpack.c.bf16 %v1467, %v1467
    %v1484 = vpack.c.bf16 %v1468, %v1468
    %v1485 = vpack.c.bf16 %v1469, %v1469
    %v1486 = vpack.c.bf16 %v1470, %v1470
    %v1487 = vpack.c.bf16 %v1471, %v1471
    %v1488 = vld [vmem:[#allocation5] sm:$0xff]
    %v1489 = vld [vmem:[#allocation5 + $0x8] sm:$0xff]
    %v1490 = vld [vmem:[#allocation5 + $0x10] sm:$0xff]
    %v1491 = vld [vmem:[#allocation5 + $0x18] sm:$0xff]
    %v1492 = vld [vmem:[#allocation5 + $0x20] sm:$0xff]
    %v1493 = vld [vmem:[#allocation5 + $0x28] sm:$0xff]
    %v1494 = vld [vmem:[#allocation5 + $0x30] sm:$0xff]
    %v1495 = vld [vmem:[#allocation5 + $0x38] sm:$0xff]
    %v1496 = vld [vmem:[#allocation5 + $0x40] sm:$0xff]
    %v1497 = vld [vmem:[#allocation5 + $0x48] sm:$0xff]
    %v1498 = vld [vmem:[#allocation5 + $0x50] sm:$0xff]
    %v1499 = vld [vmem:[#allocation5 + $0x58] sm:$0xff]
    %v1500 = vld [vmem:[#allocation5 + $0x60] sm:$0xff]
    %v1501 = vld [vmem:[#allocation5 + $0x68] sm:$0xff]
    %v1502 = vld [vmem:[#allocation5 + $0x70] sm:$0xff]
    %v1503 = vld [vmem:[#allocation5 + $0x78] sm:$0xff]
    %v1504 = vld [vmem:[#allocation5 + $0x80] sm:$0xff]
    %v1505 = vld [vmem:[#allocation5 + $0x88] sm:$0xff]
    %v1506 = vld [vmem:[#allocation5 + $0x90] sm:$0xff]
    %v1507 = vld [vmem:[#allocation5 + $0x98] sm:$0xff]
    %v1508 = vld [vmem:[#allocation5 + $0xa0] sm:$0xff]
    %v1509 = vld [vmem:[#allocation5 + $0xa8] sm:$0xff]
    %v1510 = vld [vmem:[#allocation5 + $0xb0] sm:$0xff]
    %v1511 = vld [vmem:[#allocation5 + $0xb8] sm:$0xff]
    %v1512 = vld [vmem:[#allocation5 + $0xc0] sm:$0xff]
    %v1513 = vld [vmem:[#allocation5 + $0xc8] sm:$0xff]
    %v1514 = vld [vmem:[#allocation5 + $0xd0] sm:$0xff]
    %v1515 = vld [vmem:[#allocation5 + $0xd8] sm:$0xff]
    %v1516 = vld [vmem:[#allocation5 + $0xe0] sm:$0xff]
    %v1517 = vld [vmem:[#allocation5 + $0xe8] sm:$0xff]
    %v1518 = vld [vmem:[#allocation5 + $0xf0] sm:$0xff]
    %v1519 = vld [vmem:[#allocation5 + $0xf8] sm:$0xff]
    %v1520 = vld [vmem:[#allocation5 + $0x100] sm:$0xff]
    %v1521 = vld [vmem:[#allocation5 + $0x108] sm:$0xff]
    %v1522 = vld [vmem:[#allocation5 + $0x110] sm:$0xff]
    %v1523 = vld [vmem:[#allocation5 + $0x118] sm:$0xff]
    %v1524 = vld [vmem:[#allocation5 + $0x120] sm:$0xff]
    %v1525 = vld [vmem:[#allocation5 + $0x128] sm:$0xff]
    %v1526 = vld [vmem:[#allocation5 + $0x130] sm:$0xff]
    %v1527 = vld [vmem:[#allocation5 + $0x138] sm:$0xff]
    %v1528 = vld [vmem:[#allocation5 + $0x140] sm:$0xff]
    %v1529 = vld [vmem:[#allocation5 + $0x148] sm:$0xff]
    %v1530 = vld [vmem:[#allocation5 + $0x150] sm:$0xff]
    %v1531 = vld [vmem:[#allocation5 + $0x158] sm:$0xff]
    %v1532 = vld [vmem:[#allocation5 + $0x160] sm:$0xff]
    %v1533 = vld [vmem:[#allocation5 + $0x168] sm:$0xff]
    %v1534 = vld [vmem:[#allocation5 + $0x170] sm:$0xff]
    %v1535 = vld [vmem:[#allocation5 + $0x178] sm:$0xff]
    %v1536 = vld [vmem:[#allocation5 + $0x180] sm:$0xff]
    %v1537 = vld [vmem:[#allocation5 + $0x188] sm:$0xff]
    %v1538 = vld [vmem:[#allocation5 + $0x190] sm:$0xff]
    %v1539 = vld [vmem:[#allocation5 + $0x198] sm:$0xff]
    %v1540 = vld [vmem:[#allocation5 + $0x1a0] sm:$0xff]
    %v1541 = vld [vmem:[#allocation5 + $0x1a8] sm:$0xff]
    %v1542 = vld [vmem:[#allocation5 + $0x1b0] sm:$0xff]
    %v1543 = vld [vmem:[#allocation5 + $0x1b8] sm:$0xff]
    %v1544 = vld [vmem:[#allocation5 + $0x1c0] sm:$0xff]
    %v1545 = vld [vmem:[#allocation5 + $0x1c8] sm:$0xff]
    %v1546 = vld [vmem:[#allocation5 + $0x1d0] sm:$0xff]
    %v1547 = vld [vmem:[#allocation5 + $0x1d8] sm:$0xff]
    %v1548 = vld [vmem:[#allocation5 + $0x1e0] sm:$0xff]
    %v1549 = vld [vmem:[#allocation5 + $0x1e8] sm:$0xff]
    %v1550 = vld [vmem:[#allocation5 + $0x1f0] sm:$0xff]
    %v1551 = vld [vmem:[#allocation5 + $0x1f8] sm:$0xff]
    %v1552 = vld [vmem:[#allocation5 + $0x200] sm:$0xff]
    %v1553 = vld [vmem:[#allocation5 + $0x208] sm:$0xff]
    %v1554 = vld [vmem:[#allocation5 + $0x210] sm:$0xff]
    %v1555 = vld [vmem:[#allocation5 + $0x218] sm:$0xff]
    %v1556 = vld [vmem:[#allocation5 + $0x220] sm:$0xff]
    %v1557 = vld [vmem:[#allocation5 + $0x228] sm:$0xff]
    %v1558 = vld [vmem:[#allocation5 + $0x230] sm:$0xff]
    %v1559 = vld [vmem:[#allocation5 + $0x238] sm:$0xff]
    %v1560 = vld [vmem:[#allocation5 + $0x240] sm:$0xff]
    %v1561 = vld [vmem:[#allocation5 + $0x248] sm:$0xff]
    %v1562 = vld [vmem:[#allocation5 + $0x250] sm:$0xff]
    %v1563 = vld [vmem:[#allocation5 + $0x258] sm:$0xff]
    %v1564 = vld [vmem:[#allocation5 + $0x260] sm:$0xff]
    %v1565 = vld [vmem:[#allocation5 + $0x268] sm:$0xff]
    %v1566 = vld [vmem:[#allocation5 + $0x270] sm:$0xff]
    %v1567 = vld [vmem:[#allocation5 + $0x278] sm:$0xff]
    %v1568 = vld [vmem:[#allocation5 + $0x280] sm:$0xff]
    %v1569 = vld [vmem:[#allocation5 + $0x288] sm:$0xff]
    %v1570 = vld [vmem:[#allocation5 + $0x290] sm:$0xff]
    %v1571 = vld [vmem:[#allocation5 + $0x298] sm:$0xff]
    %v1572 = vld [vmem:[#allocation5 + $0x2a0] sm:$0xff]
    %v1573 = vld [vmem:[#allocation5 + $0x2a8] sm:$0xff]
    %v1574 = vld [vmem:[#allocation5 + $0x2b0] sm:$0xff]
    %v1575 = vld [vmem:[#allocation5 + $0x2b8] sm:$0xff]
    %v1576 = vld [vmem:[#allocation5 + $0x2c0] sm:$0xff]
    %v1577 = vld [vmem:[#allocation5 + $0x2c8] sm:$0xff]
    %v1578 = vld [vmem:[#allocation5 + $0x2d0] sm:$0xff]
    %v1579 = vld [vmem:[#allocation5 + $0x2d8] sm:$0xff]
    %v1580 = vld [vmem:[#allocation5 + $0x2e0] sm:$0xff]
    %v1581 = vld [vmem:[#allocation5 + $0x2e8] sm:$0xff]
    %v1582 = vld [vmem:[#allocation5 + $0x2f0] sm:$0xff]
    %v1583 = vld [vmem:[#allocation5 + $0x2f8] sm:$0xff]
    %v1584 = vld [vmem:[#allocation5 + $0x300] sm:$0xff]
    %v1585 = vld [vmem:[#allocation5 + $0x308] sm:$0xff]
    %v1586 = vld [vmem:[#allocation5 + $0x310] sm:$0xff]
    %v1587 = vld [vmem:[#allocation5 + $0x318] sm:$0xff]
    %v1588 = vld [vmem:[#allocation5 + $0x320] sm:$0xff]
    %v1589 = vld [vmem:[#allocation5 + $0x328] sm:$0xff]
    %v1590 = vld [vmem:[#allocation5 + $0x330] sm:$0xff]
    %v1591 = vld [vmem:[#allocation5 + $0x338] sm:$0xff]
    %v1592 = vld [vmem:[#allocation5 + $0x340] sm:$0xff]
    %v1593 = vld [vmem:[#allocation5 + $0x348] sm:$0xff]
    %v1594 = vld [vmem:[#allocation5 + $0x350] sm:$0xff]
    %v1595 = vld [vmem:[#allocation5 + $0x358] sm:$0xff]
    %v1596 = vld [vmem:[#allocation5 + $0x360] sm:$0xff]
    %v1597 = vld [vmem:[#allocation5 + $0x368] sm:$0xff]
    %v1598 = vld [vmem:[#allocation5 + $0x370] sm:$0xff]
    %v1599 = vld [vmem:[#allocation5 + $0x378] sm:$0xff]
    %v1600 = vld [vmem:[#allocation5 + $0x380] sm:$0xff]
    %v1601 = vld [vmem:[#allocation5 + $0x388] sm:$0xff]
    %v1602 = vld [vmem:[#allocation5 + $0x390] sm:$0xff]
    %v1603 = vld [vmem:[#allocation5 + $0x398] sm:$0xff]
    %v1604 = vld [vmem:[#allocation5 + $0x3a0] sm:$0xff]
    %v1605 = vld [vmem:[#allocation5 + $0x3a8] sm:$0xff]
    %v1606 = vld [vmem:[#allocation5 + $0x3b0] sm:$0xff]
    %v1607 = vld [vmem:[#allocation5 + $0x3b8] sm:$0xff]
    %v1608 = vld [vmem:[#allocation5 + $0x3c0] sm:$0xff]
    %v1609 = vld [vmem:[#allocation5 + $0x3c8] sm:$0xff]
    %v1610 = vld [vmem:[#allocation5 + $0x3d0] sm:$0xff]
    %v1611 = vld [vmem:[#allocation5 + $0x3d8] sm:$0xff]
    %v1612 = vld [vmem:[#allocation5 + $0x3e0] sm:$0xff]
    %v1613 = vld [vmem:[#allocation5 + $0x3e8] sm:$0xff]
    %v1614 = vld [vmem:[#allocation5 + $0x3f0] sm:$0xff]
    %v1615 = vld [vmem:[#allocation5 + $0x3f8] sm:$0xff]
    %v1616 = vld [vmem:[#allocation5 + $0x400] sm:$0xff]
    %v1617 = vld [vmem:[#allocation5 + $0x408] sm:$0xff]
    %v1618 = vld [vmem:[#allocation5 + $0x410] sm:$0xff]
    %v1619 = vld [vmem:[#allocation5 + $0x418] sm:$0xff]
    %v1620 = vld [vmem:[#allocation5 + $0x420] sm:$0xff]
    %v1621 = vld [vmem:[#allocation5 + $0x428] sm:$0xff]
    %v1622 = vld [vmem:[#allocation5 + $0x430] sm:$0xff]
    %v1623 = vld [vmem:[#allocation5 + $0x438] sm:$0xff]
    %v1624 = vld [vmem:[#allocation5 + $0x440] sm:$0xff]
    %v1625 = vld [vmem:[#allocation5 + $0x448] sm:$0xff]
    %v1626 = vld [vmem:[#allocation5 + $0x450] sm:$0xff]
    %v1627 = vld [vmem:[#allocation5 + $0x458] sm:$0xff]
    %v1628 = vld [vmem:[#allocation5 + $0x460] sm:$0xff]
    %v1629 = vld [vmem:[#allocation5 + $0x468] sm:$0xff]
    %v1630 = vld [vmem:[#allocation5 + $0x470] sm:$0xff]
    %v1631 = vld [vmem:[#allocation5 + $0x478] sm:$0xff]
    %v1632 = vld [vmem:[#allocation5 + $0x480] sm:$0xff]
    %v1633 = vld [vmem:[#allocation5 + $0x488] sm:$0xff]
    %v1634 = vld [vmem:[#allocation5 + $0x490] sm:$0xff]
    %v1635 = vld [vmem:[#allocation5 + $0x498] sm:$0xff]
    %v1636 = vld [vmem:[#allocation5 + $0x4a0] sm:$0xff]
    %v1637 = vld [vmem:[#allocation5 + $0x4a8] sm:$0xff]
    %v1638 = vld [vmem:[#allocation5 + $0x4b0] sm:$0xff]
    %v1639 = vld [vmem:[#allocation5 + $0x4b8] sm:$0xff]
    %v1640 = vld [vmem:[#allocation5 + $0x4c0] sm:$0xff]
    %v1641 = vld [vmem:[#allocation5 + $0x4c8] sm:$0xff]
    %v1642 = vld [vmem:[#allocation5 + $0x4d0] sm:$0xff]
    %v1643 = vld [vmem:[#allocation5 + $0x4d8] sm:$0xff]
    %v1644 = vld [vmem:[#allocation5 + $0x4e0] sm:$0xff]
    %v1645 = vld [vmem:[#allocation5 + $0x4e8] sm:$0xff]
    %v1646 = vld [vmem:[#allocation5 + $0x4f0] sm:$0xff]
    %v1647 = vld [vmem:[#allocation5 + $0x4f8] sm:$0xff]
    %v1648 = vld [vmem:[#allocation5 + $0x500] sm:$0xff]
    %v1649 = vld [vmem:[#allocation5 + $0x508] sm:$0xff]
    %v1650 = vld [vmem:[#allocation5 + $0x510] sm:$0xff]
    %v1651 = vld [vmem:[#allocation5 + $0x518] sm:$0xff]
    %v1652 = vld [vmem:[#allocation5 + $0x520] sm:$0xff]
    %v1653 = vld [vmem:[#allocation5 + $0x528] sm:$0xff]
    %v1654 = vld [vmem:[#allocation5 + $0x530] sm:$0xff]
    %v1655 = vld [vmem:[#allocation5 + $0x538] sm:$0xff]
    %v1656 = vld [vmem:[#allocation5 + $0x540] sm:$0xff]
    %v1657 = vld [vmem:[#allocation5 + $0x548] sm:$0xff]
    %v1658 = vld [vmem:[#allocation5 + $0x550] sm:$0xff]
    %v1659 = vld [vmem:[#allocation5 + $0x558] sm:$0xff]
    %v1660 = vld [vmem:[#allocation5 + $0x560] sm:$0xff]
    %v1661 = vld [vmem:[#allocation5 + $0x568] sm:$0xff]
    %v1662 = vld [vmem:[#allocation5 + $0x570] sm:$0xff]
    %v1663 = vld [vmem:[#allocation5 + $0x578] sm:$0xff]
    %v1664 = vld [vmem:[#allocation5 + $0x580] sm:$0xff]
    %v1665 = vld [vmem:[#allocation5 + $0x588] sm:$0xff]
    %v1666 = vld [vmem:[#allocation5 + $0x590] sm:$0xff]
    %v1667 = vld [vmem:[#allocation5 + $0x598] sm:$0xff]
    %v1668 = vld [vmem:[#allocation5 + $0x5a0] sm:$0xff]
    %v1669 = vld [vmem:[#allocation5 + $0x5a8] sm:$0xff]
    %v1670 = vld [vmem:[#allocation5 + $0x5b0] sm:$0xff]
    %v1671 = vld [vmem:[#allocation5 + $0x5b8] sm:$0xff]
    %v1672 = vld [vmem:[#allocation5 + $0x5c0] sm:$0xff]
    %v1673 = vld [vmem:[#allocation5 + $0x5c8] sm:$0xff]
    %v1674 = vld [vmem:[#allocation5 + $0x5d0] sm:$0xff]
    %v1675 = vld [vmem:[#allocation5 + $0x5d8] sm:$0xff]
    %v1676 = vld [vmem:[#allocation5 + $0x5e0] sm:$0xff]
    %v1677 = vld [vmem:[#allocation5 + $0x5e8] sm:$0xff]
    %v1678 = vld [vmem:[#allocation5 + $0x5f0] sm:$0xff]
    %v1679 = vld [vmem:[#allocation5 + $0x5f8] sm:$0xff]
    %v1680 = vld [vmem:[#allocation5 + $0x600] sm:$0xff]
    %v1681 = vld [vmem:[#allocation5 + $0x608] sm:$0xff]
    %v1682 = vld [vmem:[#allocation5 + $0x610] sm:$0xff]
    %v1683 = vld [vmem:[#allocation5 + $0x618] sm:$0xff]
    %v1684 = vld [vmem:[#allocation5 + $0x620] sm:$0xff]
    %v1685 = vld [vmem:[#allocation5 + $0x628] sm:$0xff]
    %v1686 = vld [vmem:[#allocation5 + $0x630] sm:$0xff]
    %v1687 = vld [vmem:[#allocation5 + $0x638] sm:$0xff]
    %v1688 = vld [vmem:[#allocation5 + $0x640] sm:$0xff]
    %v1689 = vld [vmem:[#allocation5 + $0x648] sm:$0xff]
    %v1690 = vld [vmem:[#allocation5 + $0x650] sm:$0xff]
    %v1691 = vld [vmem:[#allocation5 + $0x658] sm:$0xff]
    %v1692 = vld [vmem:[#allocation5 + $0x660] sm:$0xff]
    %v1693 = vld [vmem:[#allocation5 + $0x668] sm:$0xff]
    %v1694 = vld [vmem:[#allocation5 + $0x670] sm:$0xff]
    %v1695 = vld [vmem:[#allocation5 + $0x678] sm:$0xff]
    %v1696 = vld [vmem:[#allocation5 + $0x680] sm:$0xff]
    %v1697 = vld [vmem:[#allocation5 + $0x688] sm:$0xff]
    %v1698 = vld [vmem:[#allocation5 + $0x690] sm:$0xff]
    %v1699 = vld [vmem:[#allocation5 + $0x698] sm:$0xff]
    %v1700 = vld [vmem:[#allocation5 + $0x6a0] sm:$0xff]
    %v1701 = vld [vmem:[#allocation5 + $0x6a8] sm:$0xff]
    %v1702 = vld [vmem:[#allocation5 + $0x6b0] sm:$0xff]
    %v1703 = vld [vmem:[#allocation5 + $0x6b8] sm:$0xff]
    %v1704 = vld [vmem:[#allocation5 + $0x6c0] sm:$0xff]
    %v1705 = vld [vmem:[#allocation5 + $0x6c8] sm:$0xff]
    %v1706 = vld [vmem:[#allocation5 + $0x6d0] sm:$0xff]
    %v1707 = vld [vmem:[#allocation5 + $0x6d8] sm:$0xff]
    %v1708 = vld [vmem:[#allocation5 + $0x6e0] sm:$0xff]
    %v1709 = vld [vmem:[#allocation5 + $0x6e8] sm:$0xff]
    %v1710 = vld [vmem:[#allocation5 + $0x6f0] sm:$0xff]
    %v1711 = vld [vmem:[#allocation5 + $0x6f8] sm:$0xff]
    %v1712 = vld [vmem:[#allocation5 + $0x700] sm:$0xff]
    %v1713 = vld [vmem:[#allocation5 + $0x708] sm:$0xff]
    %v1714 = vld [vmem:[#allocation5 + $0x710] sm:$0xff]
    %v1715 = vld [vmem:[#allocation5 + $0x718] sm:$0xff]
    %v1716 = vld [vmem:[#allocation5 + $0x720] sm:$0xff]
    %v1717 = vld [vmem:[#allocation5 + $0x728] sm:$0xff]
    %v1718 = vld [vmem:[#allocation5 + $0x730] sm:$0xff]
    %v1719 = vld [vmem:[#allocation5 + $0x738] sm:$0xff]
    %v1720 = vld [vmem:[#allocation5 + $0x740] sm:$0xff]
    %v1721 = vld [vmem:[#allocation5 + $0x748] sm:$0xff]
    %v1722 = vld [vmem:[#allocation5 + $0x750] sm:$0xff]
    %v1723 = vld [vmem:[#allocation5 + $0x758] sm:$0xff]
    %v1724 = vld [vmem:[#allocation5 + $0x760] sm:$0xff]
    %v1725 = vld [vmem:[#allocation5 + $0x768] sm:$0xff]
    %v1726 = vld [vmem:[#allocation5 + $0x770] sm:$0xff]
    %v1727 = vld [vmem:[#allocation5 + $0x778] sm:$0xff]
    %v1728 = vld [vmem:[#allocation5 + $0x780] sm:$0xff]
    %v1729 = vld [vmem:[#allocation5 + $0x788] sm:$0xff]
    %v1730 = vld [vmem:[#allocation5 + $0x790] sm:$0xff]
    %v1731 = vld [vmem:[#allocation5 + $0x798] sm:$0xff]
    %v1732 = vld [vmem:[#allocation5 + $0x7a0] sm:$0xff]
    %v1733 = vld [vmem:[#allocation5 + $0x7a8] sm:$0xff]
    %v1734 = vld [vmem:[#allocation5 + $0x7b0] sm:$0xff]
    %v1735 = vld [vmem:[#allocation5 + $0x7b8] sm:$0xff]
    %v1736 = vld [vmem:[#allocation5 + $0x7c0] sm:$0xff]
    %v1737 = vld [vmem:[#allocation5 + $0x7c8] sm:$0xff]
    %v1738 = vld [vmem:[#allocation5 + $0x7d0] sm:$0xff]
    %v1739 = vld [vmem:[#allocation5 + $0x7d8] sm:$0xff]
    %v1740 = vld [vmem:[#allocation5 + $0x7e0] sm:$0xff]
    %v1741 = vld [vmem:[#allocation5 + $0x7e8] sm:$0xff]
    %v1742 = vld [vmem:[#allocation5 + $0x7f0] sm:$0xff]
    %v1743 = vld [vmem:[#allocation5 + $0x7f8] sm:$0xff]
    %v1744 = vld [vmem:[%s6] sm:$0xf]
    %v1746 = vperm.slane %v1744, 0
    %v1747 = vperm.slane %v1744, 1
    %v1748 = vperm.slane %v1744, 2
    %v1749 = vperm.slane %v1744, 3
    %v1770 = vunpack.c.l.b16 %v1472
    %v1771 = vunpack.c.l.b16 %v1473
    %v1772 = vunpack.c.l.b16 %v1474
    %v1773 = vunpack.c.l.b16 %v1475
    %v1774 = vunpack.c.l.b16 %v1476
    %v1775 = vunpack.c.l.b16 %v1477
    %v1776 = vunpack.c.l.b16 %v1478
    %v1777 = vunpack.c.l.b16 %v1479
    %v1778 = vunpack.c.l.b16 %v1480
    %v1779 = vunpack.c.l.b16 %v1481
    %v1780 = vunpack.c.l.b16 %v1482
    %v1781 = vunpack.c.l.b16 %v1483
    %v1782 = vunpack.c.l.b16 %v1484
    %v1783 = vunpack.c.l.b16 %v1485
    %v1784 = vunpack.c.l.b16 %v1486
    %v1785 = vunpack.c.l.b16 %v1487
    %v1786 = vrot.slane %v1778, 7
    %vm1787 = vcmask 1041409
    %v1788 = vsel %vm1787, %v1786, %v1770
    %v1789 = vrot.slane %v1779, 7
    %v1790 = vsel %vm1787, %v1789, %v1771
    %v1791 = vrot.slane %v1780, 7
    %v1792 = vsel %vm1787, %v1791, %v1772
    %v1793 = vrot.slane %v1781, 7
    %v1794 = vsel %vm1787, %v1793, %v1773
    %v1795 = vrot.slane %v1782, 7
    %v1796 = vsel %vm1787, %v1795, %v1774
    %v1797 = vrot.slane %v1783, 7
    %v1798 = vsel %vm1787, %v1797, %v1775
    %v1799 = vrot.slane %v1784, 7
    %v1800 = vsel %vm1787, %v1799, %v1776
    %v1801 = vrot.slane %v1785, 7
    %v1802 = vsel %vm1787, %v1801, %v1777
    %v1803 = vpack.c.b16 %v1788, %v1788
    %v1804 = vpack.c.b16 %v1790, %v1790
    %v1805 = vpack.c.b16 %v1792, %v1792
    %v1806 = vpack.c.b16 %v1794, %v1794
    %v1807 = vpack.c.b16 %v1796, %v1796
    %v1808 = vpack.c.b16 %v1798, %v1798
    %v1809 = vpack.c.b16 %v1800, %v1800
    %v1810 = vpack.c.b16 %v1802, %v1802
    %v2075 = vunpack.c.l.b16 %v1488
    %v2076 = vunpack.c.h.b16 %v1488
    %v2077 = vunpack.c.l.b16 %v1489
    %v2078 = vunpack.c.h.b16 %v1489
    %v2079 = vunpack.c.l.b16 %v1490
    %v2080 = vunpack.c.h.b16 %v1490
    %v2081 = vunpack.c.l.b16 %v1491
    %v2082 = vunpack.c.h.b16 %v1491
    %v2083 = vunpack.c.l.b16 %v1492
    %v2084 = vunpack.c.h.b16 %v1492
    %v2085 = vunpack.c.l.b16 %v1493
    %v2086 = vunpack.c.h.b16 %v1493
    %v2087 = vunpack.c.l.b16 %v1494
    %v2088 = vunpack.c.h.b16 %v1494
    %v2089 = vunpack.c.l.b16 %v1495
    %v2090 = vunpack.c.h.b16 %v1495
    %v2091 = vunpack.c.l.b16 %v1496
    %v2092 = vunpack.c.h.b16 %v1496
    %v2093 = vunpack.c.l.b16 %v1497
    %v2094 = vunpack.c.h.b16 %v1497
    %v2095 = vunpack.c.l.b16 %v1498
    %v2096 = vunpack.c.h.b16 %v1498
    %v2097 = vunpack.c.l.b16 %v1499
    %v2098 = vunpack.c.h.b16 %v1499
    %v2099 = vunpack.c.l.b16 %v1500
    %v2100 = vunpack.c.h.b16 %v1500
    %v2101 = vunpack.c.l.b16 %v1501
    %v2102 = vunpack.c.h.b16 %v1501
    %v2103 = vunpack.c.l.b16 %v1502
    %v2104 = vunpack.c.h.b16 %v1502
    %v2105 = vunpack.c.l.b16 %v1503
    %v2106 = vunpack.c.h.b16 %v1503
    %v2107 = vunpack.c.l.b16 %v1504
    %v2108 = vunpack.c.h.b16 %v1504
    %v2109 = vunpack.c.l.b16 %v1505
    %v2110 = vunpack.c.h.b16 %v1505
    %v2111 = vunpack.c.l.b16 %v1506
    %v2112 = vunpack.c.h.b16 %v1506
    %v2113 = vunpack.c.l.b16 %v1507
    %v2114 = vunpack.c.h.b16 %v1507
    %v2115 = vunpack.c.l.b16 %v1508
    %v2116 = vunpack.c.h.b16 %v1508
    %v2117 = vunpack.c.l.b16 %v1509
    %v2118 = vunpack.c.h.b16 %v1509
    %v2119 = vunpack.c.l.b16 %v1510
    %v2120 = vunpack.c.h.b16 %v1510
    %v2121 = vunpack.c.l.b16 %v1511
    %v2122 = vunpack.c.h.b16 %v1511
    %v2123 = vunpack.c.l.b16 %v1512
    %v2124 = vunpack.c.h.b16 %v1512
    %v2125 = vunpack.c.l.b16 %v1513
    %v2126 = vunpack.c.h.b16 %v1513
    %v2127 = vunpack.c.l.b16 %v1514
    %v2128 = vunpack.c.h.b16 %v1514
    %v2129 = vunpack.c.l.b16 %v1515
    %v2130 = vunpack.c.h.b16 %v1515
    %v2131 = vunpack.c.l.b16 %v1516
    %v2132 = vunpack.c.h.b16 %v1516
    %v2133 = vunpack.c.l.b16 %v1517
    %v2134 = vunpack.c.h.b16 %v1517
    %v2135 = vunpack.c.l.b16 %v1518
    %v2136 = vunpack.c.h.b16 %v1518
    %v2137 = vunpack.c.l.b16 %v1519
    %v2138 = vunpack.c.h.b16 %v1519
    %v2139 = vunpack.c.l.b16 %v1520
    %v2140 = vunpack.c.h.b16 %v1520
    %v2141 = vunpack.c.l.b16 %v1521
    %v2142 = vunpack.c.h.b16 %v1521
    %v2143 = vunpack.c.l.b16 %v1522
    %v2144 = vunpack.c.h.b16 %v1522
    %v2145 = vunpack.c.l.b16 %v1523
    %v2146 = vunpack.c.h.b16 %v1523
    %v2147 = vunpack.c.l.b16 %v1524
    %v2148 = vunpack.c.h.b16 %v1524
    %v2149 = vunpack.c.l.b16 %v1525
    %v2150 = vunpack.c.h.b16 %v1525
    %v2151 = vunpack.c.l.b16 %v1526
    %v2152 = vunpack.c.h.b16 %v1526
    %v2153 = vunpack.c.l.b16 %v1527
    %v2154 = vunpack.c.h.b16 %v1527
    %v2155 = vunpack.c.l.b16 %v1528
    %v2156 = vunpack.c.h.b16 %v1528
    %v2157 = vunpack.c.l.b16 %v1529
    %v2158 = vunpack.c.h.b16 %v1529
    %v2159 = vunpack.c.l.b16 %v1530
    %v2160 = vunpack.c.h.b16 %v1530
    %v2161 = vunpack.c.l.b16 %v1531
    %v2162 = vunpack.c.h.b16 %v1531
    %v2163 = vunpack.c.l.b16 %v1532
    %v2164 = vunpack.c.h.b16 %v1532
    %v2165 = vunpack.c.l.b16 %v1533
    %v2166 = vunpack.c.h.b16 %v1533
    %v2167 = vunpack.c.l.b16 %v1534
    %v2168 = vunpack.c.h.b16 %v1534
    %v2169 = vunpack.c.l.b16 %v1535
    %v2170 = vunpack.c.h.b16 %v1535
    %v2171 = vunpack.c.l.b16 %v1536
    %v2172 = vunpack.c.h.b16 %v1536
    %v2173 = vunpack.c.l.b16 %v1537
    %v2174 = vunpack.c.h.b16 %v1537
    %v2175 = vunpack.c.l.b16 %v1538
    %v2176 = vunpack.c.h.b16 %v1538
    %v2177 = vunpack.c.l.b16 %v1539
    %v2178 = vunpack.c.h.b16 %v1539
    %v2179 = vunpack.c.l.b16 %v1540
    %v2180 = vunpack.c.h.b16 %v1540
    %v2181 = vunpack.c.l.b16 %v1541
    %v2182 = vunpack.c.h.b16 %v1541
    %v2183 = vunpack.c.l.b16 %v1542
    %v2184 = vunpack.c.h.b16 %v1542
    %v2185 = vunpack.c.l.b16 %v1543
    %v2186 = vunpack.c.h.b16 %v1543
    %v2187 = vunpack.c.l.b16 %v1544
    %v2188 = vunpack.c.h.b16 %v1544
    %v2189 = vunpack.c.l.b16 %v1545
    %v2190 = vunpack.c.h.b16 %v1545
    %v2191 = vunpack.c.l.b16 %v1546
    %v2192 = vunpack.c.h.b16 %v1546
    %v2193 = vunpack.c.l.b16 %v1547
    %v2194 = vunpack.c.h.b16 %v1547
    %v2195 = vunpack.c.l.b16 %v1548
    %v2196 = vunpack.c.h.b16 %v1548
    %v2197 = vunpack.c.l.b16 %v1549
    %v2198 = vunpack.c.h.b16 %v1549
    %v2199 = vunpack.c.l.b16 %v1550
    %v2200 = vunpack.c.h.b16 %v1550
    %v2201 = vunpack.c.l.b16 %v1551
    %v2202 = vunpack.c.h.b16 %v1551
    %v2203 = vunpack.c.l.b16 %v1552
    %v2204 = vunpack.c.h.b16 %v1552
    %v2205 = vunpack.c.l.b16 %v1553
    %v2206 = vunpack.c.h.b16 %v1553
    %v2207 = vunpack.c.l.b16 %v1554
    %v2208 = vunpack.c.h.b16 %v1554
    %v2209 = vunpack.c.l.b16 %v1555
    %v2210 = vunpack.c.h.b16 %v1555
    %v2211 = vunpack.c.l.b16 %v1556
    %v2212 = vunpack.c.h.b16 %v1556
    %v2213 = vunpack.c.l.b16 %v1557
    %v2214 = vunpack.c.h.b16 %v1557
    %v2215 = vunpack.c.l.b16 %v1558
    %v2216 = vunpack.c.h.b16 %v1558
    %v2217 = vunpack.c.l.b16 %v1559
    %v2218 = vunpack.c.h.b16 %v1559
    %v2219 = vunpack.c.l.b16 %v1560
    %v2220 = vunpack.c.h.b16 %v1560
    %v2221 = vunpack.c.l.b16 %v1561
    %v2222 = vunpack.c.h.b16 %v1561
    %v2223 = vunpack.c.l.b16 %v1562
    %v2224 = vunpack.c.h.b16 %v1562
    %v2225 = vunpack.c.l.b16 %v1563
    %v2226 = vunpack.c.h.b16 %v1563
    %v2227 = vunpack.c.l.b16 %v1564
    %v2228 = vunpack.c.h.b16 %v1564
    %v2229 = vunpack.c.l.b16 %v1565
    %v2230 = vunpack.c.h.b16 %v1565
    %v2231 = vunpack.c.l.b16 %v1566
    %v2232 = vunpack.c.h.b16 %v1566
    %v2233 = vunpack.c.l.b16 %v1567
    %v2234 = vunpack.c.h.b16 %v1567
    %v2235 = vunpack.c.l.b16 %v1568
    %v2236 = vunpack.c.h.b16 %v1568
    %v2237 = vunpack.c.l.b16 %v1569
    %v2238 = vunpack.c.h.b16 %v1569
    %v2239 = vunpack.c.l.b16 %v1570
    %v2240 = vunpack.c.h.b16 %v1570
    %v2241 = vunpack.c.l.b16 %v1571
    %v2242 = vunpack.c.h.b16 %v1571
    %v2243 = vunpack.c.l.b16 %v1572
    %v2244 = vunpack.c.h.b16 %v1572
    %v2245 = vunpack.c.l.b16 %v1573
    %v2246 = vunpack.c.h.b16 %v1573
    %v2247 = vunpack.c.l.b16 %v1574
    %v2248 = vunpack.c.h.b16 %v1574
    %v2249 = vunpack.c.l.b16 %v1575
    %v2250 = vunpack.c.h.b16 %v1575
    %v2251 = vunpack.c.l.b16 %v1576
    %v2252 = vunpack.c.h.b16 %v1576
    %v2253 = vunpack.c.l.b16 %v1577
    %v2254 = vunpack.c.h.b16 %v1577
    %v2255 = vunpack.c.l.b16 %v1578
    %v2256 = vunpack.c.h.b16 %v1578
    %v2257 = vunpack.c.l.b16 %v1579
    %v2258 = vunpack.c.h.b16 %v1579
    %v2259 = vunpack.c.l.b16 %v1580
    %v2260 = vunpack.c.h.b16 %v1580
    %v2261 = vunpack.c.l.b16 %v1581
    %v2262 = vunpack.c.h.b16 %v1581
    %v2263 = vunpack.c.l.b16 %v1582
    %v2264 = vunpack.c.h.b16 %v1582
    %v2265 = vunpack.c.l.b16 %v1583
    %v2266 = vunpack.c.h.b16 %v1583
    %v2267 = vunpack.c.l.b16 %v1584
    %v2268 = vunpack.c.h.b16 %v1584
    %v2269 = vunpack.c.l.b16 %v1585
    %v2270 = vunpack.c.h.b16 %v1585
    %v2271 = vunpack.c.l.b16 %v1586
    %v2272 = vunpack.c.h.b16 %v1586
    %v2273 = vunpack.c.l.b16 %v1587
    %v2274 = vunpack.c.h.b16 %v1587
    %v2275 = vunpack.c.l.b16 %v1588
    %v2276 = vunpack.c.h.b16 %v1588
    %v2277 = vunpack.c.l.b16 %v1589
    %v2278 = vunpack.c.h.b16 %v1589
    %v2279 = vunpack.c.l.b16 %v1590
    %v2280 = vunpack.c.h.b16 %v1590
    %v2281 = vunpack.c.l.b16 %v1591
    %v2282 = vunpack.c.h.b16 %v1591
    %v2283 = vunpack.c.l.b16 %v1592
    %v2284 = vunpack.c.h.b16 %v1592
    %v2285 = vunpack.c.l.b16 %v1593
    %v2286 = vunpack.c.h.b16 %v1593
    %v2287 = vunpack.c.l.b16 %v1594
    %v2288 = vunpack.c.h.b16 %v1594
    %v2289 = vunpack.c.l.b16 %v1595
    %v2290 = vunpack.c.h.b16 %v1595
    %v2291 = vunpack.c.l.b16 %v1596
    %v2292 = vunpack.c.h.b16 %v1596
    %v2293 = vunpack.c.l.b16 %v1597
    %v2294 = vunpack.c.h.b16 %v1597
    %v2295 = vunpack.c.l.b16 %v1598
    %v2296 = vunpack.c.h.b16 %v1598
    %v2297 = vunpack.c.l.b16 %v1599
    %v2298 = vunpack.c.h.b16 %v1599
    %v2299 = vunpack.c.l.b16 %v1600
    %v2300 = vunpack.c.h.b16 %v1600
    %v2301 = vunpack.c.l.b16 %v1601
    %v2302 = vunpack.c.h.b16 %v1601
    %v2303 = vunpack.c.l.b16 %v1602
    %v2304 = vunpack.c.h.b16 %v1602
    %v2305 = vunpack.c.l.b16 %v1603
    %v2306 = vunpack.c.h.b16 %v1603
    %v2307 = vunpack.c.l.b16 %v1604
    %v2308 = vunpack.c.h.b16 %v1604
    %v2309 = vunpack.c.l.b16 %v1605
    %v2310 = vunpack.c.h.b16 %v1605
    %v2311 = vunpack.c.l.b16 %v1606
    %v2312 = vunpack.c.h.b16 %v1606
    %v2313 = vunpack.c.l.b16 %v1607
    %v2314 = vunpack.c.h.b16 %v1607
    %v2315 = vunpack.c.l.b16 %v1608
    %v2316 = vunpack.c.h.b16 %v1608
    %v2317 = vunpack.c.l.b16 %v1609
    %v2318 = vunpack.c.h.b16 %v1609
    %v2319 = vunpack.c.l.b16 %v1610
    %v2320 = vunpack.c.h.b16 %v1610
    %v2321 = vunpack.c.l.b16 %v1611
    %v2322 = vunpack.c.h.b16 %v1611
    %v2323 = vunpack.c.l.b16 %v1612
    %v2324 = vunpack.c.h.b16 %v1612
    %v2325 = vunpack.c.l.b16 %v1613
    %v2326 = vunpack.c.h.b16 %v1613
    %v2327 = vunpack.c.l.b16 %v1614
    %v2328 = vunpack.c.h.b16 %v1614
    %v2329 = vunpack.c.l.b16 %v1615
    %v2330 = vunpack.c.h.b16 %v1615
    %v2331 = vunpack.c.l.b16 %v1616
    %v2332 = vunpack.c.h.b16 %v1616
    %v2333 = vunpack.c.l.b16 %v1617
    %v2334 = vunpack.c.h.b16 %v1617
    %v2335 = vunpack.c.l.b16 %v1618
    %v2336 = vunpack.c.h.b16 %v1618
    %v2337 = vunpack.c.l.b16 %v1619
    %v2338 = vunpack.c.h.b16 %v1619
    %v2339 = vunpack.c.l.b16 %v1620
    %v2340 = vunpack.c.h.b16 %v1620
    %v2341 = vunpack.c.l.b16 %v1621
    %v2342 = vunpack.c.h.b16 %v1621
    %v2343 = vunpack.c.l.b16 %v1622
    %v2344 = vunpack.c.h.b16 %v1622
    %v2345 = vunpack.c.l.b16 %v1623
    %v2346 = vunpack.c.h.b16 %v1623
    %v2347 = vunpack.c.l.b16 %v1624
    %v2348 = vunpack.c.h.b16 %v1624
    %v2349 = vunpack.c.l.b16 %v1625
    %v2350 = vunpack.c.h.b16 %v1625
    %v2351 = vunpack.c.l.b16 %v1626
    %v2352 = vunpack.c.h.b16 %v1626
    %v2353 = vunpack.c.l.b16 %v1627
    %v2354 = vunpack.c.h.b16 %v1627
    %v2355 = vunpack.c.l.b16 %v1628
    %v2356 = vunpack.c.h.b16 %v1628
    %v2357 = vunpack.c.l.b16 %v1629
    %v2358 = vunpack.c.h.b16 %v1629
    %v2359 = vunpack.c.l.b16 %v1630
    %v2360 = vunpack.c.h.b16 %v1630
    %v2361 = vunpack.c.l.b16 %v1631
    %v2362 = vunpack.c.h.b16 %v1631
    %v2363 = vunpack.c.l.b16 %v1632
    %v2364 = vunpack.c.h.b16 %v1632
    %v2365 = vunpack.c.l.b16 %v1633
    %v2366 = vunpack.c.h.b16 %v1633
    %v2367 = vunpack.c.l.b16 %v1634
    %v2368 = vunpack.c.h.b16 %v1634
    %v2369 = vunpack.c.l.b16 %v1635
    %v2370 = vunpack.c.h.b16 %v1635
    %v2371 = vunpack.c.l.b16 %v1636
    %v2372 = vunpack.c.h.b16 %v1636
    %v2373 = vunpack.c.l.b16 %v1637
    %v2374 = vunpack.c.h.b16 %v1637
    %v2375 = vunpack.c.l.b16 %v1638
    %v2376 = vunpack.c.h.b16 %v1638
    %v2377 = vunpack.c.l.b16 %v1639
    %v2378 = vunpack.c.h.b16 %v1639
    %v2379 = vunpack.c.l.b16 %v1640
    %v2380 = vunpack.c.h.b16 %v1640
    %v2381 = vunpack.c.l.b16 %v1641
    %v2382 = vunpack.c.h.b16 %v1641
    %v2383 = vunpack.c.l.b16 %v1642
    %v2384 = vunpack.c.h.b16 %v1642
    %v2385 = vunpack.c.l.b16 %v1643
    %v2386 = vunpack.c.h.b16 %v1643
    %v2387 = vunpack.c.l.b16 %v1644
    %v2388 = vunpack.c.h.b16 %v1644
    %v2389 = vunpack.c.l.b16 %v1645
    %v2390 = vunpack.c.h.b16 %v1645
    %v2391 = vunpack.c.l.b16 %v1646
    %v2392 = vunpack.c.h.b16 %v1646
    %v2393 = vunpack.c.l.b16 %v1647
    %v2394 = vunpack.c.h.b16 %v1647
    %v2395 = vunpack.c.l.b16 %v1648
    %v2396 = vunpack.c.h.b16 %v1648
    %v2397 = vunpack.c.l.b16 %v1649
    %v2398 = vunpack.c.h.b16 %v1649
    %v2399 = vunpack.c.l.b16 %v1650
    %v2400 = vunpack.c.h.b16 %v1650
    %v2401 = vunpack.c.l.b16 %v1651
    %v2402 = vunpack.c.h.b16 %v1651
    %v2403 = vunpack.c.l.b16 %v1652
    %v2404 = vunpack.c.h.b16 %v1652
    %v2405 = vunpack.c.l.b16 %v1653
    %v2406 = vunpack.c.h.b16 %v1653
    %v2407 = vunpack.c.l.b16 %v1654
    %v2408 = vunpack.c.h.b16 %v1654
    %v2409 = vunpack.c.l.b16 %v1655
    %v2410 = vunpack.c.h.b16 %v1655
    %v2411 = vunpack.c.l.b16 %v1656
    %v2412 = vunpack.c.h.b16 %v1656
    %v2413 = vunpack.c.l.b16 %v1657
    %v2414 = vunpack.c.h.b16 %v1657
    %v2415 = vunpack.c.l.b16 %v1658
    %v2416 = vunpack.c.h.b16 %v1658
    %v2417 = vunpack.c.l.b16 %v1659
    %v2418 = vunpack.c.h.b16 %v1659
    %v2419 = vunpack.c.l.b16 %v1660
    %v2420 = vunpack.c.h.b16 %v1660
    %v2421 = vunpack.c.l.b16 %v1661
    %v2422 = vunpack.c.h.b16 %v1661
    %v2423 = vunpack.c.l.b16 %v1662
    %v2424 = vunpack.c.h.b16 %v1662
    %v2425 = vunpack.c.l.b16 %v1663
    %v2426 = vunpack.c.h.b16 %v1663
    %v2427 = vunpack.c.l.b16 %v1664
    %v2428 = vunpack.c.h.b16 %v1664
    %v2429 = vunpack.c.l.b16 %v1665
    %v2430 = vunpack.c.h.b16 %v1665
    %v2431 = vunpack.c.l.b16 %v1666
    %v2432 = vunpack.c.h.b16 %v1666
    %v2433 = vunpack.c.l.b16 %v1667
    %v2434 = vunpack.c.h.b16 %v1667
    %v2435 = vunpack.c.l.b16 %v1668
    %v2436 = vunpack.c.h.b16 %v1668
    %v2437 = vunpack.c.l.b16 %v1669
    %v2438 = vunpack.c.h.b16 %v1669
    %v2439 = vunpack.c.l.b16 %v1670
    %v2440 = vunpack.c.h.b16 %v1670
    %v2441 = vunpack.c.l.b16 %v1671
    %v2442 = vunpack.c.h.b16 %v1671
    %v2443 = vunpack.c.l.b16 %v1672
    %v2444 = vunpack.c.h.b16 %v1672
    %v2445 = vunpack.c.l.b16 %v1673
    %v2446 = vunpack.c.h.b16 %v1673
    %v2447 = vunpack.c.l.b16 %v1674
    %v2448 = vunpack.c.h.b16 %v1674
    %v2449 = vunpack.c.l.b16 %v1675
    %v2450 = vunpack.c.h.b16 %v1675
    %v2451 = vunpack.c.l.b16 %v1676
    %v2452 = vunpack.c.h.b16 %v1676
    %v2453 = vunpack.c.l.b16 %v1677
    %v2454 = vunpack.c.h.b16 %v1677
    %v2455 = vunpack.c.l.b16 %v1678
    %v2456 = vunpack.c.h.b16 %v1678
    %v2457 = vunpack.c.l.b16 %v1679
    %v2458 = vunpack.c.h.b16 %v1679
    %v2459 = vunpack.c.l.b16 %v1680
    %v2460 = vunpack.c.h.b16 %v1680
    %v2461 = vunpack.c.l.b16 %v1681
    %v2462 = vunpack.c.h.b16 %v1681
    %v2463 = vunpack.c.l.b16 %v1682
    %v2464 = vunpack.c.h.b16 %v1682
    %v2465 = vunpack.c.l.b16 %v1683
    %v2466 = vunpack.c.h.b16 %v1683
    %v2467 = vunpack.c.l.b16 %v1684
    %v2468 = vunpack.c.h.b16 %v1684
    %v2469 = vunpack.c.l.b16 %v1685
    %v2470 = vunpack.c.h.b16 %v1685
    %v2471 = vunpack.c.l.b16 %v1686
    %v2472 = vunpack.c.h.b16 %v1686
    %v2473 = vunpack.c.l.b16 %v1687
    %v2474 = vunpack.c.h.b16 %v1687
    %v2475 = vunpack.c.l.b16 %v1688
    %v2476 = vunpack.c.h.b16 %v1688
    %v2477 = vunpack.c.l.b16 %v1689
    %v2478 = vunpack.c.h.b16 %v1689
    %v2479 = vunpack.c.l.b16 %v1690
    %v2480 = vunpack.c.h.b16 %v1690
    %v2481 = vunpack.c.l.b16 %v1691
    %v2482 = vunpack.c.h.b16 %v1691
    %v2483 = vunpack.c.l.b16 %v1692
    %v2484 = vunpack.c.h.b16 %v1692
    %v2485 = vunpack.c.l.b16 %v1693
    %v2486 = vunpack.c.h.b16 %v1693
    %v2487 = vunpack.c.l.b16 %v1694
    %v2488 = vunpack.c.h.b16 %v1694
    %v2489 = vunpack.c.l.b16 %v1695
    %v2490 = vunpack.c.h.b16 %v1695
    %v2491 = vunpack.c.l.b16 %v1696
    %v2492 = vunpack.c.h.b16 %v1696
    %v2493 = vunpack.c.l.b16 %v1697
    %v2494 = vunpack.c.h.b16 %v1697
    %v2495 = vunpack.c.l.b16 %v1698
    %v2496 = vunpack.c.h.b16 %v1698
    %v2497 = vunpack.c.l.b16 %v1699
    %v2498 = vunpack.c.h.b16 %v1699
    %v2499 = vunpack.c.l.b16 %v1700
    %v2500 = vunpack.c.h.b16 %v1700
    %v2501 = vunpack.c.l.b16 %v1701
    %v2502 = vunpack.c.h.b16 %v1701
    %v2503 = vunpack.c.l.b16 %v1702
    %v2504 = vunpack.c.h.b16 %v1702
    %v2505 = vunpack.c.l.b16 %v1703
    %v2506 = vunpack.c.h.b16 %v1703
    %v2507 = vunpack.c.l.b16 %v1704
    %v2508 = vunpack.c.h.b16 %v1704
    %v2509 = vunpack.c.l.b16 %v1705
    %v2510 = vunpack.c.h.b16 %v1705
    %v2511 = vunpack.c.l.b16 %v1706
    %v2512 = vunpack.c.h.b16 %v1706
    %v2513 = vunpack.c.l.b16 %v1707
    %v2514 = vunpack.c.h.b16 %v1707
    %v2515 = vunpack.c.l.b16 %v1708
    %v2516 = vunpack.c.h.b16 %v1708
    %v2517 = vunpack.c.l.b16 %v1709
    %v2518 = vunpack.c.h.b16 %v1709
    %v2519 = vunpack.c.l.b16 %v1710
    %v2520 = vunpack.c.h.b16 %v1710
    %v2521 = vunpack.c.l.b16 %v1711
    %v2522 = vunpack.c.h.b16 %v1711
    %v2523 = vunpack.c.l.b16 %v1712
    %v2524 = vunpack.c.h.b16 %v1712
    %v2525 = vunpack.c.l.b16 %v1713
    %v2526 = vunpack.c.h.b16 %v1713
    %v2527 = vunpack.c.l.b16 %v1714
    %v2528 = vunpack.c.h.b16 %v1714
    %v2529 = vunpack.c.l.b16 %v1715
    %v2530 = vunpack.c.h.b16 %v1715
    %v2531 = vunpack.c.l.b16 %v1716
    %v2532 = vunpack.c.h.b16 %v1716
    %v2533 = vunpack.c.l.b16 %v1717
    %v2534 = vunpack.c.h.b16 %v1717
    %v2535 = vunpack.c.l.b16 %v1718
    %v2536 = vunpack.c.h.b16 %v1718
    %v2537 = vunpack.c.l.b16 %v1719
    %v2538 = vunpack.c.h.b16 %v1719
    %v2539 = vunpack.c.l.b16 %v1720
    %v2540 = vunpack.c.h.b16 %v1720
    %v2541 = vunpack.c.l.b16 %v1721
    %v2542 = vunpack.c.h.b16 %v1721
    %v2543 = vunpack.c.l.b16 %v1722
    %v2544 = vunpack.c.h.b16 %v1722
    %v2545 = vunpack.c.l.b16 %v1723
    %v2546 = vunpack.c.h.b16 %v1723
    %v2547 = vunpack.c.l.b16 %v1724
    %v2548 = vunpack.c.h.b16 %v1724
    %v2549 = vunpack.c.l.b16 %v1725
    %v2550 = vunpack.c.h.b16 %v1725
    %v2551 = vunpack.c.l.b16 %v1726
    %v2552 = vunpack.c.h.b16 %v1726
    %v2553 = vunpack.c.l.b16 %v1727
    %v2554 = vunpack.c.h.b16 %v1727
    %v2555 = vunpack.c.l.b16 %v1728
    %v2556 = vunpack.c.h.b16 %v1728
    %v2557 = vunpack.c.l.b16 %v1729
    %v2558 = vunpack.c.h.b16 %v1729
    %v2559 = vunpack.c.l.b16 %v1730
    %v2560 = vunpack.c.h.b16 %v1730
    %v2561 = vunpack.c.l.b16 %v1731
    %v2562 = vunpack.c.h.b16 %v1731
    %v2563 = vunpack.c.l.b16 %v1732
    %v2564 = vunpack.c.h.b16 %v1732
    %v2565 = vunpack.c.l.b16 %v1733
    %v2566 = vunpack.c.h.b16 %v1733
    %v2567 = vunpack.c.l.b16 %v1734
    %v2568 = vunpack.c.h.b16 %v1734
    %v2569 = vunpack.c.l.b16 %v1735
    %v2570 = vunpack.c.h.b16 %v1735
    %v2571 = vunpack.c.l.b16 %v1736
    %v2572 = vunpack.c.h.b16 %v1736
    %v2573 = vunpack.c.l.b16 %v1737
    %v2574 = vunpack.c.h.b16 %v1737
    %v2575 = vunpack.c.l.b16 %v1738
    %v2576 = vunpack.c.h.b16 %v1738
    %v2577 = vunpack.c.l.b16 %v1739
    %v2578 = vunpack.c.h.b16 %v1739
    %v2579 = vunpack.c.l.b16 %v1740
    %v2580 = vunpack.c.h.b16 %v1740
    %v2581 = vunpack.c.l.b16 %v1741
    %v2582 = vunpack.c.h.b16 %v1741
    %v2583 = vunpack.c.l.b16 %v1742
    %v2584 = vunpack.c.h.b16 %v1742
    %v2585 = vunpack.c.l.b16 %v1743
    %v2586 = vunpack.c.h.b16 %v1743
    %v2587 = vpack.c.b16 %v2079, %v2075
    %v2588 = vpack.c.b16 %v2080, %v2076
    %v2589 = vpack.c.b16 %v2081, %v2077
    %v2590 = vpack.c.b16 %v2082, %v2078
    %v2591 = vpack.c.b16 %v2087, %v2083
    %v2592 = vpack.c.b16 %v2088, %v2084
    %v2593 = vpack.c.b16 %v2089, %v2085
    %v2594 = vpack.c.b16 %v2090, %v2086
    %v2595 = vpack.c.b16 %v2095, %v2091
    %v2596 = vpack.c.b16 %v2096, %v2092
    %v2597 = vpack.c.b16 %v2097, %v2093
    %v2598 = vpack.c.b16 %v2098, %v2094
    %v2599 = vpack.c.b16 %v2103, %v2099
    %v2600 = vpack.c.b16 %v2104, %v2100
    %v2601 = vpack.c.b16 %v2105, %v2101
    %v2602 = vpack.c.b16 %v2106, %v2102
    %v2603 = vpack.c.b16 %v2111, %v2107
    %v2604 = vpack.c.b16 %v2112, %v2108
    %v2605 = vpack.c.b16 %v2113, %v2109
    %v2606 = vpack.c.b16 %v2114, %v2110
    %v2607 = vpack.c.b16 %v2119, %v2115
    %v2608 = vpack.c.b16 %v2120, %v2116
    %v2609 = vpack.c.b16 %v2121, %v2117
    %v2610 = vpack.c.b16 %v2122, %v2118
    %v2611 = vpack.c.b16 %v2127, %v2123
    %v2612 = vpack.c.b16 %v2128, %v2124
    %v2613 = vpack.c.b16 %v2129, %v2125
    %v2614 = vpack.c.b16 %v2130, %v2126
    %v2615 = vpack.c.b16 %v2135, %v2131
    %v2616 = vpack.c.b16 %v2136, %v2132
    %v2617 = vpack.c.b16 %v2137, %v2133
    %v2618 = vpack.c.b16 %v2138, %v2134
    %v2619 = vpack.c.b16 %v2143, %v2139
    %v2620 = vpack.c.b16 %v2144, %v2140
    %v2621 = vpack.c.b16 %v2145, %v2141
    %v2622 = vpack.c.b16 %v2146, %v2142
    %v2623 = vpack.c.b16 %v2151, %v2147
    %v2624 = vpack.c.b16 %v2152, %v2148
    %v2625 = vpack.c.b16 %v2153, %v2149
    %v2626 = vpack.c.b16 %v2154, %v2150
    %v2627 = vpack.c.b16 %v2159, %v2155
    %v2628 = vpack.c.b16 %v2160, %v2156
    %v2629 = vpack.c.b16 %v2161, %v2157
    %v2630 = vpack.c.b16 %v2162, %v2158
    %v2631 = vpack.c.b16 %v2167, %v2163
    %v2632 = vpack.c.b16 %v2168, %v2164
    %v2633 = vpack.c.b16 %v2169, %v2165
    %v2634 = vpack.c.b16 %v2170, %v2166
    %v2635 = vpack.c.b16 %v2175, %v2171
    %v2636 = vpack.c.b16 %v2176, %v2172
    %v2637 = vpack.c.b16 %v2177, %v2173
    %v2638 = vpack.c.b16 %v2178, %v2174
    %v2639 = vpack.c.b16 %v2183, %v2179
    %v2640 = vpack.c.b16 %v2184, %v2180
    %v2641 = vpack.c.b16 %v2185, %v2181
    %v2642 = vpack.c.b16 %v2186, %v2182
    %v2643 = vpack.c.b16 %v2191, %v2187
    %v2644 = vpack.c.b16 %v2192, %v2188
    %v2645 = vpack.c.b16 %v2193, %v2189
    %v2646 = vpack.c.b16 %v2194, %v2190
    %v2647 = vpack.c.b16 %v2199, %v2195
    %v2648 = vpack.c.b16 %v2200, %v2196
    %v2649 = vpack.c.b16 %v2201, %v2197
    %v2650 = vpack.c.b16 %v2202, %v2198
    %v2651 = vpack.c.b16 %v2207, %v2203
    %v2652 = vpack.c.b16 %v2208, %v2204
    %v2653 = vpack.c.b16 %v2209, %v2205
    %v2654 = vpack.c.b16 %v2210, %v2206
    %v2655 = vpack.c.b16 %v2215, %v2211
    %v2656 = vpack.c.b16 %v2216, %v2212
    %v2657 = vpack.c.b16 %v2217, %v2213
    %v2658 = vpack.c.b16 %v2218, %v2214
    %v2659 = vpack.c.b16 %v2223, %v2219
    %v2660 = vpack.c.b16 %v2224, %v2220
    %v2661 = vpack.c.b16 %v2225, %v2221
    %v2662 = vpack.c.b16 %v2226, %v2222
    %v2663 = vpack.c.b16 %v2231, %v2227
    %v2664 = vpack.c.b16 %v2232, %v2228
    %v2665 = vpack.c.b16 %v2233, %v2229
    %v2666 = vpack.c.b16 %v2234, %v2230
    %v2667 = vpack.c.b16 %v2239, %v2235
    %v2668 = vpack.c.b16 %v2240, %v2236
    %v2669 = vpack.c.b16 %v2241, %v2237
    %v2670 = vpack.c.b16 %v2242, %v2238
    %v2671 = vpack.c.b16 %v2247, %v2243
    %v2672 = vpack.c.b16 %v2248, %v2244
    %v2673 = vpack.c.b16 %v2249, %v2245
    %v2674 = vpack.c.b16 %v2250, %v2246
    %v2675 = vpack.c.b16 %v2255, %v2251
    %v2676 = vpack.c.b16 %v2256, %v2252
    %v2677 = vpack.c.b16 %v2257, %v2253
    %v2678 = vpack.c.b16 %v2258, %v2254
    %v2679 = vpack.c.b16 %v2263, %v2259
    %v2680 = vpack.c.b16 %v2264, %v2260
    %v2681 = vpack.c.b16 %v2265, %v2261
    %v2682 = vpack.c.b16 %v2266, %v2262
    %v2683 = vpack.c.b16 %v2271, %v2267
    %v2684 = vpack.c.b16 %v2272, %v2268
    %v2685 = vpack.c.b16 %v2273, %v2269
    %v2686 = vpack.c.b16 %v2274, %v2270
    %v2687 = vpack.c.b16 %v2279, %v2275
    %v2688 = vpack.c.b16 %v2280, %v2276
    %v2689 = vpack.c.b16 %v2281, %v2277
    %v2690 = vpack.c.b16 %v2282, %v2278
    %v2691 = vpack.c.b16 %v2287, %v2283
    %v2692 = vpack.c.b16 %v2288, %v2284
    %v2693 = vpack.c.b16 %v2289, %v2285
    %v2694 = vpack.c.b16 %v2290, %v2286
    %v2695 = vpack.c.b16 %v2295, %v2291
    %v2696 = vpack.c.b16 %v2296, %v2292
    %v2697 = vpack.c.b16 %v2297, %v2293
    %v2698 = vpack.c.b16 %v2298, %v2294
    %v2699 = vpack.c.b16 %v2303, %v2299
    %v2700 = vpack.c.b16 %v2304, %v2300
    %v2701 = vpack.c.b16 %v2305, %v2301
    %v2702 = vpack.c.b16 %v2306, %v2302
    %v2703 = vpack.c.b16 %v2311, %v2307
    %v2704 = vpack.c.b16 %v2312, %v2308
    %v2705 = vpack.c.b16 %v2313, %v2309
    %v2706 = vpack.c.b16 %v2314, %v2310
    %v2707 = vpack.c.b16 %v2319, %v2315
    %v2708 = vpack.c.b16 %v2320, %v2316
    %v2709 = vpack.c.b16 %v2321, %v2317
    %v2710 = vpack.c.b16 %v2322, %v2318
    %v2711 = vpack.c.b16 %v2327, %v2323
    %v2712 = vpack.c.b16 %v2328, %v2324
    %v2713 = vpack.c.b16 %v2329, %v2325
    %v2714 = vpack.c.b16 %v2330, %v2326
    %v2715 = vpack.c.b16 %v2335, %v2331
    %v2716 = vpack.c.b16 %v2336, %v2332
    %v2717 = vpack.c.b16 %v2337, %v2333
    %v2718 = vpack.c.b16 %v2338, %v2334
    %v2719 = vpack.c.b16 %v2343, %v2339
    %v2720 = vpack.c.b16 %v2344, %v2340
    %v2721 = vpack.c.b16 %v2345, %v2341
    %v2722 = vpack.c.b16 %v2346, %v2342
    %v2723 = vpack.c.b16 %v2351, %v2347
    %v2724 = vpack.c.b16 %v2352, %v2348
    %v2725 = vpack.c.b16 %v2353, %v2349
    %v2726 = vpack.c.b16 %v2354, %v2350
    %v2727 = vpack.c.b16 %v2359, %v2355
    %v2728 = vpack.c.b16 %v2360, %v2356
    %v2729 = vpack.c.b16 %v2361, %v2357
    %v2730 = vpack.c.b16 %v2362, %v2358
    %v2731 = vpack.c.b16 %v2367, %v2363
    %v2732 = vpack.c.b16 %v2368, %v2364
    %v2733 = vpack.c.b16 %v2369, %v2365
    %v2734 = vpack.c.b16 %v2370, %v2366
    %v2735 = vpack.c.b16 %v2375, %v2371
    %v2736 = vpack.c.b16 %v2376, %v2372
    %v2737 = vpack.c.b16 %v2377, %v2373
    %v2738 = vpack.c.b16 %v2378, %v2374
    %v2739 = vpack.c.b16 %v2383, %v2379
    %v2740 = vpack.c.b16 %v2384, %v2380
    %v2741 = vpack.c.b16 %v2385, %v2381
    %v2742 = vpack.c.b16 %v2386, %v2382
    %v2743 = vpack.c.b16 %v2391, %v2387
    %v2744 = vpack.c.b16 %v2392, %v2388
    %v2745 = vpack.c.b16 %v2393, %v2389
    %v2746 = vpack.c.b16 %v2394, %v2390
    %v2747 = vpack.c.b16 %v2399, %v2395
    %v2748 = vpack.c.b16 %v2400, %v2396
    %v2749 = vpack.c.b16 %v2401, %v2397
    %v2750 = vpack.c.b16 %v2402, %v2398
    %v2751 = vpack.c.b16 %v2407, %v2403
    %v2752 = vpack.c.b16 %v2408, %v2404
    %v2753 = vpack.c.b16 %v2409, %v2405
    %v2754 = vpack.c.b16 %v2410, %v2406
    %v2755 = vpack.c.b16 %v2415, %v2411
    %v2756 = vpack.c.b16 %v2416, %v2412
    %v2757 = vpack.c.b16 %v2417, %v2413
    %v2758 = vpack.c.b16 %v2418, %v2414
    %v2759 = vpack.c.b16 %v2423, %v2419
    %v2760 = vpack.c.b16 %v2424, %v2420
    %v2761 = vpack.c.b16 %v2425, %v2421
    %v2762 = vpack.c.b16 %v2426, %v2422
    %v2763 = vpack.c.b16 %v2431, %v2427
    %v2764 = vpack.c.b16 %v2432, %v2428
    %v2765 = vpack.c.b16 %v2433, %v2429
    %v2766 = vpack.c.b16 %v2434, %v2430
    %v2767 = vpack.c.b16 %v2439, %v2435
    %v2768 = vpack.c.b16 %v2440, %v2436
    %v2769 = vpack.c.b16 %v2441, %v2437
    %v2770 = vpack.c.b16 %v2442, %v2438
    %v2771 = vpack.c.b16 %v2447, %v2443
    %v2772 = vpack.c.b16 %v2448, %v2444
    %v2773 = vpack.c.b16 %v2449, %v2445
    %v2774 = vpack.c.b16 %v2450, %v2446
    %v2775 = vpack.c.b16 %v2455, %v2451
    %v2776 = vpack.c.b16 %v2456, %v2452
    %v2777 = vpack.c.b16 %v2457, %v2453
    %v2778 = vpack.c.b16 %v2458, %v2454
    %v2779 = vpack.c.b16 %v2463, %v2459
    %v2780 = vpack.c.b16 %v2464, %v2460
    %v2781 = vpack.c.b16 %v2465, %v2461
    %v2782 = vpack.c.b16 %v2466, %v2462
    %v2783 = vpack.c.b16 %v2471, %v2467
    %v2784 = vpack.c.b16 %v2472, %v2468
    %v2785 = vpack.c.b16 %v2473, %v2469
    %v2786 = vpack.c.b16 %v2474, %v2470
    %v2787 = vpack.c.b16 %v2479, %v2475
    %v2788 = vpack.c.b16 %v2480, %v2476
    %v2789 = vpack.c.b16 %v2481, %v2477
    %v2790 = vpack.c.b16 %v2482, %v2478
    %v2791 = vpack.c.b16 %v2487, %v2483
    %v2792 = vpack.c.b16 %v2488, %v2484
    %v2793 = vpack.c.b16 %v2489, %v2485
    %v2794 = vpack.c.b16 %v2490, %v2486
    %v2795 = vpack.c.b16 %v2495, %v2491
    %v2796 = vpack.c.b16 %v2496, %v2492
    %v2797 = vpack.c.b16 %v2497, %v2493
    %v2798 = vpack.c.b16 %v2498, %v2494
    %v2799 = vpack.c.b16 %v2503, %v2499
    %v2800 = vpack.c.b16 %v2504, %v2500
    %v2801 = vpack.c.b16 %v2505, %v2501
    %v2802 = vpack.c.b16 %v2506, %v2502
    %v2803 = vpack.c.b16 %v2511, %v2507
    %v2804 = vpack.c.b16 %v2512, %v2508
    %v2805 = vpack.c.b16 %v2513, %v2509
    %v2806 = vpack.c.b16 %v2514, %v2510
    %v2807 = vpack.c.b16 %v2519, %v2515
    %v2808 = vpack.c.b16 %v2520, %v2516
    %v2809 = vpack.c.b16 %v2521, %v2517
    %v2810 = vpack.c.b16 %v2522, %v2518
    %v2811 = vpack.c.b16 %v2527, %v2523
    %v2812 = vpack.c.b16 %v2528, %v2524
    %v2813 = vpack.c.b16 %v2529, %v2525
    %v2814 = vpack.c.b16 %v2530, %v2526
    %v2815 = vpack.c.b16 %v2535, %v2531
    %v2816 = vpack.c.b16 %v2536, %v2532
    %v2817 = vpack.c.b16 %v2537, %v2533
    %v2818 = vpack.c.b16 %v2538, %v2534
    %v2819 = vpack.c.b16 %v2543, %v2539
    %v2820 = vpack.c.b16 %v2544, %v2540
    %v2821 = vpack.c.b16 %v2545, %v2541
    %v2822 = vpack.c.b16 %v2546, %v2542
    %v2823 = vpack.c.b16 %v2551, %v2547
    %v2824 = vpack.c.b16 %v2552, %v2548
    %v2825 = vpack.c.b16 %v2553, %v2549
    %v2826 = vpack.c.b16 %v2554, %v2550
    %v2827 = vpack.c.b16 %v2559, %v2555
    %v2828 = vpack.c.b16 %v2560, %v2556
    %v2829 = vpack.c.b16 %v2561, %v2557
    %v2830 = vpack.c.b16 %v2562, %v2558
    %v2831 = vpack.c.b16 %v2567, %v2563
    %v2832 = vpack.c.b16 %v2568, %v2564
    %v2833 = vpack.c.b16 %v2569, %v2565
    %v2834 = vpack.c.b16 %v2570, %v2566
    %v2835 = vpack.c.b16 %v2575, %v2571
    %v2836 = vpack.c.b16 %v2576, %v2572
    %v2837 = vpack.c.b16 %v2577, %v2573
    %v2838 = vpack.c.b16 %v2578, %v2574
    %v2839 = vpack.c.b16 %v2583, %v2579
    %v2840 = vpack.c.b16 %v2584, %v2580
    %v2841 = vpack.c.b16 %v2585, %v2581
    %v2842 = vpack.c.b16 %v2586, %v2582
    %3099 = vmatpush.bf16.msra.mxu0 %v2615
    %3100 = vmatpush.bf16.msra.mxu0 %v2611
    %3101 = vmatpush.bf16.msra.mxu0 %v2607
    %3102 = vmatpush.bf16.msra.mxu0 %v2603
    %3103 = vmatpush.bf16.msra.mxu0 %v2599
    %3104 = vmatpush.bf16.msra.mxu0 %v2595
    %3105 = vmatpush.bf16.msra.mxu0 %v2591
    %3106 = vmatpush.bf16.msra.mxu0 %v2587
    %3107 = vmatmul.bf16.gmra.mxu0 %v1803
    %v3108 = vpop.f32.mrf.mxu0
    %v3109 = vadd.f32 %v1746, %v3108
    %v3110 = vpop.f32.mrf.mxu0
    %3111 = vdwg.mxu0
    %3112 = vmatpush.bf16.msra.mxu0 %v2647
    %3113 = vmatpush.bf16.msra.mxu0 %v2643
    %3114 = vmatpush.bf16.msra.mxu0 %v2639
    %3115 = vmatpush.bf16.msra.mxu0 %v2635
    %3116 = vmatpush.bf16.msra.mxu0 %v2631
    %3117 = vmatpush.bf16.msra.mxu0 %v2627
    %3118 = vmatpush.bf16.msra.mxu0 %v2623
    %3119 = vmatpush.bf16.msra.mxu0 %v2619
    %3120 = vmatmul.bf16.gmra.mxu0 %v1804
    %v3121 = vpop.f32.mrf.mxu0
    %v3122 = vadd.f32 %v3109, %v3121
    %v3123 = vpop.f32.mrf.mxu0
    %3124 = vdwg.mxu0
    %3125 = vmatpush.bf16.msra.mxu0 %v2679
    %3126 = vmatpush.bf16.msra.mxu0 %v2675
    %3127 = vmatpush.bf16.msra.mxu0 %v2671
    %3128 = vmatpush.bf16.msra.mxu0 %v2667
    %3129 = vmatpush.bf16.msra.mxu0 %v2663
    %3130 = vmatpush.bf16.msra.mxu0 %v2659
    %3131 = vmatpush.bf16.msra.mxu0 %v2655
    %3132 = vmatpush.bf16.msra.mxu0 %v2651
    %3133 = vmatmul.bf16.gmra.mxu0 %v1805
    %v3134 = vpop.f32.mrf.mxu0
    %v3135 = vadd.f32 %v3122, %v3134
    %v3136 = vpop.f32.mrf.mxu0
    %3137 = vdwg.mxu0
    %3138 = vmatpush.bf16.msra.mxu0 %v2711
    %3139 = vmatpush.bf16.msra.mxu0 %v2707
    %3140 = vmatpush.bf16.msra.mxu0 %v2703
    %3141 = vmatpush.bf16.msra.mxu0 %v2699
    %3142 = vmatpush.bf16.msra.mxu0 %v2695
    %3143 = vmatpush.bf16.msra.mxu0 %v2691
    %3144 = vmatpush.bf16.msra.mxu0 %v2687
    %3145 = vmatpush.bf16.msra.mxu0 %v2683
    %3146 = vmatmul.bf16.gmra.mxu0 %v1806
    %v3147 = vpop.f32.mrf.mxu0
    %v3148 = vadd.f32 %v3135, %v3147
    %v3149 = vpop.f32.mrf.mxu0
    %3150 = vdwg.mxu0
    %3151 = vmatpush.bf16.msra.mxu0 %v2743
    %3152 = vmatpush.bf16.msra.mxu0 %v2739
    %3153 = vmatpush.bf16.msra.mxu0 %v2735
    %3154 = vmatpush.bf16.msra.mxu0 %v2731
    %3155 = vmatpush.bf16.msra.mxu0 %v2727
    %3156 = vmatpush.bf16.msra.mxu0 %v2723
    %3157 = vmatpush.bf16.msra.mxu0 %v2719
    %3158 = vmatpush.bf16.msra.mxu0 %v2715
    %3159 = vmatmul.bf16.gmra.mxu0 %v1807
    %v3160 = vpop.f32.mrf.mxu0
    %v3161 = vadd.f32 %v3148, %v3160
    %v3162 = vpop.f32.mrf.mxu0
    %3163 = vdwg.mxu0
    %3164 = vmatpush.bf16.msra.mxu0 %v2775
    %3165 = vmatpush.bf16.msra.mxu0 %v2771
    %3166 = vmatpush.bf16.msra.mxu0 %v2767
    %3167 = vmatpush.bf16.msra.mxu0 %v2763
    %3168 = vmatpush.bf16.msra.mxu0 %v2759
    %3169 = vmatpush.bf16.msra.mxu0 %v2755
    %3170 = vmatpush.bf16.msra.mxu0 %v2751
    %3171 = vmatpush.bf16.msra.mxu0 %v2747
    %3172 = vmatmul.bf16.gmra.mxu0 %v1808
    %v3173 = vpop.f32.mrf.mxu0
    %v3174 = vadd.f32 %v3161, %v3173
    %v3175 = vpop.f32.mrf.mxu0
    %3176 = vdwg.mxu0
    %3177 = vmatpush.bf16.msra.mxu0 %v2807
    %3178 = vmatpush.bf16.msra.mxu0 %v2803
    %3179 = vmatpush.bf16.msra.mxu0 %v2799
    %3180 = vmatpush.bf16.msra.mxu0 %v2795
    %3181 = vmatpush.bf16.msra.mxu0 %v2791
    %3182 = vmatpush.bf16.msra.mxu0 %v2787
    %3183 = vmatpush.bf16.msra.mxu0 %v2783
    %3184 = vmatpush.bf16.msra.mxu0 %v2779
    %3185 = vmatmul.bf16.gmra.mxu0 %v1809
    %v3186 = vpop.f32.mrf.mxu0
    %v3187 = vadd.f32 %v3174, %v3186
    %v3188 = vpop.f32.mrf.mxu0
    %3189 = vdwg.mxu0
    %3190 = vmatpush.bf16.msra.mxu0 %v2839
    %3191 = vmatpush.bf16.msra.mxu0 %v2835
    %3192 = vmatpush.bf16.msra.mxu0 %v2831
    %3193 = vmatpush.bf16.msra.mxu0 %v2827
    %3194 = vmatpush.bf16.msra.mxu0 %v2823
    %3195 = vmatpush.bf16.msra.mxu0 %v2819
    %3196 = vmatpush.bf16.msra.mxu0 %v2815
    %3197 = vmatpush.bf16.msra.mxu0 %v2811
    %3198 = vmatmul.bf16.gmra.mxu0 %v1810
    %v3199 = vpop.f32.mrf.mxu0
    %v3200 = vadd.f32 %v3187, %v3199
    %v3201 = vpop.f32.mrf.mxu0
    %3202 = vdwg.mxu0
    %3203 = vmatpush.bf16.msra.mxu0 %v2616
    %3204 = vmatpush.bf16.msra.mxu0 %v2612
    %3205 = vmatpush.bf16.msra.mxu0 %v2608
    %3206 = vmatpush.bf16.msra.mxu0 %v2604
    %3207 = vmatpush.bf16.msra.mxu0 %v2600
    %3208 = vmatpush.bf16.msra.mxu0 %v2596
    %3209 = vmatpush.bf16.msra.mxu0 %v2592
    %3210 = vmatpush.bf16.msra.mxu0 %v2588
    %3211 = vmatmul.bf16.gmra.mxu0 %v1803
    %v3212 = vpop.f32.mrf.mxu0
    %v3213 = vadd.f32 %v1747, %v3212
    %v3214 = vpop.f32.mrf.mxu0
    %3215 = vdwg.mxu0
    %3216 = vmatpush.bf16.msra.mxu0 %v2648
    %3217 = vmatpush.bf16.msra.mxu0 %v2644
    %3218 = vmatpush.bf16.msra.mxu0 %v2640
    %3219 = vmatpush.bf16.msra.mxu0 %v2636
    %3220 = vmatpush.bf16.msra.mxu0 %v2632
    %3221 = vmatpush.bf16.msra.mxu0 %v2628
    %3222 = vmatpush.bf16.msra.mxu0 %v2624
    %3223 = vmatpush.bf16.msra.mxu0 %v2620
    %3224 = vmatmul.bf16.gmra.mxu0 %v1804
    %v3225 = vpop.f32.mrf.mxu0
    %v3226 = vadd.f32 %v3213, %v3225
    %v3227 = vpop.f32.mrf.mxu0
    %3228 = vdwg.mxu0
    %3229 = vmatpush.bf16.msra.mxu0 %v2680
    %3230 = vmatpush.bf16.msra.mxu0 %v2676
    %3231 = vmatpush.bf16.msra.mxu0 %v2672
    %3232 = vmatpush.bf16.msra.mxu0 %v2668
    %3233 = vmatpush.bf16.msra.mxu0 %v2664
    %3234 = vmatpush.bf16.msra.mxu0 %v2660
    %3235 = vmatpush.bf16.msra.mxu0 %v2656
    %3236 = vmatpush.bf16.msra.mxu0 %v2652
    %3237 = vmatmul.bf16.gmra.mxu0 %v1805
    %v3238 = vpop.f32.mrf.mxu0
    %v3239 = vadd.f32 %v3226, %v3238
    %v3240 = vpop.f32.mrf.mxu0
    %3241 = vdwg.mxu0
    %3242 = vmatpush.bf16.msra.mxu0 %v2712
    %3243 = vmatpush.bf16.msra.mxu0 %v2708
    %3244 = vmatpush.bf16.msra.mxu0 %v2704
    %3245 = vmatpush.bf16.msra.mxu0 %v2700
    %3246 = vmatpush.bf16.msra.mxu0 %v2696
    %3247 = vmatpush.bf16.msra.mxu0 %v2692
    %3248 = vmatpush.bf16.msra.mxu0 %v2688
    %3249 = vmatpush.bf16.msra.mxu0 %v2684
    %3250 = vmatmul.bf16.gmra.mxu0 %v1806
    %v3251 = vpop.f32.mrf.mxu0
    %v3252 = vadd.f32 %v3239, %v3251
    %v3253 = vpop.f32.mrf.mxu0
    %3254 = vdwg.mxu0
    %3255 = vmatpush.bf16.msra.mxu0 %v2744
    %3256 = vmatpush.bf16.msra.mxu0 %v2740
    %3257 = vmatpush.bf16.msra.mxu0 %v2736
    %3258 = vmatpush.bf16.msra.mxu0 %v2732
    %3259 = vmatpush.bf16.msra.mxu0 %v2728
    %3260 = vmatpush.bf16.msra.mxu0 %v2724
    %3261 = vmatpush.bf16.msra.mxu0 %v2720
    %3262 = vmatpush.bf16.msra.mxu0 %v2716
    %3263 = vmatmul.bf16.gmra.mxu0 %v1807
    %v3264 = vpop.f32.mrf.mxu0
    %v3265 = vadd.f32 %v3252, %v3264
    %v3266 = vpop.f32.mrf.mxu0
    %3267 = vdwg.mxu0
    %3268 = vmatpush.bf16.msra.mxu0 %v2776
    %3269 = vmatpush.bf16.msra.mxu0 %v2772
    %3270 = vmatpush.bf16.msra.mxu0 %v2768
    %3271 = vmatpush.bf16.msra.mxu0 %v2764
    %3272 = vmatpush.bf16.msra.mxu0 %v2760
    %3273 = vmatpush.bf16.msra.mxu0 %v2756
    %3274 = vmatpush.bf16.msra.mxu0 %v2752
    %3275 = vmatpush.bf16.msra.mxu0 %v2748
    %3276 = vmatmul.bf16.gmra.mxu0 %v1808
    %v3277 = vpop.f32.mrf.mxu0
    %v3278 = vadd.f32 %v3265, %v3277
    %v3279 = vpop.f32.mrf.mxu0
    %3280 = vdwg.mxu0
    %3281 = vmatpush.bf16.msra.mxu0 %v2808
    %3282 = vmatpush.bf16.msra.mxu0 %v2804
    %3283 = vmatpush.bf16.msra.mxu0 %v2800
    %3284 = vmatpush.bf16.msra.mxu0 %v2796
    %3285 = vmatpush.bf16.msra.mxu0 %v2792
    %3286 = vmatpush.bf16.msra.mxu0 %v2788
    %3287 = vmatpush.bf16.msra.mxu0 %v2784
    %3288 = vmatpush.bf16.msra.mxu0 %v2780
    %3289 = vmatmul.bf16.gmra.mxu0 %v1809
    %v3290 = vpop.f32.mrf.mxu0
    %v3291 = vadd.f32 %v3278, %v3290
    %v3292 = vpop.f32.mrf.mxu0
    %3293 = vdwg.mxu0
    %3294 = vmatpush.bf16.msra.mxu0 %v2840
    %3295 = vmatpush.bf16.msra.mxu0 %v2836
    %3296 = vmatpush.bf16.msra.mxu0 %v2832
    %3297 = vmatpush.bf16.msra.mxu0 %v2828
    %3298 = vmatpush.bf16.msra.mxu0 %v2824
    %3299 = vmatpush.bf16.msra.mxu0 %v2820
    %3300 = vmatpush.bf16.msra.mxu0 %v2816
    %3301 = vmatpush.bf16.msra.mxu0 %v2812
    %3302 = vmatmul.bf16.gmra.mxu0 %v1810
    %v3303 = vpop.f32.mrf.mxu0
    %v3304 = vadd.f32 %v3291, %v3303
    %v3305 = vpop.f32.mrf.mxu0
    %3306 = vdwg.mxu0
    %3307 = vmatpush.bf16.msra.mxu0 %v2617
    %3308 = vmatpush.bf16.msra.mxu0 %v2613
    %3309 = vmatpush.bf16.msra.mxu0 %v2609
    %3310 = vmatpush.bf16.msra.mxu0 %v2605
    %3311 = vmatpush.bf16.msra.mxu0 %v2601
    %3312 = vmatpush.bf16.msra.mxu0 %v2597
    %3313 = vmatpush.bf16.msra.mxu0 %v2593
    %3314 = vmatpush.bf16.msra.mxu0 %v2589
    %3315 = vmatmul.bf16.gmra.mxu0 %v1803
    %v3316 = vpop.f32.mrf.mxu0
    %v3317 = vadd.f32 %v1748, %v3316
    %v3318 = vpop.f32.mrf.mxu0
    %3319 = vdwg.mxu0
    %3320 = vmatpush.bf16.msra.mxu0 %v2649
    %3321 = vmatpush.bf16.msra.mxu0 %v2645
    %3322 = vmatpush.bf16.msra.mxu0 %v2641
    %3323 = vmatpush.bf16.msra.mxu0 %v2637
    %3324 = vmatpush.bf16.msra.mxu0 %v2633
    %3325 = vmatpush.bf16.msra.mxu0 %v2629
    %3326 = vmatpush.bf16.msra.mxu0 %v2625
    %3327 = vmatpush.bf16.msra.mxu0 %v2621
    %3328 = vmatmul.bf16.gmra.mxu0 %v1804
    %v3329 = vpop.f32.mrf.mxu0
    %v3330 = vadd.f32 %v3317, %v3329
    %v3331 = vpop.f32.mrf.mxu0
    %3332 = vdwg.mxu0
    %3333 = vmatpush.bf16.msra.mxu0 %v2681
    %3334 = vmatpush.bf16.msra.mxu0 %v2677
    %3335 = vmatpush.bf16.msra.mxu0 %v2673
    %3336 = vmatpush.bf16.msra.mxu0 %v2669
    %3337 = vmatpush.bf16.msra.mxu0 %v2665
    %3338 = vmatpush.bf16.msra.mxu0 %v2661
    %3339 = vmatpush.bf16.msra.mxu0 %v2657
    %3340 = vmatpush.bf16.msra.mxu0 %v2653
    %3341 = vmatmul.bf16.gmra.mxu0 %v1805
    %v3342 = vpop.f32.mrf.mxu0
    %v3343 = vadd.f32 %v3330, %v3342
    %v3344 = vpop.f32.mrf.mxu0
    %3345 = vdwg.mxu0
    %3346 = vmatpush.bf16.msra.mxu0 %v2713
    %3347 = vmatpush.bf16.msra.mxu0 %v2709
    %3348 = vmatpush.bf16.msra.mxu0 %v2705
    %3349 = vmatpush.bf16.msra.mxu0 %v2701
    %3350 = vmatpush.bf16.msra.mxu0 %v2697
    %3351 = vmatpush.bf16.msra.mxu0 %v2693
    %3352 = vmatpush.bf16.msra.mxu0 %v2689
    %3353 = vmatpush.bf16.msra.mxu0 %v2685
    %3354 = vmatmul.bf16.gmra.mxu0 %v1806
    %v3355 = vpop.f32.mrf.mxu0
    %v3356 = vadd.f32 %v3343, %v3355
    %v3357 = vpop.f32.mrf.mxu0
    %3358 = vdwg.mxu0
    %3359 = vmatpush.bf16.msra.mxu0 %v2745
    %3360 = vmatpush.bf16.msra.mxu0 %v2741
    %3361 = vmatpush.bf16.msra.mxu0 %v2737
    %3362 = vmatpush.bf16.msra.mxu0 %v2733
    %3363 = vmatpush.bf16.msra.mxu0 %v2729
    %3364 = vmatpush.bf16.msra.mxu0 %v2725
    %3365 = vmatpush.bf16.msra.mxu0 %v2721
    %3366 = vmatpush.bf16.msra.mxu0 %v2717
    %3367 = vmatmul.bf16.gmra.mxu0 %v1807
    %v3368 = vpop.f32.mrf.mxu0
    %v3369 = vadd.f32 %v3356, %v3368
    %v3370 = vpop.f32.mrf.mxu0
    %3371 = vdwg.mxu0
    %3372 = vmatpush.bf16.msra.mxu0 %v2777
    %3373 = vmatpush.bf16.msra.mxu0 %v2773
    %3374 = vmatpush.bf16.msra.mxu0 %v2769
    %3375 = vmatpush.bf16.msra.mxu0 %v2765
    %3376 = vmatpush.bf16.msra.mxu0 %v2761
    %3377 = vmatpush.bf16.msra.mxu0 %v2757
    %3378 = vmatpush.bf16.msra.mxu0 %v2753
    %3379 = vmatpush.bf16.msra.mxu0 %v2749
    %3380 = vmatmul.bf16.gmra.mxu0 %v1808
    %v3381 = vpop.f32.mrf.mxu0
    %v3382 = vadd.f32 %v3369, %v3381
    %v3383 = vpop.f32.mrf.mxu0
    %3384 = vdwg.mxu0
    %3385 = vmatpush.bf16.msra.mxu0 %v2809
    %3386 = vmatpush.bf16.msra.mxu0 %v2805
    %3387 = vmatpush.bf16.msra.mxu0 %v2801
    %3388 = vmatpush.bf16.msra.mxu0 %v2797
    %3389 = vmatpush.bf16.msra.mxu0 %v2793
    %3390 = vmatpush.bf16.msra.mxu0 %v2789
    %3391 = vmatpush.bf16.msra.mxu0 %v2785
    %3392 = vmatpush.bf16.msra.mxu0 %v2781
    %3393 = vmatmul.bf16.gmra.mxu0 %v1809
    %v3394 = vpop.f32.mrf.mxu0
    %v3395 = vadd.f32 %v3382, %v3394
    %v3396 = vpop.f32.mrf.mxu0
    %3397 = vdwg.mxu0
    %3398 = vmatpush.bf16.msra.mxu0 %v2841
    %3399 = vmatpush.bf16.msra.mxu0 %v2837
    %3400 = vmatpush.bf16.msra.mxu0 %v2833
    %3401 = vmatpush.bf16.msra.mxu0 %v2829
    %3402 = vmatpush.bf16.msra.mxu0 %v2825
    %3403 = vmatpush.bf16.msra.mxu0 %v2821
    %3404 = vmatpush.bf16.msra.mxu0 %v2817
    %3405 = vmatpush.bf16.msra.mxu0 %v2813
    %3406 = vmatmul.bf16.gmra.mxu0 %v1810
    %v3407 = vpop.f32.mrf.mxu0
    %v3408 = vadd.f32 %v3395, %v3407
    %v3409 = vpop.f32.mrf.mxu0
    %3410 = vdwg.mxu0
    %3411 = vmatpush.bf16.msra.mxu0 %v2618
    %3412 = vmatpush.bf16.msra.mxu0 %v2614
    %3413 = vmatpush.bf16.msra.mxu0 %v2610
    %3414 = vmatpush.bf16.msra.mxu0 %v2606
    %3415 = vmatpush.bf16.msra.mxu0 %v2602
    %3416 = vmatpush.bf16.msra.mxu0 %v2598
    %3417 = vmatpush.bf16.msra.mxu0 %v2594
    %3418 = vmatpush.bf16.msra.mxu0 %v2590
    %3419 = vmatmul.bf16.gmra.mxu0 %v1803
    %v3420 = vpop.f32.mrf.mxu0
    %v3421 = vadd.f32 %v1749, %v3420
    %v3422 = vpop.f32.mrf.mxu0
    %3423 = vdwg.mxu0
    %3424 = vmatpush.bf16.msra.mxu0 %v2650
    %3425 = vmatpush.bf16.msra.mxu0 %v2646
    %3426 = vmatpush.bf16.msra.mxu0 %v2642
    %3427 = vmatpush.bf16.msra.mxu0 %v2638
    %3428 = vmatpush.bf16.msra.mxu0 %v2634
    %3429 = vmatpush.bf16.msra.mxu0 %v2630
    %3430 = vmatpush.bf16.msra.mxu0 %v2626
    %3431 = vmatpush.bf16.msra.mxu0 %v2622
    %3432 = vmatmul.bf16.gmra.mxu0 %v1804
    %v3433 = vpop.f32.mrf.mxu0
    %v3434 = vadd.f32 %v3421, %v3433
    %v3435 = vpop.f32.mrf.mxu0
    %3436 = vdwg.mxu0
    %3437 = vmatpush.bf16.msra.mxu0 %v2682
    %3438 = vmatpush.bf16.msra.mxu0 %v2678
    %3439 = vmatpush.bf16.msra.mxu0 %v2674
    %3440 = vmatpush.bf16.msra.mxu0 %v2670
    %3441 = vmatpush.bf16.msra.mxu0 %v2666
    %3442 = vmatpush.bf16.msra.mxu0 %v2662
    %3443 = vmatpush.bf16.msra.mxu0 %v2658
    %3444 = vmatpush.bf16.msra.mxu0 %v2654
    %3445 = vmatmul.bf16.gmra.mxu0 %v1805
    %v3446 = vpop.f32.mrf.mxu0
    %v3447 = vadd.f32 %v3434, %v3446
    %v3448 = vpop.f32.mrf.mxu0
    %3449 = vdwg.mxu0
    %3450 = vmatpush.bf16.msra.mxu0 %v2714
    %3451 = vmatpush.bf16.msra.mxu0 %v2710
    %3452 = vmatpush.bf16.msra.mxu0 %v2706
    %3453 = vmatpush.bf16.msra.mxu0 %v2702
    %3454 = vmatpush.bf16.msra.mxu0 %v2698
    %3455 = vmatpush.bf16.msra.mxu0 %v2694
    %3456 = vmatpush.bf16.msra.mxu0 %v2690
    %3457 = vmatpush.bf16.msra.mxu0 %v2686
    %3458 = vmatmul.bf16.gmra.mxu0 %v1806
    %v3459 = vpop.f32.mrf.mxu0
    %v3460 = vadd.f32 %v3447, %v3459
    %v3461 = vpop.f32.mrf.mxu0
    %3462 = vdwg.mxu0
    %3463 = vmatpush.bf16.msra.mxu0 %v2746
    %3464 = vmatpush.bf16.msra.mxu0 %v2742
    %3465 = vmatpush.bf16.msra.mxu0 %v2738
    %3466 = vmatpush.bf16.msra.mxu0 %v2734
    %3467 = vmatpush.bf16.msra.mxu0 %v2730
    %3468 = vmatpush.bf16.msra.mxu0 %v2726
    %3469 = vmatpush.bf16.msra.mxu0 %v2722
    %3470 = vmatpush.bf16.msra.mxu0 %v2718
    %3471 = vmatmul.bf16.gmra.mxu0 %v1807
    %v3472 = vpop.f32.mrf.mxu0
    %v3473 = vadd.f32 %v3460, %v3472
    %v3474 = vpop.f32.mrf.mxu0
    %3475 = vdwg.mxu0
    %3476 = vmatpush.bf16.msra.mxu0 %v2778
    %3477 = vmatpush.bf16.msra.mxu0 %v2774
    %3478 = vmatpush.bf16.msra.mxu0 %v2770
    %3479 = vmatpush.bf16.msra.mxu0 %v2766
    %3480 = vmatpush.bf16.msra.mxu0 %v2762
    %3481 = vmatpush.bf16.msra.mxu0 %v2758
    %3482 = vmatpush.bf16.msra.mxu0 %v2754
    %3483 = vmatpush.bf16.msra.mxu0 %v2750
    %3484 = vmatmul.bf16.gmra.mxu0 %v1808
    %v3485 = vpop.f32.mrf.mxu0
    %v3486 = vadd.f32 %v3473, %v3485
    %v3487 = vpop.f32.mrf.mxu0
    %3488 = vdwg.mxu0
    %3489 = vmatpush.bf16.msra.mxu0 %v2810
    %3490 = vmatpush.bf16.msra.mxu0 %v2806
    %3491 = vmatpush.bf16.msra.mxu0 %v2802
    %3492 = vmatpush.bf16.msra.mxu0 %v2798
    %3493 = vmatpush.bf16.msra.mxu0 %v2794
    %3494 = vmatpush.bf16.msra.mxu0 %v2790
    %3495 = vmatpush.bf16.msra.mxu0 %v2786
    %3496 = vmatpush.bf16.msra.mxu0 %v2782
    %3497 = vmatmul.bf16.gmra.mxu0 %v1809
    %v3498 = vpop.f32.mrf.mxu0
    %v3499 = vadd.f32 %v3486, %v3498
    %v3500 = vpop.f32.mrf.mxu0
    %3501 = vdwg.mxu0
    %3502 = vmatpush.bf16.msra.mxu0 %v2842
    %3503 = vmatpush.bf16.msra.mxu0 %v2838
    %3504 = vmatpush.bf16.msra.mxu0 %v2834
    %3505 = vmatpush.bf16.msra.mxu0 %v2830
    %3506 = vmatpush.bf16.msra.mxu0 %v2826
    %3507 = vmatpush.bf16.msra.mxu0 %v2822
    %3508 = vmatpush.bf16.msra.mxu0 %v2818
    %3509 = vmatpush.bf16.msra.mxu0 %v2814
    %3510 = vmatmul.bf16.gmra.mxu0 %v1810
    %v3511 = vpop.f32.mrf.mxu0
    %v3512 = vadd.f32 %v3499, %v3511
    %v3513 = vpop.f32.mrf.mxu0
    %3514 = vdwg.mxu0
    %v3515 = vmax.f32 %v3200, 0.0
    %v3516 = vmax.f32 %v3304, 0.0
    %v3517 = vmax.f32 %v3408, 0.0
    %v3518 = vmax.f32 %v3512, 0.0
    %v3519 = vpack.c.bf16 %v3515, %v3515
    %v3520 = vpack.c.bf16 %v3516, %v3516
    %v3521 = vpack.c.bf16 %v3517, %v3517
    %v3522 = vpack.c.bf16 %v3518, %v3518
    %v3523 = vld [vmem:[#allocation7] sm:$0xff]
    %v3524 = vld [vmem:[#allocation7 + $0x8] sm:$0xff]
    %v3525 = vld [vmem:[#allocation7 + $0x10] sm:$0xff]
    %v3526 = vld [vmem:[#allocation7 + $0x18] sm:$0xff]
    %v3527 = vld [vmem:[#allocation7 + $0x20] sm:$0xff]
    %v3528 = vld [vmem:[#allocation7 + $0x28] sm:$0xff]
    %v3529 = vld [vmem:[#allocation7 + $0x30] sm:$0xff]
    %v3530 = vld [vmem:[#allocation7 + $0x38] sm:$0xff]
    %v3531 = vld [vmem:[#allocation7 + $0x40] sm:$0xff]
    %v3532 = vld [vmem:[#allocation7 + $0x48] sm:$0xff]
    %v3533 = vld [vmem:[#allocation7 + $0x50] sm:$0xff]
    %v3534 = vld [vmem:[#allocation7 + $0x58] sm:$0xff]
    %v3535 = vld [vmem:[#allocation7 + $0x60] sm:$0xff]
    %v3536 = vld [vmem:[#allocation7 + $0x68] sm:$0xff]
    %v3537 = vld [vmem:[#allocation7 + $0x70] sm:$0xff]
    %v3538 = vld [vmem:[#allocation7 + $0x78] sm:$0xff]
    %v3539 = vld [vmem:[#allocation7 + $0x80] sm:$0xff]
    %v3540 = vld [vmem:[#allocation7 + $0x88] sm:$0xff]
    %v3541 = vld [vmem:[#allocation7 + $0x90] sm:$0xff]
    %v3542 = vld [vmem:[#allocation7 + $0x98] sm:$0xff]
    %v3543 = vld [vmem:[#allocation7 + $0xa0] sm:$0xff]
    %v3544 = vld [vmem:[#allocation7 + $0xa8] sm:$0xff]
    %v3545 = vld [vmem:[#allocation7 + $0xb0] sm:$0xff]
    %v3546 = vld [vmem:[#allocation7 + $0xb8] sm:$0xff]
    %v3547 = vld [vmem:[#allocation7 + $0xc0] sm:$0xff]
    %v3548 = vld [vmem:[#allocation7 + $0xc8] sm:$0xff]
    %v3549 = vld [vmem:[#allocation7 + $0xd0] sm:$0xff]
    %v3550 = vld [vmem:[#allocation7 + $0xd8] sm:$0xff]
    %v3551 = vld [vmem:[#allocation7 + $0xe0] sm:$0xff]
    %v3552 = vld [vmem:[#allocation7 + $0xe8] sm:$0xff]
    %v3553 = vld [vmem:[#allocation7 + $0xf0] sm:$0xff]
    %v3554 = vld [vmem:[#allocation7 + $0xf8] sm:$0xff]
    %v3555 = vld [vmem:[#allocation7 + $0x100] sm:$0xff]
    %v3556 = vld [vmem:[#allocation7 + $0x108] sm:$0xff]
    %v3557 = vld [vmem:[#allocation7 + $0x110] sm:$0xff]
    %v3558 = vld [vmem:[#allocation7 + $0x118] sm:$0xff]
    %v3559 = vld [vmem:[#allocation7 + $0x120] sm:$0xff]
    %v3560 = vld [vmem:[#allocation7 + $0x128] sm:$0xff]
    %v3561 = vld [vmem:[#allocation7 + $0x130] sm:$0xff]
    %v3562 = vld [vmem:[#allocation7 + $0x138] sm:$0xff]
    %v3563 = vld [vmem:[#allocation7 + $0x140] sm:$0xff]
    %v3564 = vld [vmem:[#allocation7 + $0x148] sm:$0xff]
    %v3565 = vld [vmem:[#allocation7 + $0x150] sm:$0xff]
    %v3566 = vld [vmem:[#allocation7 + $0x158] sm:$0xff]
    %v3567 = vld [vmem:[#allocation7 + $0x160] sm:$0xff]
    %v3568 = vld [vmem:[#allocation7 + $0x168] sm:$0xff]
    %v3569 = vld [vmem:[#allocation7 + $0x170] sm:$0xff]
    %v3570 = vld [vmem:[#allocation7 + $0x178] sm:$0xff]
    %v3571 = vld [vmem:[#allocation7 + $0x180] sm:$0xff]
    %v3572 = vld [vmem:[#allocation7 + $0x188] sm:$0xff]
    %v3573 = vld [vmem:[#allocation7 + $0x190] sm:$0xff]
    %v3574 = vld [vmem:[#allocation7 + $0x198] sm:$0xff]
    %v3575 = vld [vmem:[#allocation7 + $0x1a0] sm:$0xff]
    %v3576 = vld [vmem:[#allocation7 + $0x1a8] sm:$0xff]
    %v3577 = vld [vmem:[#allocation7 + $0x1b0] sm:$0xff]
    %v3578 = vld [vmem:[#allocation7 + $0x1b8] sm:$0xff]
    %v3579 = vld [vmem:[#allocation7 + $0x1c0] sm:$0xff]
    %v3580 = vld [vmem:[#allocation7 + $0x1c8] sm:$0xff]
    %v3581 = vld [vmem:[#allocation7 + $0x1d0] sm:$0xff]
    %v3582 = vld [vmem:[#allocation7 + $0x1d8] sm:$0xff]
    %v3583 = vld [vmem:[#allocation7 + $0x1e0] sm:$0xff]
    %v3584 = vld [vmem:[#allocation7 + $0x1e8] sm:$0xff]
    %v3585 = vld [vmem:[#allocation7 + $0x1f0] sm:$0xff]
    %v3586 = vld [vmem:[#allocation7 + $0x1f8] sm:$0xff]
    %v3587 = vld [vmem:[%s8] sm:$0x3]
    %v3589 = vperm.slane %v3587, 0
    %v3590 = vperm.slane %v3587, 1
    %v3657 = vunpack.c.l.b16 %v3523
    %v3658 = vunpack.c.h.b16 %v3523
    %v3659 = vunpack.c.l.b16 %v3524
    %v3660 = vunpack.c.h.b16 %v3524
    %v3661 = vunpack.c.l.b16 %v3525
    %v3662 = vunpack.c.h.b16 %v3525
    %v3663 = vunpack.c.l.b16 %v3526
    %v3664 = vunpack.c.h.b16 %v3526
    %v3665 = vunpack.c.l.b16 %v3527
    %v3666 = vunpack.c.h.b16 %v3527
    %v3667 = vunpack.c.l.b16 %v3528
    %v3668 = vunpack.c.h.b16 %v3528
    %v3669 = vunpack.c.l.b16 %v3529
    %v3670 = vunpack.c.h.b16 %v3529
    %v3671 = vunpack.c.l.b16 %v3530
    %v3672 = vunpack.c.h.b16 %v3530
    %v3673 = vunpack.c.l.b16 %v3531
    %v3674 = vunpack.c.h.b16 %v3531
    %v3675 = vunpack.c.l.b16 %v3532
    %v3676 = vunpack.c.h.b16 %v3532
    %v3677 = vunpack.c.l.b16 %v3533
    %v3678 = vunpack.c.h.b16 %v3533
    %v3679 = vunpack.c.l.b16 %v3534
    %v3680 = vunpack.c.h.b16 %v3534
    %v3681 = vunpack.c.l.b16 %v3535
    %v3682 = vunpack.c.h.b16 %v3535
    %v3683 = vunpack.c.l.b16 %v3536
    %v3684 = vunpack.c.h.b16 %v3536
    %v3685 = vunpack.c.l.b16 %v3537
    %v3686 = vunpack.c.h.b16 %v3537
    %v3687 = vunpack.c.l.b16 %v3538
    %v3688 = vunpack.c.h.b16 %v3538
    %v3689 = vunpack.c.l.b16 %v3539
    %v3690 = vunpack.c.h.b16 %v3539
    %v3691 = vunpack.c.l.b16 %v3540
    %v3692 = vunpack.c.h.b16 %v3540
    %v3693 = vunpack.c.l.b16 %v3541
    %v3694 = vunpack.c.h.b16 %v3541
    %v3695 = vunpack.c.l.b16 %v3542
    %v3696 = vunpack.c.h.b16 %v3542
    %v3697 = vunpack.c.l.b16 %v3543
    %v3698 = vunpack.c.h.b16 %v3543
    %v3699 = vunpack.c.l.b16 %v3544
    %v3700 = vunpack.c.h.b16 %v3544
    %v3701 = vunpack.c.l.b16 %v3545
    %v3702 = vunpack.c.h.b16 %v3545
    %v3703 = vunpack.c.l.b16 %v3546
    %v3704 = vunpack.c.h.b16 %v3546
    %v3705 = vunpack.c.l.b16 %v3547
    %v3706 = vunpack.c.h.b16 %v3547
    %v3707 = vunpack.c.l.b16 %v3548
    %v3708 = vunpack.c.h.b16 %v3548
    %v3709 = vunpack.c.l.b16 %v3549
    %v3710 = vunpack.c.h.b16 %v3549
    %v3711 = vunpack.c.l.b16 %v3550
    %v3712 = vunpack.c.h.b16 %v3550
    %v3713 = vunpack.c.l.b16 %v3551
    %v3714 = vunpack.c.h.b16 %v3551
    %v3715 = vunpack.c.l.b16 %v3552
    %v3716 = vunpack.c.h.b16 %v3552
    %v3717 = vunpack.c.l.b16 %v3553
    %v3718 = vunpack.c.h.b16 %v3553
    %v3719 = vunpack.c.l.b16 %v3554
    %v3720 = vunpack.c.h.b16 %v3554
    %v3721 = vunpack.c.l.b16 %v3555
    %v3722 = vunpack.c.h.b16 %v3555
    %v3723 = vunpack.c.l.b16 %v3556
    %v3724 = vunpack.c.h.b16 %v3556
    %v3725 = vunpack.c.l.b16 %v3557
    %v3726 = vunpack.c.h.b16 %v3557
    %v3727 = vunpack.c.l.b16 %v3558
    %v3728 = vunpack.c.h.b16 %v3558
    %v3729 = vunpack.c.l.b16 %v3559
    %v3730 = vunpack.c.h.b16 %v3559
    %v3731 = vunpack.c.l.b16 %v3560
    %v3732 = vunpack.c.h.b16 %v3560
    %v3733 = vunpack.c.l.b16 %v3561
    %v3734 = vunpack.c.h.b16 %v3561
    %v3735 = vunpack.c.l.b16 %v3562
    %v3736 = vunpack.c.h.b16 %v3562
    %v3737 = vunpack.c.l.b16 %v3563
    %v3738 = vunpack.c.h.b16 %v3563
    %v3739 = vunpack.c.l.b16 %v3564
    %v3740 = vunpack.c.h.b16 %v3564
    %v3741 = vunpack.c.l.b16 %v3565
    %v3742 = vunpack.c.h.b16 %v3565
    %v3743 = vunpack.c.l.b16 %v3566
    %v3744 = vunpack.c.h.b16 %v3566
    %v3745 = vunpack.c.l.b16 %v3567
    %v3746 = vunpack.c.h.b16 %v3567
    %v3747 = vunpack.c.l.b16 %v3568
    %v3748 = vunpack.c.h.b16 %v3568
    %v3749 = vunpack.c.l.b16 %v3569
    %v3750 = vunpack.c.h.b16 %v3569
    %v3751 = vunpack.c.l.b16 %v3570
    %v3752 = vunpack.c.h.b16 %v3570
    %v3753 = vunpack.c.l.b16 %v3571
    %v3754 = vunpack.c.h.b16 %v3571
    %v3755 = vunpack.c.l.b16 %v3572
    %v3756 = vunpack.c.h.b16 %v3572
    %v3757 = vunpack.c.l.b16 %v3573
    %v3758 = vunpack.c.h.b16 %v3573
    %v3759 = vunpack.c.l.b16 %v3574
    %v3760 = vunpack.c.h.b16 %v3574
    %v3761 = vunpack.c.l.b16 %v3575
    %v3762 = vunpack.c.h.b16 %v3575
    %v3763 = vunpack.c.l.b16 %v3576
    %v3764 = vunpack.c.h.b16 %v3576
    %v3765 = vunpack.c.l.b16 %v3577
    %v3766 = vunpack.c.h.b16 %v3577
    %v3767 = vunpack.c.l.b16 %v3578
    %v3768 = vunpack.c.h.b16 %v3578
    %v3769 = vunpack.c.l.b16 %v3579
    %v3770 = vunpack.c.h.b16 %v3579
    %v3771 = vunpack.c.l.b16 %v3580
    %v3772 = vunpack.c.h.b16 %v3580
    %v3773 = vunpack.c.l.b16 %v3581
    %v3774 = vunpack.c.h.b16 %v3581
    %v3775 = vunpack.c.l.b16 %v3582
    %v3776 = vunpack.c.h.b16 %v3582
    %v3777 = vunpack.c.l.b16 %v3583
    %v3778 = vunpack.c.h.b16 %v3583
    %v3779 = vunpack.c.l.b16 %v3584
    %v3780 = vunpack.c.h.b16 %v3584
    %v3781 = vunpack.c.l.b16 %v3585
    %v3782 = vunpack.c.h.b16 %v3585
    %v3783 = vunpack.c.l.b16 %v3586
    %v3784 = vunpack.c.h.b16 %v3586
    %v3785 = vpack.c.b16 %v3659, %v3657
    %v3786 = vpack.c.b16 %v3660, %v3658
    %v3787 = vpack.c.b16 %v3663, %v3661
    %v3788 = vpack.c.b16 %v3664, %v3662
    %v3789 = vpack.c.b16 %v3667, %v3665
    %v3790 = vpack.c.b16 %v3668, %v3666
    %v3791 = vpack.c.b16 %v3671, %v3669
    %v3792 = vpack.c.b16 %v3672, %v3670
    %v3793 = vpack.c.b16 %v3675, %v3673
    %v3794 = vpack.c.b16 %v3676, %v3674
    %v3795 = vpack.c.b16 %v3679, %v3677
    %v3796 = vpack.c.b16 %v3680, %v3678
    %v3797 = vpack.c.b16 %v3683, %v3681
    %v3798 = vpack.c.b16 %v3684, %v3682
    %v3799 = vpack.c.b16 %v3687, %v3685
    %v3800 = vpack.c.b16 %v3688, %v3686
    %v3801 = vpack.c.b16 %v3691, %v3689
    %v3802 = vpack.c.b16 %v3692, %v3690
    %v3803 = vpack.c.b16 %v3695, %v3693
    %v3804 = vpack.c.b16 %v3696, %v3694
    %v3805 = vpack.c.b16 %v3699, %v3697
    %v3806 = vpack.c.b16 %v3700, %v3698
    %v3807 = vpack.c.b16 %v3703, %v3701
    %v3808 = vpack.c.b16 %v3704, %v3702
    %v3809 = vpack.c.b16 %v3707, %v3705
    %v3810 = vpack.c.b16 %v3708, %v3706
    %v3811 = vpack.c.b16 %v3711, %v3709
    %v3812 = vpack.c.b16 %v3712, %v3710
    %v3813 = vpack.c.b16 %v3715, %v3713
    %v3814 = vpack.c.b16 %v3716, %v3714
    %v3815 = vpack.c.b16 %v3719, %v3717
    %v3816 = vpack.c.b16 %v3720, %v3718
    %v3817 = vpack.c.b16 %v3723, %v3721
    %v3818 = vpack.c.b16 %v3724, %v3722
    %v3819 = vpack.c.b16 %v3727, %v3725
    %v3820 = vpack.c.b16 %v3728, %v3726
    %v3821 = vpack.c.b16 %v3731, %v3729
    %v3822 = vpack.c.b16 %v3732, %v3730
    %v3823 = vpack.c.b16 %v3735, %v3733
    %v3824 = vpack.c.b16 %v3736, %v3734
    %v3825 = vpack.c.b16 %v3739, %v3737
    %v3826 = vpack.c.b16 %v3740, %v3738
    %v3827 = vpack.c.b16 %v3743, %v3741
    %v3828 = vpack.c.b16 %v3744, %v3742
    %v3829 = vpack.c.b16 %v3747, %v3745
    %v3830 = vpack.c.b16 %v3748, %v3746
    %v3831 = vpack.c.b16 %v3751, %v3749
    %v3832 = vpack.c.b16 %v3752, %v3750
    %v3833 = vpack.c.b16 %v3755, %v3753
    %v3834 = vpack.c.b16 %v3756, %v3754
    %v3835 = vpack.c.b16 %v3759, %v3757
    %v3836 = vpack.c.b16 %v3760, %v3758
    %v3837 = vpack.c.b16 %v3763, %v3761
    %v3838 = vpack.c.b16 %v3764, %v3762
    %v3839 = vpack.c.b16 %v3767, %v3765
    %v3840 = vpack.c.b16 %v3768, %v3766
    %v3841 = vpack.c.b16 %v3771, %v3769
    %v3842 = vpack.c.b16 %v3772, %v3770
    %v3843 = vpack.c.b16 %v3775, %v3773
    %v3844 = vpack.c.b16 %v3776, %v3774
    %v3845 = vpack.c.b16 %v3779, %v3777
    %v3846 = vpack.c.b16 %v3780, %v3778
    %v3847 = vpack.c.b16 %v3783, %v3781
    %v3848 = vpack.c.b16 %v3784, %v3782
    %3913 = vmatpush.bf16.msra.mxu0 %v3799
    %3914 = vmatpush.bf16.msra.mxu0 %v3797
    %3915 = vmatpush.bf16.msra.mxu0 %v3795
    %3916 = vmatpush.bf16.msra.mxu0 %v3793
    %3917 = vmatpush.bf16.msra.mxu0 %v3791
    %3918 = vmatpush.bf16.msra.mxu0 %v3789
    %3919 = vmatpush.bf16.msra.mxu0 %v3787
    %3920 = vmatpush.bf16.msra.mxu0 %v3785
    %3921 = vmatmul.bf16.gmra.mxu0 %v3519
    %v3922 = vpop.f32.mrf.mxu0
    %v3923 = vadd.f32 %v3589, %v3922
    %v3924 = vpop.f32.mrf.mxu0
    %3925 = vdwg.mxu0
    %3926 = vmatpush.bf16.msra.mxu0 %v3815
    %3927 = vmatpush.bf16.msra.mxu0 %v3813
    %3928 = vmatpush.bf16.msra.mxu0 %v3811
    %3929 = vmatpush.bf16.msra.mxu0 %v3809
    %3930 = vmatpush.bf16.msra.mxu0 %v3807
    %3931 = vmatpush.bf16.msra.mxu0 %v3805
    %3932 = vmatpush.bf16.msra.mxu0 %v3803
    %3933 = vmatpush.bf16.msra.mxu0 %v3801
    %3934 = vmatmul.bf16.gmra.mxu0 %v3520
    %v3935 = vpop.f32.mrf.mxu0
    %v3936 = vadd.f32 %v3923, %v3935
    %v3937 = vpop.f32.mrf.mxu0
    %3938 = vdwg.mxu0
    %3939 = vmatpush.bf16.msra.mxu0 %v3831
    %3940 = vmatpush.bf16.msra.mxu0 %v3829
    %3941 = vmatpush.bf16.msra.mxu0 %v3827
    %3942 = vmatpush.bf16.msra.mxu0 %v3825
    %3943 = vmatpush.bf16.msra.mxu0 %v3823
    %3944 = vmatpush.bf16.msra.mxu0 %v3821
    %3945 = vmatpush.bf16.msra.mxu0 %v3819
    %3946 = vmatpush.bf16.msra.mxu0 %v3817
    %3947 = vmatmul.bf16.gmra.mxu0 %v3521
    %v3948 = vpop.f32.mrf.mxu0
    %v3949 = vadd.f32 %v3936, %v3948
    %v3950 = vpop.f32.mrf.mxu0
    %3951 = vdwg.mxu0
    %3952 = vmatpush.bf16.msra.mxu0 %v3847
    %3953 = vmatpush.bf16.msra.mxu0 %v3845
    %3954 = vmatpush.bf16.msra.mxu0 %v3843
    %3955 = vmatpush.bf16.msra.mxu0 %v3841
    %3956 = vmatpush.bf16.msra.mxu0 %v3839
    %3957 = vmatpush.bf16.msra.mxu0 %v3837
    %3958 = vmatpush.bf16.msra.mxu0 %v3835
    %3959 = vmatpush.bf16.msra.mxu0 %v3833
    %3960 = vmatmul.bf16.gmra.mxu0 %v3522
    %v3961 = vpop.f32.mrf.mxu0
    %v3962 = vadd.f32 %v3949, %v3961
    %v3963 = vpop.f32.mrf.mxu0
    %3964 = vdwg.mxu0
    %3965 = vmatpush.bf16.msra.mxu0 %v3800
    %3966 = vmatpush.bf16.msra.mxu0 %v3798
    %3967 = vmatpush.bf16.msra.mxu0 %v3796
    %3968 = vmatpush.bf16.msra.mxu0 %v3794
    %3969 = vmatpush.bf16.msra.mxu0 %v3792
    %3970 = vmatpush.bf16.msra.mxu0 %v3790
    %3971 = vmatpush.bf16.msra.mxu0 %v3788
    %3972 = vmatpush.bf16.msra.mxu0 %v3786
    %3973 = vmatmul.bf16.gmra.mxu0 %v3519
    %v3974 = vpop.f32.mrf.mxu0
    %v3975 = vadd.f32 %v3590, %v3974
    %v3976 = vpop.f32.mrf.mxu0
    %3977 = vdwg.mxu0
    %3978 = vmatpush.bf16.msra.mxu0 %v3816
    %3979 = vmatpush.bf16.msra.mxu0 %v3814
    %3980 = vmatpush.bf16.msra.mxu0 %v3812
    %3981 = vmatpush.bf16.msra.mxu0 %v3810
    %3982 = vmatpush.bf16.msra.mxu0 %v3808
    %3983 = vmatpush.bf16.msra.mxu0 %v3806
    %3984 = vmatpush.bf16.msra.mxu0 %v3804
    %3985 = vmatpush.bf16.msra.mxu0 %v3802
    %3986 = vmatmul.bf16.gmra.mxu0 %v3520
    %v3987 = vpop.f32.mrf.mxu0
    %v3988 = vadd.f32 %v3975, %v3987
    %v3989 = vpop.f32.mrf.mxu0
    %3990 = vdwg.mxu0
    %3991 = vmatpush.bf16.msra.mxu0 %v3832
    %3992 = vmatpush.bf16.msra.mxu0 %v3830
    %3993 = vmatpush.bf16.msra.mxu0 %v3828
    %3994 = vmatpush.bf16.msra.mxu0 %v3826
    %3995 = vmatpush.bf16.msra.mxu0 %v3824
    %3996 = vmatpush.bf16.msra.mxu0 %v3822
    %3997 = vmatpush.bf16.msra.mxu0 %v3820
    %3998 = vmatpush.bf16.msra.mxu0 %v3818
    %3999 = vmatmul.bf16.gmra.mxu0 %v3521
    %v4000 = vpop.f32.mrf.mxu0
    %v4001 = vadd.f32 %v3988, %v4000
    %v4002 = vpop.f32.mrf.mxu0
    %4003 = vdwg.mxu0
    %4004 = vmatpush.bf16.msra.mxu0 %v3848
    %4005 = vmatpush.bf16.msra.mxu0 %v3846
    %4006 = vmatpush.bf16.msra.mxu0 %v3844
    %4007 = vmatpush.bf16.msra.mxu0 %v3842
    %4008 = vmatpush.bf16.msra.mxu0 %v3840
    %4009 = vmatpush.bf16.msra.mxu0 %v3838
    %4010 = vmatpush.bf16.msra.mxu0 %v3836
    %4011 = vmatpush.bf16.msra.mxu0 %v3834
    %4012 = vmatmul.bf16.gmra.mxu0 %v3522
    %v4013 = vpop.f32.mrf.mxu0
    %v4014 = vadd.f32 %v4001, %v4013
    %v4015 = vpop.f32.mrf.mxu0
    %4016 = vdwg.mxu0
    %v4017 = vmax.f32 %v3962, 0.0
    %v4018 = vmax.f32 %v4014, 0.0
    %v4019 = vpack.c.bf16 %v4017, %v4017
    %v4020 = vpack.c.bf16 %v4018, %v4018
    %v4021 = vld [vmem:[%s9] sm:$0xf]
    %v4022 = vld [vmem:[%s9 + $0x4] sm:$0xf]
    %v4023 = vld [vmem:[%s9 + $0x8] sm:$0xf]
    %v4024 = vld [vmem:[%s9 + $0xc] sm:$0xf]
    %v4025 = vld [vmem:[%s9 + $0x10] sm:$0xf]
    %v4026 = vld [vmem:[%s9 + $0x14] sm:$0xf]
    %v4027 = vld [vmem:[%s9 + $0x18] sm:$0xf]
    %v4028 = vld [vmem:[%s9 + $0x1c] sm:$0xf]
    %v4029 = vld [vmem:[%s9 + $0x20] sm:$0xf]
    %v4030 = vld [vmem:[%s9 + $0x24] sm:$0xf]
    %v4031 = vld [vmem:[%s9 + $0x28] sm:$0xf]
    %v4032 = vld [vmem:[%s9 + $0x2c] sm:$0xf]
    %v4033 = vld [vmem:[%s9 + $0x30] sm:$0xf]
    %v4034 = vld [vmem:[%s9 + $0x34] sm:$0xf]
    %v4035 = vld [vmem:[%s9 + $0x38] sm:$0xf]
    %v4036 = vld [vmem:[%s9 + $0x3c] sm:$0xf]
    %v4037 = vld [vmem:[%s9 + $0x40] sm:$0xf]
    %v4038 = vld [vmem:[%s9 + $0x44] sm:$0xf]
    %v4039 = vld [vmem:[%s9 + $0x48] sm:$0xf]
    %v4040 = vld [vmem:[%s9 + $0x4c] sm:$0xf]
    %v4041 = vld [vmem:[%s9 + $0x50] sm:$0xf]
    %v4042 = vld [vmem:[%s9 + $0x54] sm:$0xf]
    %v4043 = vld [vmem:[%s9 + $0x58] sm:$0xf]
    %v4044 = vld [vmem:[%s9 + $0x5c] sm:$0xf]
    %v4045 = vld [vmem:[%s9 + $0x60] sm:$0xf]
    %v4046 = vld [vmem:[%s9 + $0x64] sm:$0xf]
    %v4047 = vld [vmem:[%s9 + $0x68] sm:$0xf]
    %v4048 = vld [vmem:[%s9 + $0x6c] sm:$0xf]
    %v4049 = vld [vmem:[%s9 + $0x70] sm:$0xf]
    %v4050 = vld [vmem:[%s9 + $0x74] sm:$0xf]
    %v4051 = vld [vmem:[%s9 + $0x78] sm:$0xf]
    %v4052 = vld [vmem:[%s9 + $0x7c] sm:$0xf]
    %v4053 = vld [vmem:[%s10] sm:$0x1]
    %v4055 = vperm.slane %v4053, 0
    %v4089 = vunpack.c.l.b16 %v4021
    %v4090 = vunpack.c.l.b16 %v4022
    %v4091 = vunpack.c.l.b16 %v4023
    %v4092 = vunpack.c.l.b16 %v4024
    %v4093 = vunpack.c.l.b16 %v4025
    %v4094 = vunpack.c.l.b16 %v4026
    %v4095 = vunpack.c.l.b16 %v4027
    %v4096 = vunpack.c.l.b16 %v4028
    %v4097 = vunpack.c.l.b16 %v4029
    %v4098 = vunpack.c.l.b16 %v4030
    %v4099 = vunpack.c.l.b16 %v4031
    %v4100 = vunpack.c.l.b16 %v4032
    %v4101 = vunpack.c.l.b16 %v4033
    %v4102 = vunpack.c.l.b16 %v4034
    %v4103 = vunpack.c.l.b16 %v4035
    %v4104 = vunpack.c.l.b16 %v4036
    %v4105 = vunpack.c.l.b16 %v4037
    %v4106 = vunpack.c.l.b16 %v4038
    %v4107 = vunpack.c.l.b16 %v4039
    %v4108 = vunpack.c.l.b16 %v4040
    %v4109 = vunpack.c.l.b16 %v4041
    %v4110 = vunpack.c.l.b16 %v4042
    %v4111 = vunpack.c.l.b16 %v4043
    %v4112 = vunpack.c.l.b16 %v4044
    %v4113 = vunpack.c.l.b16 %v4045
    %v4114 = vunpack.c.l.b16 %v4046
    %v4115 = vunpack.c.l.b16 %v4047
    %v4116 = vunpack.c.l.b16 %v4048
    %v4117 = vunpack.c.l.b16 %v4049
    %v4118 = vunpack.c.l.b16 %v4050
    %v4119 = vunpack.c.l.b16 %v4051
    %v4120 = vunpack.c.l.b16 %v4052
    %v4121 = vpack.c.b16 %v4090, %v4089
    %v4122 = vpack.c.b16 %v4092, %v4091
    %v4123 = vpack.c.b16 %v4094, %v4093
    %v4124 = vpack.c.b16 %v4096, %v4095
    %v4125 = vpack.c.b16 %v4098, %v4097
    %v4126 = vpack.c.b16 %v4100, %v4099
    %v4127 = vpack.c.b16 %v4102, %v4101
    %v4128 = vpack.c.b16 %v4104, %v4103
    %v4129 = vpack.c.b16 %v4106, %v4105
    %v4130 = vpack.c.b16 %v4108, %v4107
    %v4131 = vpack.c.b16 %v4110, %v4109
    %v4132 = vpack.c.b16 %v4112, %v4111
    %v4133 = vpack.c.b16 %v4114, %v4113
    %v4134 = vpack.c.b16 %v4116, %v4115
    %v4135 = vpack.c.b16 %v4118, %v4117
    %v4136 = vpack.c.b16 %v4120, %v4119
    %4153 = vmatpush.bf16.msra.mxu0 %v4128
    %4154 = vmatpush.bf16.msra.mxu0 %v4127
    %4155 = vmatpush.bf16.msra.mxu0 %v4126
    %4156 = vmatpush.bf16.msra.mxu0 %v4125
    %4157 = vmatpush.bf16.msra.mxu0 %v4124
    %4158 = vmatpush.bf16.msra.mxu0 %v4123
    %4159 = vmatpush.bf16.msra.mxu0 %v4122
    %4160 = vmatpush.bf16.msra.mxu0 %v4121
    %4161 = vmatmul.bf16.gmra.mxu0 %v4019
    %v4162 = vpop.f32.mrf.mxu0
    %v4163 = vadd.f32 %v4055, %v4162
    %v4164 = vpop.f32.mrf.mxu0
    %4165 = vdwg.mxu0
    %4166 = vmatpush.bf16.msra.mxu0 %v4136
    %4167 = vmatpush.bf16.msra.mxu0 %v4135
    %4168 = vmatpush.bf16.msra.mxu0 %v4134
    %4169 = vmatpush.bf16.msra.mxu0 %v4133
    %4170 = vmatpush.bf16.msra.mxu0 %v4132
    %4171 = vmatpush.bf16.msra.mxu0 %v4131
    %4172 = vmatpush.bf16.msra.mxu0 %v4130
    %4173 = vmatpush.bf16.msra.mxu0 %v4129
    %4174 = vmatmul.bf16.gmra.mxu0 %v4020
    %v4175 = vpop.f32.mrf.mxu0
    %v4176 = vadd.f32 %v4163, %v4175
    %v4177 = vpop.f32.mrf.mxu0
    %4178 = vdwg.mxu0
    %vm4179 = vcmask 123904
    %4180 = vst.msk [vmem:[#allocation8] sm:$0x3] %vm4179, %v4176
    // Predicated region
    $region58: #{tpu_custom_call.1} parent=1 // pred_check
      _
    $region59: #{tpu_custom_call.1} parent=1 // pred_check_branch
      %4182 = sbr.rel (0) target = $region61
    $region60: #{tpu_custom_call.1} parent=1 // pred_region
      %4184 = vsyncadd [#allocation4], 0
      %s4186 = sshll.u32 [#allocation8], 4
      %s4187 = int_to_ptr.vmem [resolvable:$true] %s4186
      %s4188 = sshll.u32 %s11, 4
      %s4189 = int_to_ptr.hbm [resolvable:$true] %s4188
      %4191 = dma.vmem_to_hbm [thread:$0]  %s4187, 32, %s4189, [#allocation4]
    $region61: #{tpu_custom_call.1} parent=1 // pred_fallthru
      _
    // Predicated region
    $region62: #{tpu_custom_call.1} parent=1 // pred_check
      _
    $region63: #{tpu_custom_call.1} parent=1 // pred_check_branch
      %4193 = sbr.rel (0) target = $region65
    $region64: #{tpu_custom_call.1} parent=1 // pred_region
      %4195 = dma.done [#allocation4], 32
    $region65: #{tpu_custom_call.1} parent=1 // pred_fallthru
      _
    %4196 = vsyncpa [#allocation3], 1
    %4197 = vsyncpa [#allocation6], 1
    %4198 = vsyncpa [#allocation4], 1

</llo_original>
